<compile_context>
chip_gen: v6e
topology: v6e:2x2x1
jax: 0.10.0
libtpu: 0.0.40
codegen_flags: <defaults>
</compile_context>

<pallas_src>
import math
from functools import partial

import jax
import jax.numpy as jnp
from jax import lax
from jax.experimental import pallas as pl
from jax.experimental.pallas import tpu as pltpu


def _mha_kernel(*refs, n_head, d_head, scale, mask_mode, compute_dtype):
    if mask_mode == "explicit":
        (x_ref, wq_ref, bq_ref, wk_ref, bk_ref, wv_ref, bv_ref, wo_ref, bo_ref,
         mask_ref, out_ref, k_sc, v_sc, cat_sc) = refs
    else:
        (x_ref, wq_ref, bq_ref, wk_ref, bk_ref, wv_ref, bv_ref, wo_ref, bo_ref,
         out_ref, k_sc, v_sc, cat_sc) = refs
        mask_ref = None

    S = x_ref.shape[1]              # full key/value sequence length
    tq = out_ref.shape[1]           # query tile
    qi = pl.program_id(1)
    q_off = qi * tq                 # element offset of this query tile

    # --- K/V projection: once per batch row; scratch persists across the
    # "arbitrary" query axis, so qi > 0 steps just reuse it. -----------------
    @pl.when(qi == 0)
    def _():
        x_kv = x_ref[0]                                         # (S, D)
        k = jnp.dot(x_kv, wk_ref[...],
                    preferred_element_type=jnp.float32) + bk_ref[0]
        v = jnp.dot(x_kv, wv_ref[...],
                    preferred_element_type=jnp.float32) + bv_ref[0]
        k_sc[...] = k.astype(k_sc.dtype)
        v_sc[...] = v.astype(v_sc.dtype)

    # --- Q projection for this query tile only (sliced from the resident
    # x block; no duplicate x_q input / DMA). --------------------------------
    q_start = pl.multiple_of(q_off, tq)
    x_q = x_ref[0, pl.ds(q_start, tq), :]                       # (tq, D)
    q = (jnp.dot(x_q, wq_ref[...], preferred_element_type=jnp.float32)
         + bq_ref[0]).astype(compute_dtype)                     # (tq, D)

    k = k_sc[...]                                               # (S, D)
    v = v_sc[...]                                               # (S, D)

    # --- Additive mask bias, computed once per (b, qi) step (hoisted out of
    # the head loop). ---------------------------------------------------------
    if mask_mode == "explicit":
        bias = jnp.where(mask_ref[0] == 0, -1e9, 0.0).astype(jnp.float32)
    elif mask_mode == "causal":
        row = lax.broadcasted_iota(jnp.int32, (tq, S), 0) + q_off
        col = lax.broadcasted_iota(jnp.int32, (tq, S), 1)
        bias = jnp.where(row >= col, 0.0, -1e9).astype(jnp.float32)
    else:
        bias = None

    approx_recip = jnp.dtype(compute_dtype) == jnp.dtype(jnp.bfloat16)

    # --- Per-head attention; head outputs land in the concat scratch so the
    # output projection is one full-K GEMM. -----------------------------------
    # n_head is small; a static Python loop is fine (switch to
    # lax.fori_loop(unroll=True) only for very large head counts).
    for h in range(n_head):
        sl = slice(h * d_head, (h + 1) * d_head)
        qh = q[:, sl]                                           # (tq, dh)
        kh = k[:, sl]                                           # (S,  dh)
        vh = v[:, sl]                                           # (S,  dh)

        # QK^T without transposing K: contract the last dim of both operands.
        s = lax.dot_general(qh, kh, (((1,), (1,)), ((), ())),
                            preferred_element_type=jnp.float32) * scale
        if bias is not None:
            s = s + bias

        # Numerically stable softmax in f32; the row-sum reciprocal is folded
        # into the (tq, dh) PV result (off the (tq, S) hot path).
        s = s - jnp.max(s, axis=-1, keepdims=True)
        p = jnp.exp(s)
        inv_l = pl.reciprocal(jnp.sum(p, axis=-1, keepdims=True),
                              approx=approx_recip)              # (tq, 1)

        o_h = jnp.dot(p.astype(compute_dtype), vh,
                      preferred_element_type=jnp.float32)       # (tq, dh)
        cat_sc[:, sl] = (o_h * inv_l).astype(cat_sc.dtype)

    # --- Single full-width output projection. --------------------------------
    out = (jnp.dot(cat_sc[...], wo_ref[...],
                   preferred_element_type=jnp.float32) + bo_ref[0])
    out_ref[0] = out.astype(out_ref.dtype)


def multi_head_attention(x, params, *, n_head, mask=None, causal=False,
                         q_block=None, compute_dtype=jnp.float32):
    """x: (B, S, D). params: dict of wq,bq,wk,bk,wv,bv,wo,bo (f32, (D,D)/(D,)).

    mask: optional (B, S, S); positions where mask == 0 get -1e9 (as in the
    PyTorch module).  causal=True builds the causal mask in-kernel instead.
    q_block tiles the query dimension; compute_dtype is the MXU input dtype
    (f32 or bf16) — accumulation is always f32.
    """
    B, S, D = x.shape
    d_head = D // n_head
    assert d_head * n_head == D, "d_model must be divisible by n_head"
    assert not (causal and mask is not None), "pass either mask= or causal="

    tq = S if q_block is None else q_block
    assert S % tq == 0
    n_qb = S // tq

    cd = jnp.dtype(compute_dtype)
    out_dtype = jnp.dtype(x.dtype)

    # Activations + weights cast once in the wrapper (halves DMA on the bf16
    # path); biases stay f32 — all accumulation is f32 inside the kernel.
    x_in = x.astype(cd)
    wq = params["wq"].astype(cd)
    wk = params["wk"].astype(cd)
    wv = params["wv"].astype(cd)
    wo = params["wo"].astype(cd)
    bq = params["bq"].reshape(1, D).astype(jnp.float32)
    bk = params["bk"].reshape(1, D).astype(jnp.float32)
    bv = params["bv"].reshape(1, D).astype(jnp.float32)
    bo = params["bo"].reshape(1, D).astype(jnp.float32)

    if mask is not None:
        mask_mode = "explicit"
        mask_in = (mask != 0).astype(jnp.int8)   # explicit 0/1 contract, 1B/elem
    elif causal:
        mask_mode = "causal"
        mask_in = None
    else:
        mask_mode = "none"
        mask_in = None

    grid = (B, n_qb)   # batch "parallel", query blocks "arbitrary" (scratch!)

    inputs = [x_in, wq, bq, wk, bk, wv, bv, wo, bo]
    if mask_mode == "explicit":
        inputs.append(mask_in)

    kernel = partial(_mha_kernel, n_head=n_head, d_head=d_head,
                     scale=1.0 / math.sqrt(d_head),
                     mask_mode=mask_mode, compute_dtype=cd)

    # VMEM budget sized from the actual blocks (x block + K/V scratch dominate).
    vmem_bytes = (
        2 * S * D * cd.itemsize                      # x block (double-buffered)
        + 4 * D * D * cd.itemsize                    # 4 weights (single-buffered)
        + 4 * 8 * max(D, 128) * 4                    # biases (tile-padded)
        + 2 * tq * D * out_dtype.itemsize            # out block (double-buffered)
        + 2 * S * D * cd.itemsize                    # K/V scratch
        + tq * D * cd.itemsize                       # concat scratch
        + 4 * tq * max(S, 128) * 4                   # f32 score/prob transients
        + (2 * tq * S if mask_mode == "explicit" else 0))
    vmem_limit = int(min(128 * 1024 * 1024,
                         max(32 * 1024 * 1024, 2 * vmem_bytes + (4 << 20))))

    # Advisory cost estimate for XLA scheduling around the custom call.
    flops = int(B * (8 * S * D * D + 4 * S * S * D))
    transcendentals = int(B * n_head * S * S)
    bytes_accessed = int(
        B * S * D * cd.itemsize                      # x
        + B * S * D * out_dtype.itemsize             # output
        + 4 * D * D * cd.itemsize + 4 * D * 4        # weights + biases
        + (B * S * S if mask_mode == "explicit" else 0))

    def _const_spec(shape, pipeline_mode):
        if pipeline_mode is None:
            return pl.BlockSpec(shape, lambda b, qi: (0, 0))
        return pl.BlockSpec(shape, lambda b, qi: (0, 0),
                            pipeline_mode=pipeline_mode)

    def run(single_buffer_weights):
        pm = pl.Buffered(1) if single_buffer_weights else None
        weight_spec = _const_spec((D, D), pm)
        bias_spec = _const_spec((1, D), pm)
        # x block index depends only on b -> DMA'd once per batch row.
        x_spec = pl.BlockSpec((1, S, D), lambda b, qi: (b, 0, 0))
        out_spec = pl.BlockSpec((1, tq, D), lambda b, qi: (b, qi, 0))

        in_specs = [x_spec,
                    weight_spec, bias_spec,
                    weight_spec, bias_spec,
                    weight_spec, bias_spec,
                    weight_spec, bias_spec]
        if mask_mode == "explicit":
            in_specs.append(pl.BlockSpec((1, tq, S), lambda b, qi: (b, qi, 0)))

        return pl.pallas_call(
            kernel,
            out_shape=jax.ShapeDtypeStruct((B, S, D), out_dtype),
            grid_spec=pltpu.PrefetchScalarGridSpec(
                num_scalar_prefetch=0,
                grid=grid,
                in_specs=in_specs,
                out_specs=out_spec,
                scratch_shapes=[
                    pltpu.VMEM((S, D), cd),   # K (persists across qi blocks)
                    pltpu.VMEM((S, D), cd),   # V (persists across qi blocks)
                    pltpu.VMEM((tq, D), cd),  # per-step head concat buffer
                ]),
            compiler_params=pltpu.CompilerParams(
                dimension_semantics=("parallel", "arbitrary"),
                vmem_limit_bytes=vmem_limit),
            cost_estimate=pl.CostEstimate(
                flops=flops, transcendentals=transcendentals,
                bytes_accessed=bytes_accessed),
        )(*inputs)

    try:
        return run(True)
    except Exception:
        # Fallback if this jax build rejects pipeline_mode=pl.Buffered(1).
        return run(False)


def reference_mha(x, params, *, n_head, mask=None):
    """Pure-JAX reference replicating the PyTorch forward."""
    B, S, D = x.shape
    d_head = D // n_head
    q = x @ params["wq"] + params["bq"]
    k = x @ params["wk"] + params["bk"]
    v = x @ params["wv"] + params["bv"]

    def split(t):
        return t.reshape(B, S, n_head, d_head).transpose(0, 2, 1, 3)

    q, k, v = split(q), split(k), split(v)
    scores = jnp.einsum("bhqd,bhkd->bhqk", q, k) / math.sqrt(d_head)
    if mask is not None:
        scores = jnp.where(mask[:, None, :, :] == 0, -1e9, scores)
    attn = jax.nn.softmax(scores, axis=-1)
    sa = jnp.einsum("bhqk,bhkd->bhqd", attn, v)
    concat = sa.transpose(0, 2, 1, 3).reshape(B, S, D)
    return concat @ params["wo"] + params["bo"]


if __name__ == "__main__":
    B, S, D, H = 2, 8, 32, 4
    key = jax.random.PRNGKey(0)
    keys = jax.random.split(key, 10)

    bound = 1.0 / math.sqrt(D)  # mimic nn.Linear's uniform init range
    params = {
        "wq": jax.random.uniform(keys[0], (D, D), jnp.float32, -bound, bound),
        "bq": jax.random.uniform(keys[1], (D,), jnp.float32, -bound, bound),
        "wk": jax.random.uniform(keys[2], (D, D), jnp.float32, -bound, bound),
        "bk": jax.random.uniform(keys[3], (D,), jnp.float32, -bound, bound),
        "wv": jax.random.uniform(keys[4], (D, D), jnp.float32, -bound, bound),
        "bv": jax.random.uniform(keys[5], (D,), jnp.float32, -bound, bound),
        "wo": jax.random.uniform(keys[6], (D, D), jnp.float32, -bound, bound),
        "bo": jax.random.uniform(keys[7], (D,), jnp.float32, -bound, bound),
    }
    x = jax.random.normal(keys[8], (B, S, D), jnp.float32)
    ref = reference_mha(x, params, n_head=H)

    # 1) f32, no mask (grid (B, 1) — 2 parallel steps).
    out = jax.block_until_ready(multi_head_attention(x, params, n_head=H))
    assert out.shape == (B, S, D)
    assert jnp.allclose(out, ref, atol=1e-4, rtol=1e-4), (
        f"f32 max abs err {jnp.max(jnp.abs(out - ref))}")

    # 2) Explicit 0/1 mask (shipped as int8, additive -1e9 bias in-kernel).
    causal_mask = jnp.broadcast_to(jnp.tril(jnp.ones((S, S), jnp.float32)),
                                   (B, S, S))
    ref_m = reference_mha(x, params, n_head=H, mask=causal_mask)
    out_m = jax.block_until_ready(
        multi_head_attention(x, params, n_head=H, mask=causal_mask))
    assert jnp.allclose(out_m, ref_m, atol=1e-4, rtol=1e-4), (
        f"masked max abs err {jnp.max(jnp.abs(out_m - ref_m))}")

    # 3) In-kernel causal mask (no (B, S, S) HBM traffic at all).
    out_c = jax.block_until_ready(
        multi_head_attention(x, params, n_head=H, causal=True))
    assert jnp.allclose(out_c, ref_m, atol=1e-4, rtol=1e-4), (
        f"causal max abs err {jnp.max(jnp.abs(out_c - ref_m))}")

    # 4) bf16 MXU path (f32 accumulation) — looser tolerance vs f32 reference.
    out_bf = jax.block_until_ready(
        multi_head_attention(x, params, n_head=H, compute_dtype=jnp.bfloat16))
    assert jnp.allclose(out_bf, ref, atol=3e-2, rtol=3e-2), (
        f"bf16 max abs err {jnp.max(jnp.abs(out_bf - ref))}")

    # 5) Query-tiled grid (S=16, tq=8): K/V scratch reused across qi blocks.
    x2 = jax.random.normal(keys[9], (B, 16, D), jnp.float32)
    ref2 = reference_mha(x2, params, n_head=H)
    out2 = jax.block_until_ready(
        multi_head_attention(x2, params, n_head=H, q_block=8))
    assert jnp.allclose(out2, ref2, atol=1e-4, rtol=1e-4), (
        f"tiled max abs err {jnp.max(jnp.abs(out2 - ref2))}")

    # 6) Query-tiled + in-kernel causal (exercises the qi-dependent iota bias).
    causal16 = jnp.broadcast_to(jnp.tril(jnp.ones((16, 16), jnp.float32)),
                                (B, 16, 16))
    ref2m = reference_mha(x2, params, n_head=H, mask=causal16)
    out2m = jax.block_until_ready(
        multi_head_attention(x2, params, n_head=H, q_block=8, causal=True))
    assert jnp.allclose(out2m, ref2m, atol=1e-4, rtol=1e-4), (
        f"tiled causal max abs err {jnp.max(jnp.abs(out2m - ref2m))}")

    print("KERNEL_OK")
</pallas_src>

<mosaic_0001>
module attributes {stable_mosaic.version = 11 : i64} {
  func.func @_mha_kernel(%arg0: i32, %arg1: i32, %arg2: memref<1x8x32xf32, #tpu.memory_space<vmem>>, %arg3: memref<32x32xf32, #tpu.memory_space<vmem>>, %arg4: memref<1x32xf32, #tpu.memory_space<vmem>>, %arg5: memref<32x32xf32, #tpu.memory_space<vmem>>, %arg6: memref<1x32xf32, #tpu.memory_space<vmem>>, %arg7: memref<32x32xf32, #tpu.memory_space<vmem>>, %arg8: memref<1x32xf32, #tpu.memory_space<vmem>>, %arg9: memref<32x32xf32, #tpu.memory_space<vmem>>, %arg10: memref<1x32xf32, #tpu.memory_space<vmem>>, %arg11: memref<1x8x32xf32, #tpu.memory_space<vmem>>, %arg12: memref<8x32xf32, #tpu.memory_space<vmem>>, %arg13: memref<8x32xf32, #tpu.memory_space<vmem>>, %arg14: memref<8x32xf32, #tpu.memory_space<vmem>>) attributes {dimension_semantics = [#tpu.dimension_semantics<parallel>, #tpu.dimension_semantics<arbitrary>], iteration_bounds = array<i64: 2, 1>, scalar_prefetch = 0 : i64, scratch_operands = 3 : i64, tpu.core_type = #tpu.core_type<tc>, window_params = [{transform_indices = @transform_0, window_bounds = array<i64: 1, 8, 32>}, {pipeline_mode = #tpu.pipeline_mode<synchronous>, transform_indices = @transform_1, window_bounds = array<i64: 32, 32>}, {pipeline_mode = #tpu.pipeline_mode<synchronous>, transform_indices = @transform_2, window_bounds = array<i64: 1, 32>}, {pipeline_mode = #tpu.pipeline_mode<synchronous>, transform_indices = @transform_3, window_bounds = array<i64: 32, 32>}, {pipeline_mode = #tpu.pipeline_mode<synchronous>, transform_indices = @transform_4, window_bounds = array<i64: 1, 32>}, {pipeline_mode = #tpu.pipeline_mode<synchronous>, transform_indices = @transform_5, window_bounds = array<i64: 32, 32>}, {pipeline_mode = #tpu.pipeline_mode<synchronous>, transform_indices = @transform_6, window_bounds = array<i64: 1, 32>}, {pipeline_mode = #tpu.pipeline_mode<synchronous>, transform_indices = @transform_7, window_bounds = array<i64: 32, 32>}, {pipeline_mode = #tpu.pipeline_mode<synchronous>, transform_indices = @transform_8, window_bounds = array<i64: 1, 32>}, {transform_indices = @transform_9, window_bounds = array<i64: 1, 8, 32>}]} {
    %c8_i32 = arith.constant 8 : i32
    %0 = arith.muli %arg1, %c8_i32 : i32
    %c0_i32 = arith.constant 0 : i32
    %1 = arith.cmpi eq, %arg1, %c0_i32 : i32
    %2 = arith.extui %1 : i1 to i32
    %c0_i32_0 = arith.constant 0 : i32
    %3 = arith.cmpi ne, %2, %c0_i32_0 : i32
    scf.if %3 {
      %c0_45 = arith.constant 0 : index
      %c0_46 = arith.constant 0 : index
      %c0_47 = arith.constant 0 : index
      %100 = vector.load %arg2[%c0_45, %c0_46, %c0_47] : memref<1x8x32xf32, #tpu.memory_space<vmem>>, vector<1x8x32xf32>
      %101 = vector.shape_cast %100 : vector<1x8x32xf32> to vector<8x32xf32>
      %c0_48 = arith.constant 0 : index
      %c0_49 = arith.constant 0 : index
      %102 = vector.load %arg5[%c0_48, %c0_49] : memref<32x32xf32, #tpu.memory_space<vmem>>, vector<32x32xf32>
      %cst_50 = arith.constant dense<0.000000e+00> : vector<8x32xf32>
      %103 = tpu.matmul %101, %102, %cst_50 {dimension_numbers = #tpu.dot_dimension_numbers<[1], [0], [0], [1], [0, 0, 1, 1], [], []>} : vector<8x32xf32>, vector<32x32xf32>, vector<8x32xf32> -> vector<8x32xf32>
      %c0_51 = arith.constant 0 : index
      %c0_52 = arith.constant 0 : index
      %104 = vector.load %arg6[%c0_51, %c0_52] : memref<1x32xf32, #tpu.memory_space<vmem>>, vector<1x32xf32>
      %105 = vector.shape_cast %104 : vector<1x32xf32> to vector<32xf32>
      %106 = vector.shape_cast %105 : vector<32xf32> to vector<1x32xf32>
      %107 = vector.broadcast %106 : vector<1x32xf32> to vector<8x32xf32>
      %108 = arith.addf %103, %107 : vector<8x32xf32>
      %c0_53 = arith.constant 0 : index
      %c0_54 = arith.constant 0 : index
      %109 = vector.load %arg7[%c0_53, %c0_54] : memref<32x32xf32, #tpu.memory_space<vmem>>, vector<32x32xf32>
      %cst_55 = arith.constant dense<0.000000e+00> : vector<8x32xf32>
      %110 = tpu.matmul %101, %109, %cst_55 {dimension_numbers = #tpu.dot_dimension_numbers<[1], [0], [0], [1], [0, 0, 1, 1], [], []>} : vector<8x32xf32>, vector<32x32xf32>, vector<8x32xf32> -> vector<8x32xf32>
      %c0_56 = arith.constant 0 : index
      %c0_57 = arith.constant 0 : index
      %111 = vector.load %arg8[%c0_56, %c0_57] : memref<1x32xf32, #tpu.memory_space<vmem>>, vector<1x32xf32>
      %112 = vector.shape_cast %111 : vector<1x32xf32> to vector<32xf32>
      %113 = vector.shape_cast %112 : vector<32xf32> to vector<1x32xf32>
      %114 = vector.broadcast %113 : vector<1x32xf32> to vector<8x32xf32>
      %115 = arith.addf %110, %114 : vector<8x32xf32>
      %c0_58 = arith.constant 0 : index
      %c0_59 = arith.constant 0 : index
      %116 = vector.load %arg12[%c0_58, %c0_59] : memref<8x32xf32, #tpu.memory_space<vmem>>, vector<8x32xf32>
      tpu.vector_store %arg12[%c0_58, %c0_59], %108 {strides = array<i32>} : memref<8x32xf32, #tpu.memory_space<vmem>>, vector<8x32xf32>,
      %c0_60 = arith.constant 0 : index
      %c0_61 = arith.constant 0 : index
      %117 = vector.load %arg13[%c0_60, %c0_61] : memref<8x32xf32, #tpu.memory_space<vmem>>, vector<8x32xf32>
      tpu.vector_store %arg13[%c0_60, %c0_61], %115 {strides = array<i32>} : memref<8x32xf32, #tpu.memory_space<vmem>>, vector<8x32xf32>,
    } else {
    }
    %4 = tpu.assume_multiple %0, 8 : i32
    %c0 = arith.constant 0 : index
    %5 = arith.index_cast %4 : i32 to index
    %c0_1 = arith.constant 0 : index
    %6 = vector.load %arg2[%c0, %5, %c0_1] : memref<1x8x32xf32, #tpu.memory_space<vmem>>, vector<1x8x32xf32>
    %7 = vector.shape_cast %6 : vector<1x8x32xf32> to vector<8x32xf32>
    %c0_2 = arith.constant 0 : index
    %c0_3 = arith.constant 0 : index
    %8 = vector.load %arg3[%c0_2, %c0_3] : memref<32x32xf32, #tpu.memory_space<vmem>>, vector<32x32xf32>
    %cst = arith.constant dense<0.000000e+00> : vector<8x32xf32>
    %9 = tpu.matmul %7, %8, %cst {dimension_numbers = #tpu.dot_dimension_numbers<[1], [0], [0], [1], [0, 0, 1, 1], [], []>} : vector<8x32xf32>, vector<32x32xf32>, vector<8x32xf32> -> vector<8x32xf32>
    %c0_4 = arith.constant 0 : index
    %c0_5 = arith.constant 0 : index
    %10 = vector.load %arg4[%c0_4, %c0_5] : memref<1x32xf32, #tpu.memory_space<vmem>>, vector<1x32xf32>
    %11 = vector.shape_cast %10 : vector<1x32xf32> to vector<32xf32>
    %12 = vector.shape_cast %11 : vector<32xf32> to vector<1x32xf32>
    %13 = vector.broadcast %12 : vector<1x32xf32> to vector<8x32xf32>
    %14 = arith.addf %9, %13 : vector<8x32xf32>
    %c0_6 = arith.constant 0 : index
    %c0_7 = arith.constant 0 : index
    %15 = vector.load %arg12[%c0_6, %c0_7] : memref<8x32xf32, #tpu.memory_space<vmem>>, vector<8x32xf32>
    %c0_8 = arith.constant 0 : index
    %c0_9 = arith.constant 0 : index
    %16 = vector.load %arg13[%c0_8, %c0_9] : memref<8x32xf32, #tpu.memory_space<vmem>>, vector<8x32xf32>
    %17 = vector.extract_strided_slice %14 {offsets = [0, 0], sizes = [8, 8], strides = [1, 1]} : vector<8x32xf32> to vector<8x8xf32>
    %18 = vector.extract_strided_slice %15 {offsets = [0, 0], sizes = [8, 8], strides = [1, 1]} : vector<8x32xf32> to vector<8x8xf32>
    %19 = vector.extract_strided_slice %16 {offsets = [0, 0], sizes = [8, 8], strides = [1, 1]} : vector<8x32xf32> to vector<8x8xf32>
    %cst_10 = arith.constant dense<0.000000e+00> : vector<8x8xf32>
    %20 = tpu.matmul %17, %18, %cst_10 {dimension_numbers = #tpu.dot_dimension_numbers<[1], [1], [0], [0], [0, 0, 1, 0], [], []>} : vector<8x8xf32>, vector<8x8xf32>, vector<8x8xf32> -> vector<8x8xf32>
    %cst_11 = arith.constant 0.353553385 : f32
    %21 = vector.broadcast %cst_11 : f32 to vector<8x8xf32>
    %22 = arith.mulf %20, %21 : vector<8x8xf32>
    %cst_12 = arith.constant dense<0xFF800000> : vector<8xf32>
    %23 = vector.multi_reduction <maximumf>, %22, %cst_12 [1] : vector<8x8xf32> to vector<8xf32>
    %24 = vector.shape_cast %23 : vector<8xf32> to vector<8x1xf32>
    %25 = vector.broadcast %24 : vector<8x1xf32> to vector<8x8xf32>
    %26 = arith.subf %22, %25 : vector<8x8xf32>
    %27 = math.exp %26 : vector<8x8xf32>
    %cst_13 = arith.constant dense<0.000000e+00> : vector<8xf32>
    %28 = vector.multi_reduction <add>, %27, %cst_13 [1] : vector<8x8xf32> to vector<8xf32>
    %29 = vector.shape_cast %28 : vector<8xf32> to vector<8x1xf32>
    %30 = tpu.reciprocal %29 : vector<8x1xf32> -> vector<8x1xf32>
    %cst_14 = arith.constant dense<0.000000e+00> : vector<8x8xf32>
    %31 = tpu.matmul %27, %19, %cst_14 {dimension_numbers = #tpu.dot_dimension_numbers<[1], [0], [0], [1], [0, 0, 1, 1], [], []>} : vector<8x8xf32>, vector<8x8xf32>, vector<8x8xf32> -> vector<8x8xf32>
    %32 = vector.broadcast %30 : vector<8x1xf32> to vector<8x8xf32>
    %33 = arith.mulf %31, %32 : vector<8x8xf32>
    %c0_15 = arith.constant 0 : index
    %c0_16 = arith.constant 0 : index
    %34 = vector.load %arg14[%c0_15, %c0_16] : memref<8x32xf32, #tpu.memory_space<vmem>>, vector<8x8xf32>
    tpu.vector_store %arg14[%c0_15, %c0_16], %33 {strides = array<i32>} : memref<8x32xf32, #tpu.memory_space<vmem>>, vector<8x8xf32>,
    %35 = vector.extract_strided_slice %14 {offsets = [0, 8], sizes = [8, 8], strides = [1, 1]} : vector<8x32xf32> to vector<8x8xf32>
    %36 = vector.extract_strided_slice %15 {offsets = [0, 8], sizes = [8, 8], strides = [1, 1]} : vector<8x32xf32> to vector<8x8xf32>
    %37 = vector.extract_strided_slice %16 {offsets = [0, 8], sizes = [8, 8], strides = [1, 1]} : vector<8x32xf32> to vector<8x8xf32>
    %cst_17 = arith.constant dense<0.000000e+00> : vector<8x8xf32>
    %38 = tpu.matmul %35, %36, %cst_17 {dimension_numbers = #tpu.dot_dimension_numbers<[1], [1], [0], [0], [0, 0, 1, 0], [], []>} : vector<8x8xf32>, vector<8x8xf32>, vector<8x8xf32> -> vector<8x8xf32>
    %cst_18 = arith.constant 0.353553385 : f32
    %39 = vector.broadcast %cst_18 : f32 to vector<8x8xf32>
    %40 = arith.mulf %38, %39 : vector<8x8xf32>
    %cst_19 = arith.constant dense<0xFF800000> : vector<8xf32>
    %41 = vector.multi_reduction <maximumf>, %40, %cst_19 [1] : vector<8x8xf32> to vector<8xf32>
    %42 = vector.shape_cast %41 : vector<8xf32> to vector<8x1xf32>
    %43 = vector.broadcast %42 : vector<8x1xf32> to vector<8x8xf32>
    %44 = arith.subf %40, %43 : vector<8x8xf32>
    %45 = math.exp %44 : vector<8x8xf32>
    %cst_20 = arith.constant dense<0.000000e+00> : vector<8xf32>
    %46 = vector.multi_reduction <add>, %45, %cst_20 [1] : vector<8x8xf32> to vector<8xf32>
    %47 = vector.shape_cast %46 : vector<8xf32> to vector<8x1xf32>
    %48 = tpu.reciprocal %47 : vector<8x1xf32> -> vector<8x1xf32>
    %cst_21 = arith.constant dense<0.000000e+00> : vector<8x8xf32>
    %49 = tpu.matmul %45, %37, %cst_21 {dimension_numbers = #tpu.dot_dimension_numbers<[1], [0], [0], [1], [0, 0, 1, 1], [], []>} : vector<8x8xf32>, vector<8x8xf32>, vector<8x8xf32> -> vector<8x8xf32>
    %50 = vector.broadcast %48 : vector<8x1xf32> to vector<8x8xf32>
    %51 = arith.mulf %49, %50 : vector<8x8xf32>
    %c0_22 = arith.constant 0 : index
    %c8 = arith.constant 8 : index
    %52 = vector.load %arg14[%c0_22, %c8] : memref<8x32xf32, #tpu.memory_space<vmem>>, vector<8x8xf32>
    tpu.vector_store %arg14[%c0_22, %c8], %51 {strides = array<i32>} : memref<8x32xf32, #tpu.memory_space<vmem>>, vector<8x8xf32>,
    %53 = vector.extract_strided_slice %14 {offsets = [0, 16], sizes = [8, 8], strides = [1, 1]} : vector<8x32xf32> to vector<8x8xf32>
    %54 = vector.extract_strided_slice %15 {offsets = [0, 16], sizes = [8, 8], strides = [1, 1]} : vector<8x32xf32> to vector<8x8xf32>
    %55 = vector.extract_strided_slice %16 {offsets = [0, 16], sizes = [8, 8], strides = [1, 1]} : vector<8x32xf32> to vector<8x8xf32>
    %cst_23 = arith.constant dense<0.000000e+00> : vector<8x8xf32>
    %56 = tpu.matmul %53, %54, %cst_23 {dimension_numbers = #tpu.dot_dimension_numbers<[1], [1], [0], [0], [0, 0, 1, 0], [], []>} : vector<8x8xf32>, vector<8x8xf32>, vector<8x8xf32> -> vector<8x8xf32>
    %cst_24 = arith.constant 0.353553385 : f32
    %57 = vector.broadcast %cst_24 : f32 to vector<8x8xf32>
    %58 = arith.mulf %56, %57 : vector<8x8xf32>
    %cst_25 = arith.constant dense<0xFF800000> : vector<8xf32>
    %59 = vector.multi_reduction <maximumf>, %58, %cst_25 [1] : vector<8x8xf32> to vector<8xf32>
    %60 = vector.shape_cast %59 : vector<8xf32> to vector<8x1xf32>
    %61 = vector.broadcast %60 : vector<8x1xf32> to vector<8x8xf32>
    %62 = arith.subf %58, %61 : vector<8x8xf32>
    %63 = math.exp %62 : vector<8x8xf32>
    %cst_26 = arith.constant dense<0.000000e+00> : vector<8xf32>
    %64 = vector.multi_reduction <add>, %63, %cst_26 [1] : vector<8x8xf32> to vector<8xf32>
    %65 = vector.shape_cast %64 : vector<8xf32> to vector<8x1xf32>
    %66 = tpu.reciprocal %65 : vector<8x1xf32> -> vector<8x1xf32>
    %cst_27 = arith.constant dense<0.000000e+00> : vector<8x8xf32>
    %67 = tpu.matmul %63, %55, %cst_27 {dimension_numbers = #tpu.dot_dimension_numbers<[1], [0], [0], [1], [0, 0, 1, 1], [], []>} : vector<8x8xf32>, vector<8x8xf32>, vector<8x8xf32> -> vector<8x8xf32>
    %68 = vector.broadcast %66 : vector<8x1xf32> to vector<8x8xf32>
    %69 = arith.mulf %67, %68 : vector<8x8xf32>
    %c0_28 = arith.constant 0 : index
    %c16 = arith.constant 16 : index
    %70 = vector.load %arg14[%c0_28, %c16] : memref<8x32xf32, #tpu.memory_space<vmem>>, vector<8x8xf32>
    tpu.vector_store %arg14[%c0_28, %c16], %69 {strides = array<i32>} : memref<8x32xf32, #tpu.memory_space<vmem>>, vector<8x8xf32>,
    %71 = vector.extract_strided_slice %14 {offsets = [0, 24], sizes = [8, 8], strides = [1, 1]} : vector<8x32xf32> to vector<8x8xf32>
    %72 = vector.extract_strided_slice %15 {offsets = [0, 24], sizes = [8, 8], strides = [1, 1]} : vector<8x32xf32> to vector<8x8xf32>
    %73 = vector.extract_strided_slice %16 {offsets = [0, 24], sizes = [8, 8], strides = [1, 1]} : vector<8x32xf32> to vector<8x8xf32>
    %cst_29 = arith.constant dense<0.000000e+00> : vector<8x8xf32>
    %74 = tpu.matmul %71, %72, %cst_29 {dimension_numbers = #tpu.dot_dimension_numbers<[1], [1], [0], [0], [0, 0, 1, 0], [], []>} : vector<8x8xf32>, vector<8x8xf32>, vector<8x8xf32> -> vector<8x8xf32>
    %cst_30 = arith.constant 0.353553385 : f32
    %75 = vector.broadcast %cst_30 : f32 to vector<8x8xf32>
    %76 = arith.mulf %74, %75 : vector<8x8xf32>
    %cst_31 = arith.constant dense<0xFF800000> : vector<8xf32>
    %77 = vector.multi_reduction <maximumf>, %76, %cst_31 [1] : vector<8x8xf32> to vector<8xf32>
    %78 = vector.shape_cast %77 : vector<8xf32> to vector<8x1xf32>
    %79 = vector.broadcast %78 : vector<8x1xf32> to vector<8x8xf32>
    %80 = arith.subf %76, %79 : vector<8x8xf32>
    %81 = math.exp %80 : vector<8x8xf32>
    %cst_32 = arith.constant dense<0.000000e+00> : vector<8xf32>
    %82 = vector.multi_reduction <add>, %81, %cst_32 [1] : vector<8x8xf32> to vector<8xf32>
    %83 = vector.shape_cast %82 : vector<8xf32> to vector<8x1xf32>
    %84 = tpu.reciprocal %83 : vector<8x1xf32> -> vector<8x1xf32>
    %cst_33 = arith.constant dense<0.000000e+00> : vector<8x8xf32>
    %85 = tpu.matmul %81, %73, %cst_33 {dimension_numbers = #tpu.dot_dimension_numbers<[1], [0], [0], [1], [0, 0, 1, 1], [], []>} : vector<8x8xf32>, vector<8x8xf32>, vector<8x8xf32> -> vector<8x8xf32>
    %86 = vector.broadcast %84 : vector<8x1xf32> to vector<8x8xf32>
    %87 = arith.mulf %85, %86 : vector<8x8xf32>
    %c0_34 = arith.constant 0 : index
    %c24 = arith.constant 24 : index
    %88 = vector.load %arg14[%c0_34, %c24] : memref<8x32xf32, #tpu.memory_space<vmem>>, vector<8x8xf32>
    tpu.vector_store %arg14[%c0_34, %c24], %87 {strides = array<i32>} : memref<8x32xf32, #tpu.memory_space<vmem>>, vector<8x8xf32>,
    %c0_35 = arith.constant 0 : index
    %c0_36 = arith.constant 0 : index
    %89 = vector.load %arg14[%c0_35, %c0_36] : memref<8x32xf32, #tpu.memory_space<vmem>>, vector<8x32xf32>
    %c0_37 = arith.constant 0 : index
    %c0_38 = arith.constant 0 : index
    %90 = vector.load %arg9[%c0_37, %c0_38] : memref<32x32xf32, #tpu.memory_space<vmem>>, vector<32x32xf32>
    %cst_39 = arith.constant dense<0.000000e+00> : vector<8x32xf32>
    %91 = tpu.matmul %89, %90, %cst_39 {dimension_numbers = #tpu.dot_dimension_numbers<[1], [0], [0], [1], [0, 0, 1, 1], [], []>} : vector<8x32xf32>, vector<32x32xf32>, vector<8x32xf32> -> vector<8x32xf32>
    %c0_40 = arith.constant 0 : index
    %c0_41 = arith.constant 0 : index
    %92 = vector.load %arg10[%c0_40, %c0_41] : memref<1x32xf32, #tpu.memory_space<vmem>>, vector<1x32xf32>
    %93 = vector.shape_cast %92 : vector<1x32xf32> to vector<32xf32>
    %94 = vector.shape_cast %93 : vector<32xf32> to vector<1x32xf32>
    %95 = vector.broadcast %94 : vector<1x32xf32> to vector<8x32xf32>
    %96 = arith.addf %91, %95 : vector<8x32xf32>
    %c0_42 = arith.constant 0 : index
    %c0_43 = arith.constant 0 : index
    %c0_44 = arith.constant 0 : index
    %97 = vector.load %arg11[%c0_42, %c0_43, %c0_44] : memref<1x8x32xf32, #tpu.memory_space<vmem>>, vector<1x8x32xf32>
    %98 = vector.shape_cast %97 : vector<1x8x32xf32> to vector<8x32xf32>
    %99 = vector.shape_cast %96 : vector<8x32xf32> to vector<1x8x32xf32>
    tpu.vector_store %arg11[%c0_42, %c0_43, %c0_44], %99 {strides = array<i32>} : memref<1x8x32xf32, #tpu.memory_space<vmem>>, vector<1x8x32xf32>,
    return
  }
  func.func @transform_0(%arg0: i32, %arg1: i32) -> (i32, i32, i32) {
    %c0_i32 = arith.constant 0 : i32
    %c0_i32_0 = arith.constant 0 : i32
    %c0_i32_1 = arith.constant 0 : i32
    return %arg0, %c0_i32, %c0_i32_0 : i32, i32, i32
  }
  func.func @transform_1(%arg0: i32, %arg1: i32) -> (i32, i32) {
    %c0_i32 = arith.constant 0 : i32
    %c0_i32_0 = arith.constant 0 : i32
    %c0_i32_1 = arith.constant 0 : i32
    return %c0_i32, %c0_i32_0 : i32, i32
  }
  func.func @transform_2(%arg0: i32, %arg1: i32) -> (i32, i32) {
    %c0_i32 = arith.constant 0 : i32
    %c0_i32_0 = arith.constant 0 : i32
    %c0_i32_1 = arith.constant 0 : i32
    return %c0_i32, %c0_i32_0 : i32, i32
  }
  func.func @transform_3(%arg0: i32, %arg1: i32) -> (i32, i32) {
    %c0_i32 = arith.constant 0 : i32
    %c0_i32_0 = arith.constant 0 : i32
    %c0_i32_1 = arith.constant 0 : i32
    return %c0_i32, %c0_i32_0 : i32, i32
  }
  func.func @transform_4(%arg0: i32, %arg1: i32) -> (i32, i32) {
    %c0_i32 = arith.constant 0 : i32
    %c0_i32_0 = arith.constant 0 : i32
    %c0_i32_1 = arith.constant 0 : i32
    return %c0_i32, %c0_i32_0 : i32, i32
  }
  func.func @transform_5(%arg0: i32, %arg1: i32) -> (i32, i32) {
    %c0_i32 = arith.constant 0 : i32
    %c0_i32_0 = arith.constant 0 : i32
    %c0_i32_1 = arith.constant 0 : i32
    return %c0_i32, %c0_i32_0 : i32, i32
  }
  func.func @transform_6(%arg0: i32, %arg1: i32) -> (i32, i32) {
    %c0_i32 = arith.constant 0 : i32
    %c0_i32_0 = arith.constant 0 : i32
    %c0_i32_1 = arith.constant 0 : i32
    return %c0_i32, %c0_i32_0 : i32, i32
  }
  func.func @transform_7(%arg0: i32, %arg1: i32) -> (i32, i32) {
    %c0_i32 = arith.constant 0 : i32
    %c0_i32_0 = arith.constant 0 : i32
    %c0_i32_1 = arith.constant 0 : i32
    return %c0_i32, %c0_i32_0 : i32, i32
  }
  func.func @transform_8(%arg0: i32, %arg1: i32) -> (i32, i32) {
    %c0_i32 = arith.constant 0 : i32
    %c0_i32_0 = arith.constant 0 : i32
    %c0_i32_1 = arith.constant 0 : i32
    return %c0_i32, %c0_i32_0 : i32, i32
  }
  func.func @transform_9(%arg0: i32, %arg1: i32) -> (i32, i32, i32) {
    %c0_i32 = arith.constant 0 : i32
    %c0_i32_0 = arith.constant 0 : i32
    return %arg0, %arg1, %c0_i32 : i32, i32, i32
  }
}

module attributes {stable_mosaic.version = 11 : i64} {
  func.func @_mha_kernel(%arg0: i32, %arg1: i32, %arg2: memref<1x8x32xf32, #tpu.memory_space<vmem>>, %arg3: memref<32x32xf32, #tpu.memory_space<vmem>>, %arg4: memref<1x32xf32, #tpu.memory_space<vmem>>, %arg5: memref<32x32xf32, #tpu.memory_space<vmem>>, %arg6: memref<1x32xf32, #tpu.memory_space<vmem>>, %arg7: memref<32x32xf32, #tpu.memory_space<vmem>>, %arg8: memref<1x32xf32, #tpu.memory_space<vmem>>, %arg9: memref<32x32xf32, #tpu.memory_space<vmem>>, %arg10: memref<1x32xf32, #tpu.memory_space<vmem>>, %arg11: memref<1x8x32xf32, #tpu.memory_space<vmem>>, %arg12: memref<8x32xf32, #tpu.memory_space<vmem>>, %arg13: memref<8x32xf32, #tpu.memory_space<vmem>>, %arg14: memref<8x32xf32, #tpu.memory_space<vmem>>) attributes {dimension_semantics = [#tpu.dimension_semantics<parallel>, #tpu.dimension_semantics<arbitrary>], iteration_bounds = array<i64: 2, 1>, scalar_prefetch = 0 : i64, scratch_operands = 3 : i64, tpu.core_type = #tpu.core_type<tc>, window_params = [{transform_indices = @transform_0, window_bounds = array<i64: 1, 8, 32>}, {pipeline_mode = #tpu.pipeline_mode<synchronous>, transform_indices = @transform_1, window_bounds = array<i64: 32, 32>}, {pipeline_mode = #tpu.pipeline_mode<synchronous>, transform_indices = @transform_2, window_bounds = array<i64: 1, 32>}, {pipeline_mode = #tpu.pipeline_mode<synchronous>, transform_indices = @transform_3, window_bounds = array<i64: 32, 32>}, {pipeline_mode = #tpu.pipeline_mode<synchronous>, transform_indices = @transform_4, window_bounds = array<i64: 1, 32>}, {pipeline_mode = #tpu.pipeline_mode<synchronous>, transform_indices = @transform_5, window_bounds = array<i64: 32, 32>}, {pipeline_mode = #tpu.pipeline_mode<synchronous>, transform_indices = @transform_6, window_bounds = array<i64: 1, 32>}, {pipeline_mode = #tpu.pipeline_mode<synchronous>, transform_indices = @transform_7, window_bounds = array<i64: 32, 32>}, {pipeline_mode = #tpu.pipeline_mode<synchronous>, transform_indices = @transform_8, window_bounds = array<i64: 1, 32>}, {transform_indices = @transform_9, window_bounds = array<i64: 1, 8, 32>}]} {
    %c8_i32 = arith.constant 8 : i32
    %0 = arith.muli %arg1, %c8_i32 : i32
    %c0_i32 = arith.constant 0 : i32
    %1 = arith.cmpi eq, %arg1, %c0_i32 : i32
    %2 = arith.extui %1 : i1 to i32
    %c0_i32_0 = arith.constant 0 : i32
    %3 = arith.cmpi ne, %2, %c0_i32_0 : i32
    scf.if %3 {
      %c0_45 = arith.constant 0 : index
      %c0_46 = arith.constant 0 : index
      %c0_47 = arith.constant 0 : index
      %100 = vector.load %arg2[%c0_45, %c0_46, %c0_47] : memref<1x8x32xf32, #tpu.memory_space<vmem>>, vector<1x8x32xf32>
      %101 = vector.shape_cast %100 : vector<1x8x32xf32> to vector<8x32xf32>
      %c0_48 = arith.constant 0 : index
      %c0_49 = arith.constant 0 : index
      %102 = vector.load %arg5[%c0_48, %c0_49] : memref<32x32xf32, #tpu.memory_space<vmem>>, vector<32x32xf32>
      %cst_50 = arith.constant dense<0.000000e+00> : vector<8x32xf32>
      %103 = tpu.matmul %101, %102, %cst_50 {dimension_numbers = #tpu.dot_dimension_numbers<[1], [0], [0], [1], [0, 0, 1, 1], [], []>} : vector<8x32xf32>, vector<32x32xf32>, vector<8x32xf32> -> vector<8x32xf32>
      %c0_51 = arith.constant 0 : index
      %c0_52 = arith.constant 0 : index
      %104 = vector.load %arg6[%c0_51, %c0_52] : memref<1x32xf32, #tpu.memory_space<vmem>>, vector<1x32xf32>
      %105 = vector.shape_cast %104 : vector<1x32xf32> to vector<32xf32>
      %106 = vector.shape_cast %105 : vector<32xf32> to vector<1x32xf32>
      %107 = vector.broadcast %106 : vector<1x32xf32> to vector<8x32xf32>
      %108 = arith.addf %103, %107 : vector<8x32xf32>
      %c0_53 = arith.constant 0 : index
      %c0_54 = arith.constant 0 : index
      %109 = vector.load %arg7[%c0_53, %c0_54] : memref<32x32xf32, #tpu.memory_space<vmem>>, vector<32x32xf32>
      %cst_55 = arith.constant dense<0.000000e+00> : vector<8x32xf32>
      %110 = tpu.matmul %101, %109, %cst_55 {dimension_numbers = #tpu.dot_dimension_numbers<[1], [0], [0], [1], [0, 0, 1, 1], [], []>} : vector<8x32xf32>, vector<32x32xf32>, vector<8x32xf32> -> vector<8x32xf32>
      %c0_56 = arith.constant 0 : index
      %c0_57 = arith.constant 0 : index
      %111 = vector.load %arg8[%c0_56, %c0_57] : memref<1x32xf32, #tpu.memory_space<vmem>>, vector<1x32xf32>
      %112 = vector.shape_cast %111 : vector<1x32xf32> to vector<32xf32>
      %113 = vector.shape_cast %112 : vector<32xf32> to vector<1x32xf32>
      %114 = vector.broadcast %113 : vector<1x32xf32> to vector<8x32xf32>
      %115 = arith.addf %110, %114 : vector<8x32xf32>
      %c0_58 = arith.constant 0 : index
      %c0_59 = arith.constant 0 : index
      %116 = vector.load %arg12[%c0_58, %c0_59] : memref<8x32xf32, #tpu.memory_space<vmem>>, vector<8x32xf32>
      tpu.vector_store %arg12[%c0_58, %c0_59], %108 {strides = array<i32>} : memref<8x32xf32, #tpu.memory_space<vmem>>, vector<8x32xf32>,
      %c0_60 = arith.constant 0 : index
      %c0_61 = arith.constant 0 : index
      %117 = vector.load %arg13[%c0_60, %c0_61] : memref<8x32xf32, #tpu.memory_space<vmem>>, vector<8x32xf32>
      tpu.vector_store %arg13[%c0_60, %c0_61], %115 {strides = array<i32>} : memref<8x32xf32, #tpu.memory_space<vmem>>, vector<8x32xf32>,
    } else {
    }
    %4 = tpu.assume_multiple %0, 8 : i32
    %c0 = arith.constant 0 : index
    %5 = arith.index_cast %4 : i32 to index
    %c0_1 = arith.constant 0 : index
    %6 = vector.load %arg2[%c0, %5, %c0_1] : memref<1x8x32xf32, #tpu.memory_space<vmem>>, vector<1x8x32xf32>
    %7 = vector.shape_cast %6 : vector<1x8x32xf32> to vector<8x32xf32>
    %c0_2 = arith.constant 0 : index
    %c0_3 = arith.constant 0 : index
    %8 = vector.load %arg3[%c0_2, %c0_3] : memref<32x32xf32, #tpu.memory_space<vmem>>, vector<32x32xf32>
    %cst = arith.constant dense<0.000000e+00> : vector<8x32xf32>
    %9 = tpu.matmul %7, %8, %cst {dimension_numbers = #tpu.dot_dimension_numbers<[1], [0], [0], [1], [0, 0, 1, 1], [], []>} : vector<8x32xf32>, vector<32x32xf32>, vector<8x32xf32> -> vector<8x32xf32>
    %c0_4 = arith.constant 0 : index
    %c0_5 = arith.constant 0 : index
    %10 = vector.load %arg4[%c0_4, %c0_5] : memref<1x32xf32, #tpu.memory_space<vmem>>, vector<1x32xf32>
    %11 = vector.shape_cast %10 : vector<1x32xf32> to vector<32xf32>
    %12 = vector.shape_cast %11 : vector<32xf32> to vector<1x32xf32>
    %13 = vector.broadcast %12 : vector<1x32xf32> to vector<8x32xf32>
    %14 = arith.addf %9, %13 : vector<8x32xf32>
    %c0_6 = arith.constant 0 : index
    %c0_7 = arith.constant 0 : index
    %15 = vector.load %arg12[%c0_6, %c0_7] : memref<8x32xf32, #tpu.memory_space<vmem>>, vector<8x32xf32>
    %c0_8 = arith.constant 0 : index
    %c0_9 = arith.constant 0 : index
    %16 = vector.load %arg13[%c0_8, %c0_9] : memref<8x32xf32, #tpu.memory_space<vmem>>, vector<8x32xf32>
    %17 = vector.extract_strided_slice %14 {offsets = [0, 0], sizes = [8, 8], strides = [1, 1]} : vector<8x32xf32> to vector<8x8xf32>
    %18 = vector.extract_strided_slice %15 {offsets = [0, 0], sizes = [8, 8], strides = [1, 1]} : vector<8x32xf32> to vector<8x8xf32>
    %19 = vector.extract_strided_slice %16 {offsets = [0, 0], sizes = [8, 8], strides = [1, 1]} : vector<8x32xf32> to vector<8x8xf32>
    %cst_10 = arith.constant dense<0.000000e+00> : vector<8x8xf32>
    %20 = tpu.matmul %17, %18, %cst_10 {dimension_numbers = #tpu.dot_dimension_numbers<[1], [1], [0], [0], [0, 0, 1, 0], [], []>} : vector<8x8xf32>, vector<8x8xf32>, vector<8x8xf32> -> vector<8x8xf32>
    %cst_11 = arith.constant 0.353553385 : f32
    %21 = vector.broadcast %cst_11 : f32 to vector<8x8xf32>
    %22 = arith.mulf %20, %21 : vector<8x8xf32>
    %cst_12 = arith.constant dense<0xFF800000> : vector<8xf32>
    %23 = vector.multi_reduction <maximumf>, %22, %cst_12 [1] : vector<8x8xf32> to vector<8xf32>
    %24 = vector.shape_cast %23 : vector<8xf32> to vector<8x1xf32>
    %25 = vector.broadcast %24 : vector<8x1xf32> to vector<8x8xf32>
    %26 = arith.subf %22, %25 : vector<8x8xf32>
    %27 = math.exp %26 : vector<8x8xf32>
    %cst_13 = arith.constant dense<0.000000e+00> : vector<8xf32>
    %28 = vector.multi_reduction <add>, %27, %cst_13 [1] : vector<8x8xf32> to vector<8xf32>
    %29 = vector.shape_cast %28 : vector<8xf32> to vector<8x1xf32>
    %30 = tpu.reciprocal %29 : vector<8x1xf32> -> vector<8x1xf32>
    %cst_14 = arith.constant dense<0.000000e+00> : vector<8x8xf32>
    %31 = tpu.matmul %27, %19, %cst_14 {dimension_numbers = #tpu.dot_dimension_numbers<[1], [0], [0], [1], [0, 0, 1, 1], [], []>} : vector<8x8xf32>, vector<8x8xf32>, vector<8x8xf32> -> vector<8x8xf32>
    %32 = vector.broadcast %30 : vector<8x1xf32> to vector<8x8xf32>
    %33 = arith.mulf %31, %32 : vector<8x8xf32>
    %c0_15 = arith.constant 0 : index
    %c0_16 = arith.constant 0 : index
    %34 = vector.load %arg14[%c0_15, %c0_16] : memref<8x32xf32, #tpu.memory_space<vmem>>, vector<8x8xf32>
    tpu.vector_store %arg14[%c0_15, %c0_16], %33 {strides = array<i32>} : memref<8x32xf32, #tpu.memory_space<vmem>>, vector<8x8xf32>,
    %35 = vector.extract_strided_slice %14 {offsets = [0, 8], sizes = [8, 8], strides = [1, 1]} : vector<8x32xf32> to vector<8x8xf32>
    %36 = vector.extract_strided_slice %15 {offsets = [0, 8], sizes = [8, 8], strides = [1, 1]} : vector<8x32xf32> to vector<8x8xf32>
    %37 = vector.extract_strided_slice %16 {offsets = [0, 8], sizes = [8, 8], strides = [1, 1]} : vector<8x32xf32> to vector<8x8xf32>
    %cst_17 = arith.constant dense<0.000000e+00> : vector<8x8xf32>
    %38 = tpu.matmul %35, %36, %cst_17 {dimension_numbers = #tpu.dot_dimension_numbers<[1], [1], [0], [0], [0, 0, 1, 0], [], []>} : vector<8x8xf32>, vector<8x8xf32>, vector<8x8xf32> -> vector<8x8xf32>
    %cst_18 = arith.constant 0.353553385 : f32
    %39 = vector.broadcast %cst_18 : f32 to vector<8x8xf32>
    %40 = arith.mulf %38, %39 : vector<8x8xf32>
    %cst_19 = arith.constant dense<0xFF800000> : vector<8xf32>
    %41 = vector.multi_reduction <maximumf>, %40, %cst_19 [1] : vector<8x8xf32> to vector<8xf32>
    %42 = vector.shape_cast %41 : vector<8xf32> to vector<8x1xf32>
    %43 = vector.broadcast %42 : vector<8x1xf32> to vector<8x8xf32>
    %44 = arith.subf %40, %43 : vector<8x8xf32>
    %45 = math.exp %44 : vector<8x8xf32>
    %cst_20 = arith.constant dense<0.000000e+00> : vector<8xf32>
    %46 = vector.multi_reduction <add>, %45, %cst_20 [1] : vector<8x8xf32> to vector<8xf32>
    %47 = vector.shape_cast %46 : vector<8xf32> to vector<8x1xf32>
    %48 = tpu.reciprocal %47 : vector<8x1xf32> -> vector<8x1xf32>
    %cst_21 = arith.constant dense<0.000000e+00> : vector<8x8xf32>
    %49 = tpu.matmul %45, %37, %cst_21 {dimension_numbers = #tpu.dot_dimension_numbers<[1], [0], [0], [1], [0, 0, 1, 1], [], []>} : vector<8x8xf32>, vector<8x8xf32>, vector<8x8xf32> -> vector<8x8xf32>
    %50 = vector.broadcast %48 : vector<8x1xf32> to vector<8x8xf32>
    %51 = arith.mulf %49, %50 : vector<8x8xf32>
    %c0_22 = arith.constant 0 : index
    %c8 = arith.constant 8 : index
    %52 = vector.load %arg14[%c0_22, %c8] : memref<8x32xf32, #tpu.memory_space<vmem>>, vector<8x8xf32>
    tpu.vector_store %arg14[%c0_22, %c8], %51 {strides = array<i32>} : memref<8x32xf32, #tpu.memory_space<vmem>>, vector<8x8xf32>,
    %53 = vector.extract_strided_slice %14 {offsets = [0, 16], sizes = [8, 8], strides = [1, 1]} : vector<8x32xf32> to vector<8x8xf32>
    %54 = vector.extract_strided_slice %15 {offsets = [0, 16], sizes = [8, 8], strides = [1, 1]} : vector<8x32xf32> to vector<8x8xf32>
    %55 = vector.extract_strided_slice %16 {offsets = [0, 16], sizes = [8, 8], strides = [1, 1]} : vector<8x32xf32> to vector<8x8xf32>
    %cst_23 = arith.constant dense<0.000000e+00> : vector<8x8xf32>
    %56 = tpu.matmul %53, %54, %cst_23 {dimension_numbers = #tpu.dot_dimension_numbers<[1], [1], [0], [0], [0, 0, 1, 0], [], []>} : vector<8x8xf32>, vector<8x8xf32>, vector<8x8xf32> -> vector<8x8xf32>
    %cst_24 = arith.constant 0.353553385 : f32
    %57 = vector.broadcast %cst_24 : f32 to vector<8x8xf32>
    %58 = arith.mulf %56, %57 : vector<8x8xf32>
    %cst_25 = arith.constant dense<0xFF800000> : vector<8xf32>
    %59 = vector.multi_reduction <maximumf>, %58, %cst_25 [1] : vector<8x8xf32> to vector<8xf32>
    %60 = vector.shape_cast %59 : vector<8xf32> to vector<8x1xf32>
    %61 = vector.broadcast %60 : vector<8x1xf32> to vector<8x8xf32>
    %62 = arith.subf %58, %61 : vector<8x8xf32>
    %63 = math.exp %62 : vector<8x8xf32>
    %cst_26 = arith.constant dense<0.000000e+00> : vector<8xf32>
    %64 = vector.multi_reduction <add>, %63, %cst_26 [1] : vector<8x8xf32> to vector<8xf32>
    %65 = vector.shape_cast %64 : vector<8xf32> to vector<8x1xf32>
    %66 = tpu.reciprocal %65 : vector<8x1xf32> -> vector<8x1xf32>
    %cst_27 = arith.constant dense<0.000000e+00> : vector<8x8xf32>
    %67 = tpu.matmul %63, %55, %cst_27 {dimension_numbers = #tpu.dot_dimension_numbers<[1], [0], [0], [1], [0, 0, 1, 1], [], []>} : vector<8x8xf32>, vector<8x8xf32>, vector<8x8xf32> -> vector<8x8xf32>
    %68 = vector.broadcast %66 : vector<8x1xf32> to vector<8x8xf32>
    %69 = arith.mulf %67, %68 : vector<8x8xf32>
    %c0_28 = arith.constant 0 : index
    %c16 = arith.constant 16 : index
    %70 = vector.load %arg14[%c0_28, %c16] : memref<8x32xf32, #tpu.memory_space<vmem>>, vector<8x8xf32>
    tpu.vector_store %arg14[%c0_28, %c16], %69 {strides = array<i32>} : memref<8x32xf32, #tpu.memory_space<vmem>>, vector<8x8xf32>,
    %71 = vector.extract_strided_slice %14 {offsets = [0, 24], sizes = [8, 8], strides = [1, 1]} : vector<8x32xf32> to vector<8x8xf32>
    %72 = vector.extract_strided_slice %15 {offsets = [0, 24], sizes = [8, 8], strides = [1, 1]} : vector<8x32xf32> to vector<8x8xf32>
    %73 = vector.extract_strided_slice %16 {offsets = [0, 24], sizes = [8, 8], strides = [1, 1]} : vector<8x32xf32> to vector<8x8xf32>
    %cst_29 = arith.constant dense<0.000000e+00> : vector<8x8xf32>
    %74 = tpu.matmul %71, %72, %cst_29 {dimension_numbers = #tpu.dot_dimension_numbers<[1], [1], [0], [0], [0, 0, 1, 0], [], []>} : vector<8x8xf32>, vector<8x8xf32>, vector<8x8xf32> -> vector<8x8xf32>
    %cst_30 = arith.constant 0.353553385 : f32
    %75 = vector.broadcast %cst_30 : f32 to vector<8x8xf32>
    %76 = arith.mulf %74, %75 : vector<8x8xf32>
    %cst_31 = arith.constant dense<0xFF800000> : vector<8xf32>
    %77 = vector.multi_reduction <maximumf>, %76, %cst_31 [1] : vector<8x8xf32> to vector<8xf32>
    %78 = vector.shape_cast %77 : vector<8xf32> to vector<8x1xf32>
    %79 = vector.broadcast %78 : vector<8x1xf32> to vector<8x8xf32>
    %80 = arith.subf %76, %79 : vector<8x8xf32>
    %81 = math.exp %80 : vector<8x8xf32>
    %cst_32 = arith.constant dense<0.000000e+00> : vector<8xf32>
    %82 = vector.multi_reduction <add>, %81, %cst_32 [1] : vector<8x8xf32> to vector<8xf32>
    %83 = vector.shape_cast %82 : vector<8xf32> to vector<8x1xf32>
    %84 = tpu.reciprocal %83 : vector<8x1xf32> -> vector<8x1xf32>
    %cst_33 = arith.constant dense<0.000000e+00> : vector<8x8xf32>
    %85 = tpu.matmul %81, %73, %cst_33 {dimension_numbers = #tpu.dot_dimension_numbers<[1], [0], [0], [1], [0, 0, 1, 1], [], []>} : vector<8x8xf32>, vector<8x8xf32>, vector<8x8xf32> -> vector<8x8xf32>
    %86 = vector.broadcast %84 : vector<8x1xf32> to vector<8x8xf32>
    %87 = arith.mulf %85, %86 : vector<8x8xf32>
    %c0_34 = arith.constant 0 : index
    %c24 = arith.constant 24 : index
    %88 = vector.load %arg14[%c0_34, %c24] : memref<8x32xf32, #tpu.memory_space<vmem>>, vector<8x8xf32>
    tpu.vector_store %arg14[%c0_34, %c24], %87 {strides = array<i32>} : memref<8x32xf32, #tpu.memory_space<vmem>>, vector<8x8xf32>,
    %c0_35 = arith.constant 0 : index
    %c0_36 = arith.constant 0 : index
    %89 = vector.load %arg14[%c0_35, %c0_36] : memref<8x32xf32, #tpu.memory_space<vmem>>, vector<8x32xf32>
    %c0_37 = arith.constant 0 : index
    %c0_38 = arith.constant 0 : index
    %90 = vector.load %arg9[%c0_37, %c0_38] : memref<32x32xf32, #tpu.memory_space<vmem>>, vector<32x32xf32>
    %cst_39 = arith.constant dense<0.000000e+00> : vector<8x32xf32>
    %91 = tpu.matmul %89, %90, %cst_39 {dimension_numbers = #tpu.dot_dimension_numbers<[1], [0], [0], [1], [0, 0, 1, 1], [], []>} : vector<8x32xf32>, vector<32x32xf32>, vector<8x32xf32> -> vector<8x32xf32>
    %c0_40 = arith.constant 0 : index
    %c0_41 = arith.constant 0 : index
    %92 = vector.load %arg10[%c0_40, %c0_41] : memref<1x32xf32, #tpu.memory_space<vmem>>, vector<1x32xf32>
    %93 = vector.shape_cast %92 : vector<1x32xf32> to vector<32xf32>
    %94 = vector.shape_cast %93 : vector<32xf32> to vector<1x32xf32>
    %95 = vector.broadcast %94 : vector<1x32xf32> to vector<8x32xf32>
    %96 = arith.addf %91, %95 : vector<8x32xf32>
    %c0_42 = arith.constant 0 : index
    %c0_43 = arith.constant 0 : index
    %c0_44 = arith.constant 0 : index
    %97 = vector.load %arg11[%c0_42, %c0_43, %c0_44] : memref<1x8x32xf32, #tpu.memory_space<vmem>>, vector<1x8x32xf32>
    %98 = vector.shape_cast %97 : vector<1x8x32xf32> to vector<8x32xf32>
    %99 = vector.shape_cast %96 : vector<8x32xf32> to vector<1x8x32xf32>
    tpu.vector_store %arg11[%c0_42, %c0_43, %c0_44], %99 {strides = array<i32>} : memref<1x8x32xf32, #tpu.memory_space<vmem>>, vector<1x8x32xf32>,
    return
  }
  func.func @transform_0(%arg0: i32, %arg1: i32) -> (i32, i32, i32) {
    %c0_i32 = arith.constant 0 : i32
    %c0_i32_0 = arith.constant 0 : i32
    %c0_i32_1 = arith.constant 0 : i32
    return %arg0, %c0_i32, %c0_i32_0 : i32, i32, i32
  }
  func.func @transform_1(%arg0: i32, %arg1: i32) -> (i32, i32) {
    %c0_i32 = arith.constant 0 : i32
    %c0_i32_0 = arith.constant 0 : i32
    %c0_i32_1 = arith.constant 0 : i32
    return %c0_i32, %c0_i32_0 : i32, i32
  }
  func.func @transform_2(%arg0: i32, %arg1: i32) -> (i32, i32) {
    %c0_i32 = arith.constant 0 : i32
    %c0_i32_0 = arith.constant 0 : i32
    %c0_i32_1 = arith.constant 0 : i32
    return %c0_i32, %c0_i32_0 : i32, i32
  }
  func.func @transform_3(%arg0: i32, %arg1: i32) -> (i32, i32) {
    %c0_i32 = arith.constant 0 : i32
    %c0_i32_0 = arith.constant 0 : i32
    %c0_i32_1 = arith.constant 0 : i32
    return %c0_i32, %c0_i32_0 : i32, i32
  }
  func.func @transform_4(%arg0: i32, %arg1: i32) -> (i32, i32) {
    %c0_i32 = arith.constant 0 : i32
    %c0_i32_0 = arith.constant 0 : i32
    %c0_i32_1 = arith.constant 0 : i32
    return %c0_i32, %c0_i32_0 : i32, i32
  }
  func.func @transform_5(%arg0: i32, %arg1: i32) -> (i32, i32) {
    %c0_i32 = arith.constant 0 : i32
    %c0_i32_0 = arith.constant 0 : i32
    %c0_i32_1 = arith.constant 0 : i32
    return %c0_i32, %c0_i32_0 : i32, i32
  }
  func.func @transform_6(%arg0: i32, %arg1: i32) -> (i32, i32) {
    %c0_i32 = arith.constant 0 : i32
    %c0_i32_0 = arith.constant 0 : i32
    %c0_i32_1 = arith.constant 0 : i32
    return %c0_i32, %c0_i32_0 : i32, i32
  }
  func.func @transform_7(%arg0: i32, %arg1: i32) -> (i32, i32) {
    %c0_i32 = arith.constant 0 : i32
    %c0_i32_0 = arith.constant 0 : i32
    %c0_i32_1 = arith.constant 0 : i32
    return %c0_i32, %c0_i32_0 : i32, i32
  }
  func.func @transform_8(%arg0: i32, %arg1: i32) -> (i32, i32) {
    %c0_i32 = arith.constant 0 : i32
    %c0_i32_0 = arith.constant 0 : i32
    %c0_i32_1 = arith.constant 0 : i32
    return %c0_i32, %c0_i32_0 : i32, i32
  }
  func.func @transform_9(%arg0: i32, %arg1: i32) -> (i32, i32, i32) {
    %c0_i32 = arith.constant 0 : i32
    %c0_i32_0 = arith.constant 0 : i32
    return %arg0, %arg1, %c0_i32 : i32, i32, i32
  }
}

</mosaic_0001>

<llo_original>
// kernel: tpu_custom_call.1
$region0: #{tpu_custom_call.1}
  #allocation0 [shape = 'u32[]', space=smem, size = 0x4, offset = 0x4, fixed_abs, tag = 'smem constant byte address 0x4 - core index']
  #allocation1 [shape = 'u32[144,128]{1,0:T(1,128)}', space=vmem, size = 0x12000, scoped, tag = 'internal scratch']
  #allocation2 [shape = 'f32[8,32]{1,0:T(8,128)}', space=vmem, size = 0x1000, scoped, tag = 'scratch operand']
  #allocation3 [shape = 'f32[8,32]{1,0:T(8,128)}', space=vmem, size = 0x1000, scoped, tag = 'scratch operand']
  #allocation4 [shape = 'f32[8,32]{1,0:T(8,128)}', space=vmem, size = 0x1000, scoped, tag = 'scratch operand']
  %s0 = inlined_call_operand.hbm [shape: f32[2,8,32], index: 0, kind: input, shape index: {}]
  %s1 = inlined_call_operand.hbm [shape: f32[32,32], index: 1, kind: input, shape index: {}]
  %s2 = inlined_call_operand.vmem [shape: f32[1,32], index: 2, kind: input, shape index: {}]
  %s3 = inlined_call_operand.hbm [shape: f32[32,32], index: 3, kind: input, shape index: {}]
  %s4 = inlined_call_operand.vmem [shape: f32[1,32], index: 4, kind: input, shape index: {}]
  %s5 = inlined_call_operand.hbm [shape: f32[32,32], index: 5, kind: input, shape index: {}]
  %s6 = inlined_call_operand.vmem [shape: f32[1,32], index: 6, kind: input, shape index: {}]
  %s7 = inlined_call_operand.hbm [shape: f32[32,32], index: 7, kind: input, shape index: {}]
  %s8 = inlined_call_operand.vmem [shape: f32[1,32], index: 8, kind: input, shape index: {}]
  %s9 = inlined_call_operand.hbm [shape: f32[2,8,32], index: 9, kind: output, shape index: {}]
  %s10 = sld [smem:[#allocation0]]
  $region93: #{tpu_custom_call.1} parent=0
    _
  %s12 = ssub.s32 1, %s10
  %s13 = scalar_select 0, %s12, %s10
  $region1: #{tpu_custom_call.1} parent=0
    #allocation5 [shape = 'u8[8192]{0}', space=vmem, size = 0x2000, scoped, tag = 'input window, operand 0']
    #allocation6 [shape = 's32[2]{0}', space=sflag, size = 0x8, scoped, tag = 'scoped memory for tpu_custom_call.1']
    #allocation7 [shape = 's32[2]{0}', space=sflag, size = 0x8, scoped, tag = 'scoped memory for tpu_custom_call.1']
    #allocation8 [shape = 'u8[16384]{0}', space=vmem, size = 0x4000, scoped, tag = 'input window, operand 1, single buffered']
    #allocation9 [shape = 's32[1]{0}', space=sflag, size = 0x4, scoped, tag = 'scoped memory for tpu_custom_call.1']
    #allocation10 [shape = 'u8[16384]{0}', space=vmem, size = 0x4000, scoped, tag = 'input window, operand 3, single buffered']
    #allocation11 [shape = 'u8[16384]{0}', space=vmem, size = 0x4000, scoped, tag = 'input window, operand 5, single buffered']
    #allocation12 [shape = 's32[1]{0}', space=sflag, size = 0x4, scoped, tag = 'scoped memory for tpu_custom_call.1']
    #allocation13 [shape = 'u8[16384]{0}', space=vmem, size = 0x4000, scoped, tag = 'input window, operand 7, single buffered']
    #allocation14 [shape = 'u8[8192]{0}', space=vmem, size = 0x2000, scoped, tag = 'output window, operand 0']
    %14 = vsyncpa [#allocation6], 0
    %s15 = scalar_lea.sflag [#allocation6], 1
    %16 = vsyncpa %s15, 0
    %17 = vsyncpa [#allocation9], 0
    %18 = vsyncpa [#allocation12], 0
    %19 = vsyncpa [#allocation7], 0
    %s20 = scalar_lea.sflag [#allocation7], 1
    %21 = vsyncpa %s20, 0
    loop: start=0, step=1, limit=4
    $region2: #{tpu_custom_call.1} parent=1 // loop_pre_header
      _
    $region3: #{tpu_custom_call.1} parent=1 // loop_header
      %s23 = sphi 0, %s27
      %p24 = scmp.ge.s32.totalorder %s23, 4
      %s30 = sphi 0, %s42
      %s31 = sphi 0, %s38
      %s32 = sphi 0, %s30
      %s33 = sphi 0, %s31
      %s34 = sphi 0, %s32
      %s35 = sphi 0, %s33
      %s45 = sphi 0, %s47
      %s48 = sphi 0, %s45
      %s49 = sphi 0, %s48
      %s65 = sphi 0, %s49
      %s69 = sphi 0, %s69
      %s71 = sphi 0, %s69
      %s72 = sphi 0, %s71
      %s86 = sphi 0, %s72
      %s90 = sphi 0, %s90
      %s92 = sphi 0, %s90
      %s93 = sphi 0, %s92
      %s107 = sphi 0, %s93
      %s111 = sphi 0, %s111
      %s113 = sphi 0, %s111
      %s114 = sphi 0, %s113
      %s128 = sphi 0, %s114
      %s132 = sphi 0, %s132
      %s134 = sphi 0, %s132
      %s135 = sphi 0, %s134
      %s149 = sphi 0, %s135
      %s153 = sphi 0, %s153
      %s155 = sphi 0, %s153
      %s156 = sphi 0, %s155
      %s170 = sphi 0, %s156
      %s174 = sphi 0, %s174
      %s176 = sphi 0, %s174
      %s177 = sphi 0, %s176
      %s191 = sphi 0, %s177
      %s195 = sphi 0, %s195
      %s197 = sphi 0, %s195
      %s198 = sphi 0, %s197
      %s212 = sphi 0, %s198
      %s216 = sphi 0, %s216
      %s218 = sphi 0, %s216
      %s219 = sphi 0, %s218
      %s233 = sphi 0, %s219
      %s241 = sphi 0, %s243
      %s244 = sphi 0, %s241
      %s245 = sphi 0, %s244
      %s261 = sphi 0, %s245
    $region4: #{tpu_custom_call.1} parent=1 // loop_header_branch
      %26 = sbr.rel (%p24) target = $region8
    $region5: #{tpu_custom_call.1} parent=1 // loop_body
      %s28 = ssub.s32 %s23, 1
      %s29 = ssub.s32 %s23, 2
      %s36 = sadd.s32 1, %s31
      %p37 = scmp.ge.s32.totalorder %s36, 1
      %s38 = scalar_select %p37, 0, %s36
      %s39 = sadd.s32 1, %s30
      %s40 = scalar_select %p37, %s39, %s30
      %p41 = scmp.ge.s32.totalorder %s40, 2
      %s42 = scalar_select %p41, 0, %s40
      %s43 = ssub.s32 %s30, %s42
      %p44 = scmp.eq.s32.totalorder %s43, 0
      %s46 = sadd.s32 %s45, 1
      %s47 = scalar_select %p44, %s45, %s46
      %p50 = pneg %p44
      %p51 = scmp.eq.s32.totalorder %s23, 1
      %p52 = por %p50, %p51
      %p53 = scmp.ne.s32.totalorder %s45, %s48
      %p54 = scmp.eq.s32.totalorder %s23, 0
      %p55 = por %p53, %p54
      %p56 = scmp.ne.s32.totalorder %s45, %s48
      %p57 = scmp.eq.s32.totalorder %s28, 1
      %p58 = por %p56, %p57
      %p59 = scmp.ne.s32.totalorder %s48, %s49
      %p60 = scmp.eq.s32.totalorder %s28, 0
      %p61 = por %p59, %p60
      %p62 = scmp.ne.s32.totalorder %s48, %s49
      %p63 = scmp.eq.s32.totalorder %s29, 1
      %p64 = por %p62, %p63
      %p66 = scmp.ne.s32.totalorder %s49, %s65
      %p67 = scmp.eq.s32.totalorder %s29, 0
      %p68 = por %p66, %p67
      %s70 = sadd.s32 %s69, 1
      %p73 = scmp.eq.s32.totalorder %s23, 1
      %p74 = scmp.ne.s32.totalorder %s69, %s71
      %p75 = scmp.eq.s32.totalorder %s23, 0
      %p76 = por %p74, %p75
      %p77 = scmp.ne.s32.totalorder %s69, %s71
      %p78 = scmp.eq.s32.totalorder %s28, 1
      %p79 = por %p77, %p78
      %p80 = scmp.ne.s32.totalorder %s71, %s72
      %p81 = scmp.eq.s32.totalorder %s28, 0
      %p82 = por %p80, %p81
      %p83 = scmp.ne.s32.totalorder %s71, %s72
      %p84 = scmp.eq.s32.totalorder %s29, 1
      %p85 = por %p83, %p84
      %p87 = scmp.ne.s32.totalorder %s72, %s86
      %p88 = scmp.eq.s32.totalorder %s29, 0
      %p89 = por %p87, %p88
      %s91 = sadd.s32 %s90, 1
      %p94 = scmp.eq.s32.totalorder %s23, 1
      %p95 = scmp.ne.s32.totalorder %s90, %s92
      %p96 = scmp.eq.s32.totalorder %s23, 0
      %p97 = por %p95, %p96
      %p98 = scmp.ne.s32.totalorder %s90, %s92
      %p99 = scmp.eq.s32.totalorder %s28, 1
      %p100 = por %p98, %p99
      %p101 = scmp.ne.s32.totalorder %s92, %s93
      %p102 = scmp.eq.s32.totalorder %s28, 0
      %p103 = por %p101, %p102
      %p104 = scmp.ne.s32.totalorder %s92, %s93
      %p105 = scmp.eq.s32.totalorder %s29, 1
      %p106 = por %p104, %p105
      %p108 = scmp.ne.s32.totalorder %s93, %s107
      %p109 = scmp.eq.s32.totalorder %s29, 0
      %p110 = por %p108, %p109
      %s112 = sadd.s32 %s111, 1
      %p115 = scmp.eq.s32.totalorder %s23, 1
      %p116 = scmp.ne.s32.totalorder %s111, %s113
      %p117 = scmp.eq.s32.totalorder %s23, 0
      %p118 = por %p116, %p117
      %p119 = scmp.ne.s32.totalorder %s111, %s113
      %p120 = scmp.eq.s32.totalorder %s28, 1
      %p121 = por %p119, %p120
      %p122 = scmp.ne.s32.totalorder %s113, %s114
      %p123 = scmp.eq.s32.totalorder %s28, 0
      %p124 = por %p122, %p123
      %p125 = scmp.ne.s32.totalorder %s113, %s114
      %p126 = scmp.eq.s32.totalorder %s29, 1
      %p127 = por %p125, %p126
      %p129 = scmp.ne.s32.totalorder %s114, %s128
      %p130 = scmp.eq.s32.totalorder %s29, 0
      %p131 = por %p129, %p130
      %s133 = sadd.s32 %s132, 1
      %p136 = scmp.eq.s32.totalorder %s23, 1
      %p137 = scmp.ne.s32.totalorder %s132, %s134
      %p138 = scmp.eq.s32.totalorder %s23, 0
      %p139 = por %p137, %p138
      %p140 = scmp.ne.s32.totalorder %s132, %s134
      %p141 = scmp.eq.s32.totalorder %s28, 1
      %p142 = por %p140, %p141
      %p143 = scmp.ne.s32.totalorder %s134, %s135
      %p144 = scmp.eq.s32.totalorder %s28, 0
      %p145 = por %p143, %p144
      %p146 = scmp.ne.s32.totalorder %s134, %s135
      %p147 = scmp.eq.s32.totalorder %s29, 1
      %p148 = por %p146, %p147
      %p150 = scmp.ne.s32.totalorder %s135, %s149
      %p151 = scmp.eq.s32.totalorder %s29, 0
      %p152 = por %p150, %p151
      %s154 = sadd.s32 %s153, 1
      %p157 = scmp.eq.s32.totalorder %s23, 1
      %p158 = scmp.ne.s32.totalorder %s153, %s155
      %p159 = scmp.eq.s32.totalorder %s23, 0
      %p160 = por %p158, %p159
      %p161 = scmp.ne.s32.totalorder %s153, %s155
      %p162 = scmp.eq.s32.totalorder %s28, 1
      %p163 = por %p161, %p162
      %p164 = scmp.ne.s32.totalorder %s155, %s156
      %p165 = scmp.eq.s32.totalorder %s28, 0
      %p166 = por %p164, %p165
      %p167 = scmp.ne.s32.totalorder %s155, %s156
      %p168 = scmp.eq.s32.totalorder %s29, 1
      %p169 = por %p167, %p168
      %p171 = scmp.ne.s32.totalorder %s156, %s170
      %p172 = scmp.eq.s32.totalorder %s29, 0
      %p173 = por %p171, %p172
      %s175 = sadd.s32 %s174, 1
      %p178 = scmp.eq.s32.totalorder %s23, 1
      %p179 = scmp.ne.s32.totalorder %s174, %s176
      %p180 = scmp.eq.s32.totalorder %s23, 0
      %p181 = por %p179, %p180
      %p182 = scmp.ne.s32.totalorder %s174, %s176
      %p183 = scmp.eq.s32.totalorder %s28, 1
      %p184 = por %p182, %p183
      %p185 = scmp.ne.s32.totalorder %s176, %s177
      %p186 = scmp.eq.s32.totalorder %s28, 0
      %p187 = por %p185, %p186
      %p188 = scmp.ne.s32.totalorder %s176, %s177
      %p189 = scmp.eq.s32.totalorder %s29, 1
      %p190 = por %p188, %p189
      %p192 = scmp.ne.s32.totalorder %s177, %s191
      %p193 = scmp.eq.s32.totalorder %s29, 0
      %p194 = por %p192, %p193
      %s196 = sadd.s32 %s195, 1
      %p199 = scmp.eq.s32.totalorder %s23, 1
      %p200 = scmp.ne.s32.totalorder %s195, %s197
      %p201 = scmp.eq.s32.totalorder %s23, 0
      %p202 = por %p200, %p201
      %p203 = scmp.ne.s32.totalorder %s195, %s197
      %p204 = scmp.eq.s32.totalorder %s28, 1
      %p205 = por %p203, %p204
      %p206 = scmp.ne.s32.totalorder %s197, %s198
      %p207 = scmp.eq.s32.totalorder %s28, 0
      %p208 = por %p206, %p207
      %p209 = scmp.ne.s32.totalorder %s197, %s198
      %p210 = scmp.eq.s32.totalorder %s29, 1
      %p211 = por %p209, %p210
      %p213 = scmp.ne.s32.totalorder %s198, %s212
      %p214 = scmp.eq.s32.totalorder %s29, 0
      %p215 = por %p213, %p214
      %s217 = sadd.s32 %s216, 1
      %p220 = scmp.eq.s32.totalorder %s23, 1
      %p221 = scmp.ne.s32.totalorder %s216, %s218
      %p222 = scmp.eq.s32.totalorder %s23, 0
      %p223 = por %p221, %p222
      %p224 = scmp.ne.s32.totalorder %s216, %s218
      %p225 = scmp.eq.s32.totalorder %s28, 1
      %p226 = por %p224, %p225
      %p227 = scmp.ne.s32.totalorder %s218, %s219
      %p228 = scmp.eq.s32.totalorder %s28, 0
      %p229 = por %p227, %p228
      %p230 = scmp.ne.s32.totalorder %s218, %s219
      %p231 = scmp.eq.s32.totalorder %s29, 1
      %p232 = por %p230, %p231
      %p234 = scmp.ne.s32.totalorder %s219, %s233
      %p235 = scmp.eq.s32.totalorder %s29, 0
      %p236 = por %p234, %p235
      %s237 = ssub.s32 %s30, %s42
      %s238 = ssub.s32 %s31, %s38
      %s239 = sor.u32 %s237, %s238
      %p240 = scmp.eq.s32.totalorder %s239, 0
      %s242 = sadd.s32 %s241, 1
      %s243 = scalar_select %p240, %s241, %s242
      %p246 = pneg %p240
      %p247 = scmp.eq.s32.totalorder %s23, 1
      %p248 = por %p246, %p247
      %p249 = scmp.ne.s32.totalorder %s241, %s244
      %p250 = scmp.eq.s32.totalorder %s23, 0
      %p251 = por %p249, %p250
      %p252 = scmp.ne.s32.totalorder %s241, %s244
      %p253 = scmp.eq.s32.totalorder %s28, 1
      %p254 = por %p252, %p253
      %p255 = scmp.ne.s32.totalorder %s244, %s245
      %p256 = scmp.eq.s32.totalorder %s28, 0
      %p257 = por %p255, %p256
      %p258 = scmp.ne.s32.totalorder %s244, %s245
      %p259 = scmp.eq.s32.totalorder %s29, 1
      %p260 = por %p258, %p259
      %p262 = scmp.ne.s32.totalorder %s245, %s261
      %p263 = scmp.eq.s32.totalorder %s29, 0
      %p264 = por %p262, %p263
      %p265 = scmp.le.s32.totalorder 1, %s23
      %p266 = scmp.lt.s32.totalorder %s23, 3
      %p267 = pnand %p265, %p266
      %p268 = pneg %p267
      // Predicated region
      $region9: #{tpu_custom_call.1} parent=5 // pred_check
        _
      $region10: #{tpu_custom_call.1} parent=5 // pred_check_branch
        %270 = sbr.rel (%p267) target = $region12
      $region11: #{tpu_custom_call.1} parent=5 // pred_region
        %s271 = ssub.s32 %s23, 1
        // Predicated region
        $region13: #{tpu_custom_call.1} parent=11 // pred_check
          %p272 = pneg %p82
        $region14: #{tpu_custom_call.1} parent=11 // pred_check_branch
          %274 = sbr.rel (%p272) target = $region16
        $region15: #{tpu_custom_call.1} parent=11 // pred_region
          %s276 = ssub.s32 512, 512
          %277 = vsyncadd [#allocation9], %s276
          %s278 = sshll.u32 [#allocation8], 4
          %s279 = int_to_ptr.vmem [resolvable:$true] %s278
          %284 = dma.hbm_to_vmem [thread:$0]  %s1, 512, %s279, [#allocation9], 128, 128, 8
        $region16: #{tpu_custom_call.1} parent=11 // pred_fallthru
          _
        // Predicated region
        $region17: #{tpu_custom_call.1} parent=11 // pred_check
          %p285 = pneg %p103
        $region18: #{tpu_custom_call.1} parent=11 // pred_check_branch
          %287 = sbr.rel (%p285) target = $region20
        $region19: #{tpu_custom_call.1} parent=11 // pred_region
          _
        $region20: #{tpu_custom_call.1} parent=11 // pred_fallthru
          _
        // Predicated region
        $region21: #{tpu_custom_call.1} parent=11 // pred_check
          %p288 = pneg %p124
        $region22: #{tpu_custom_call.1} parent=11 // pred_check_branch
          %290 = sbr.rel (%p288) target = $region24
        $region23: #{tpu_custom_call.1} parent=11 // pred_region
          %s292 = ssub.s32 512, 512
          %293 = vsyncadd [#allocation9], %s292
          %s294 = sshll.u32 [#allocation10], 4
          %s295 = int_to_ptr.vmem [resolvable:$true] %s294
          %300 = dma.hbm_to_vmem [thread:$0]  %s3, 512, %s295, [#allocation9], 128, 128, 8
        $region24: #{tpu_custom_call.1} parent=11 // pred_fallthru
          _
        // Predicated region
        $region25: #{tpu_custom_call.1} parent=11 // pred_check
          %p301 = pneg %p145
        $region26: #{tpu_custom_call.1} parent=11 // pred_check_branch
          %303 = sbr.rel (%p301) target = $region28
        $region27: #{tpu_custom_call.1} parent=11 // pred_region
          _
        $region28: #{tpu_custom_call.1} parent=11 // pred_fallthru
          _
        // Predicated region
        $region29: #{tpu_custom_call.1} parent=11 // pred_check
          %p304 = pneg %p166
        $region30: #{tpu_custom_call.1} parent=11 // pred_check_branch
          %306 = sbr.rel (%p304) target = $region32
        $region31: #{tpu_custom_call.1} parent=11 // pred_region
          %s308 = ssub.s32 512, 512
          %309 = vsyncadd [#allocation12], %s308
          %s310 = sshll.u32 [#allocation11], 4
          %s311 = int_to_ptr.vmem [resolvable:$true] %s310
          %316 = dma.hbm_to_vmem [thread:$0]  %s5, 512, %s311, [#allocation12], 128, 128, 8
        $region32: #{tpu_custom_call.1} parent=11 // pred_fallthru
          _
        // Predicated region
        $region33: #{tpu_custom_call.1} parent=11 // pred_check
          %p317 = pneg %p187
        $region34: #{tpu_custom_call.1} parent=11 // pred_check_branch
          %319 = sbr.rel (%p317) target = $region36
        $region35: #{tpu_custom_call.1} parent=11 // pred_region
          _
        $region36: #{tpu_custom_call.1} parent=11 // pred_fallthru
          _
        // Predicated region
        $region37: #{tpu_custom_call.1} parent=11 // pred_check
          %p320 = pneg %p208
        $region38: #{tpu_custom_call.1} parent=11 // pred_check_branch
          %322 = sbr.rel (%p320) target = $region40
        $region39: #{tpu_custom_call.1} parent=11 // pred_region
          %s324 = ssub.s32 512, 512
          %325 = vsyncadd [#allocation12], %s324
          %s326 = sshll.u32 [#allocation13], 4
          %s327 = int_to_ptr.vmem [resolvable:$true] %s326
          %332 = dma.hbm_to_vmem [thread:$0]  %s7, 512, %s327, [#allocation12], 128, 128, 8
        $region40: #{tpu_custom_call.1} parent=11 // pred_fallthru
          _
        // Predicated region
        $region41: #{tpu_custom_call.1} parent=11 // pred_check
          %p333 = pneg %p229
        $region42: #{tpu_custom_call.1} parent=11 // pred_check_branch
          %335 = sbr.rel (%p333) target = $region44
        $region43: #{tpu_custom_call.1} parent=11 // pred_region
          _
        $region44: #{tpu_custom_call.1} parent=11 // pred_fallthru
          _
      $region12: #{tpu_custom_call.1} parent=5 // pred_fallthru
        _
      %p336 = scmp.lt.s32.totalorder %s23, 2
      // Predicated region
      $region45: #{tpu_custom_call.1} parent=5 // pred_check
        %p337 = pneg %p336
      $region46: #{tpu_custom_call.1} parent=5 // pred_check_branch
        %339 = sbr.rel (%p337) target = $region48
      $region47: #{tpu_custom_call.1} parent=5 // pred_region
        // Predicated region
        $region49: #{tpu_custom_call.1} parent=47 // pred_check
          %p340 = pneg %p55
        $region50: #{tpu_custom_call.1} parent=47 // pred_check_branch
          %342 = sbr.rel (%p340) target = $region52
        $region51: #{tpu_custom_call.1} parent=47 // pred_region
          %s343 = sand.u32 %s45, 1
          %s344 = scalar_lea.sflag [#allocation6], %s343
          %s345 = sand.u32 %s45, 1
          %s346 = smul.addr %s345, 8
          %s347 = scalar_lea.vmem [#allocation5], %s346
          %s349 = ssub.s32 128, 128
          %350 = vsyncadd %s344, %s349
          %s351 = smul.addr %s30, 128
          %s352 = scalar_lea.hbm %s0, %s351
          %s354 = sshll.u32 %s347, 4
          %s355 = int_to_ptr.vmem [resolvable:$true] %s354
          %357 = dma.hbm_to_vmem [thread:$0]  %s352, 128, %s355, %s344
        $region52: #{tpu_custom_call.1} parent=47 // pred_fallthru
          _
      $region48: #{tpu_custom_call.1} parent=5 // pred_fallthru
        _
      %p358 = scmp.le.s32.totalorder 1, %s23
      %p359 = scmp.lt.s32.totalorder %s23, 3
      %p360 = pnand %p358, %p359
      %p361 = pneg %p360
      // Predicated region
      $region53: #{tpu_custom_call.1} parent=5 // pred_check
        _
      $region54: #{tpu_custom_call.1} parent=5 // pred_check_branch
        %363 = sbr.rel (%p360) target = $region56
      $region55: #{tpu_custom_call.1} parent=5 // pred_region
        %s364 = ssub.s32 %s23, 1
        %s365 = sand.u32 %s48, 1
        %s366 = scalar_lea.sflag [#allocation6], %s365
        %s367 = sand.u32 %s48, 1
        %s368 = smul.addr %s367, 8
        %s369 = scalar_lea.vmem [#allocation5], %s368
        // Predicated region
        $region57: #{tpu_custom_call.1} parent=55 // pred_check
          %p370 = pneg %p61
        $region58: #{tpu_custom_call.1} parent=55 // pred_check_branch
          %372 = sbr.rel (%p370) target = $region60
        $region59: #{tpu_custom_call.1} parent=55 // pred_region
          %373 = dma.done %s366, 128
        $region60: #{tpu_custom_call.1} parent=55 // pred_fallthru
          _
        // Predicated region
        $region61: #{tpu_custom_call.1} parent=55 // pred_check
          %p374 = pneg %p82
        $region62: #{tpu_custom_call.1} parent=55 // pred_check_branch
          %376 = sbr.rel (%p374) target = $region64
        $region63: #{tpu_custom_call.1} parent=55 // pred_region
          %377 = dma.done [#allocation9], 512
        $region64: #{tpu_custom_call.1} parent=55 // pred_fallthru
          _
        // Predicated region
        $region65: #{tpu_custom_call.1} parent=55 // pred_check
          %p378 = pneg %p124
        $region66: #{tpu_custom_call.1} parent=55 // pred_check_branch
          %380 = sbr.rel (%p378) target = $region68
        $region67: #{tpu_custom_call.1} parent=55 // pred_region
          %381 = dma.done [#allocation9], 512
        $region68: #{tpu_custom_call.1} parent=55 // pred_fallthru
          _
        // Predicated region
        $region69: #{tpu_custom_call.1} parent=55 // pred_check
          %p382 = pneg %p166
        $region70: #{tpu_custom_call.1} parent=55 // pred_check_branch
          %384 = sbr.rel (%p382) target = $region72
        $region71: #{tpu_custom_call.1} parent=55 // pred_region
          %385 = dma.done [#allocation12], 512
        $region72: #{tpu_custom_call.1} parent=55 // pred_fallthru
          _
        // Predicated region
        $region73: #{tpu_custom_call.1} parent=55 // pred_check
          %p386 = pneg %p208
        $region74: #{tpu_custom_call.1} parent=55 // pred_check_branch
          %388 = sbr.rel (%p386) target = $region76
        $region75: #{tpu_custom_call.1} parent=55 // pred_region
          %389 = dma.done [#allocation12], 512
        $region76: #{tpu_custom_call.1} parent=55 // pred_fallthru
          _
        %s390 = sand.u32 %s48, 1
        %s391 = scalar_lea.sflag [#allocation6], %s390
        %s392 = sand.u32 %s48, 1
        %s393 = smul.addr %s392, 8
        %s394 = scalar_lea.vmem [#allocation5], %s393
        %p395 = pneg %p61
        %p396 = pneg %p58
        %p397 = pneg %p82
        %p398 = pneg %p79
        %p399 = pneg %p103
        %p400 = pneg %p100
        %p401 = pneg %p124
        %p402 = pneg %p121
        %p403 = pneg %p145
        %p404 = pneg %p142
        %p405 = pneg %p166
        %p406 = pneg %p163
        %p407 = pneg %p187
        %p408 = pneg %p184
        %p409 = pneg %p208
        %p410 = pneg %p205
        %p411 = pneg %p229
        %p412 = pneg %p226
        %p413 = pneg %p257
        %p414 = pneg %p254
        %s415 = sand.u32 %s244, 1
        %s416 = scalar_lea.sflag [#allocation7], %s415
        %s417 = sand.u32 %s244, 1
        %s418 = smul.addr %s417, 8
        %s419 = scalar_lea.vmem [#allocation14], %s418
        %s420 = smul.u32 %s33, 8
        %p421 = scmp.eq.s32.totalorder %s33, 0
        // Predicated region
        $region77: #{tpu_custom_call.1} parent=55 // pred_check
          %p422 = pneg %p421
        $region78: #{tpu_custom_call.1} parent=55 // pred_check_branch
          %424 = sbr.rel (%p422) target = $region80
        $region79: #{tpu_custom_call.1} parent=55 // pred_region
          %v425 = vld [vmem:[%s369] sm:$0xff]
          %v426 = vld [vmem:[#allocation10] sm:$0xff]
          %v427 = vld [vmem:[#allocation10 + $0x8] sm:$0xff]
          %v428 = vld [vmem:[#allocation10 + $0x10] sm:$0xff]
          %v429 = vld [vmem:[#allocation10 + $0x18] sm:$0xff]
          %v430 = vld [vmem:[%s4] sm:$0x1]
          %v432 = vlaneseq
          %v433 = vshrl.u32 %v432, 7
          %v434 = vsub.s32 0, %v433
          %v435 = vrot.slane %v430, %v434
          %vm437 = vcmask 261120
          %v439 = vsel %vm437, %v425, 0
          %441 = vmatprep.subr.mxu0 0.0
          %442 = vmatpush1.msra.mxu0 0.0
          %443 = vmatprep.subr.mxu0 0.0
          %444 = vmatpush1.msra.mxu0 0.0
          %445 = vmatprep.subr.mxu0 0.0
          %446 = vmatpush1.msra.mxu0 0.0
          %447 = vmatprep.subr.mxu0 0.0
          %448 = vmatpush1.msra.mxu0 0.0
          %449 = vmatprep.subr.mxu0 0.0
          %450 = vmatpush1.msra.mxu0 0.0
          %451 = vmatprep.subr.mxu0 0.0
          %452 = vmatpush1.msra.mxu0 0.0
          %453 = vmatprep.subr.mxu0 0.0
          %454 = vmatpush1.msra.mxu0 0.0
          %455 = vmatprep.subr.mxu0 0.0
          %456 = vmatpush1.msra.mxu0 0.0
          %457 = vmatprep.subr.mxu0 0.0
          %458 = vmatpush1.msra.mxu0 0.0
          %459 = vmatprep.subr.mxu0 0.0
          %460 = vmatpush1.msra.mxu0 0.0
          %461 = vmatprep.subr.mxu0 0.0
          %462 = vmatpush1.msra.mxu0 0.0
          %463 = vmatprep.subr.mxu0 0.0
          %464 = vmatpush1.msra.mxu0 0.0
          %465 = vmatprep.subr.mxu0 0.0
          %466 = vmatpush1.msra.mxu0 %v429
          %467 = vmatprep.subr.mxu0 0.0
          %468 = vmatpush1.msra.mxu0 %v428
          %469 = vmatprep.subr.mxu0 0.0
          %470 = vmatpush1.msra.mxu0 %v427
          %471 = vmatprep.subr.mxu0 0.0
          %472 = vmatpush1.msra.mxu0 %v426
          %473 = vmatprep.subr.mxu0 0.0
          %474 = vmatpush2.msra.mxu0 0.0
          %475 = vmatprep.subr.mxu0 0.0
          %476 = vmatpush2.msra.mxu0 0.0
          %477 = vmatprep.subr.mxu0 0.0
          %478 = vmatpush2.msra.mxu0 0.0
          %479 = vmatprep.subr.mxu0 0.0
          %480 = vmatpush2.msra.mxu0 0.0
          %481 = vmatprep.subr.mxu0 0.0
          %482 = vmatpush2.msra.mxu0 0.0
          %483 = vmatprep.subr.mxu0 0.0
          %484 = vmatpush2.msra.mxu0 0.0
          %485 = vmatprep.subr.mxu0 0.0
          %486 = vmatpush2.msra.mxu0 0.0
          %487 = vmatprep.subr.mxu0 0.0
          %488 = vmatpush2.msra.mxu0 0.0
          %489 = vmatprep.subr.mxu0 0.0
          %490 = vmatpush2.msra.mxu0 0.0
          %491 = vmatprep.subr.mxu0 0.0
          %492 = vmatpush2.msra.mxu0 0.0
          %493 = vmatprep.subr.mxu0 0.0
          %494 = vmatpush2.msra.mxu0 0.0
          %495 = vmatprep.subr.mxu0 0.0
          %496 = vmatpush2.msra.mxu0 0.0
          %497 = vmatprep.subr.mxu0 0.0
          %498 = vmatpush2.msra.mxu0 0.0
          %499 = vmatprep.subr.mxu0 0.0
          %500 = vmatpush2.msra.mxu0 0.0
          %501 = vmatprep.subr.mxu0 0.0
          %502 = vmatpush2.msra.mxu0 0.0
          %503 = vmatprep.subr.mxu0 0.0
          %504 = vmatpush2.msra.mxu0 0.0
          %505 = vmatprep.mubr.f32.mxu0 0.0
          %506 = vmatmul.mubr.f32.gmra.mxu0 %v439
          %v507 = vpop.f32.mrf.mxu0
          %v508 = vadd.f32 %v435, %v507
          %v509 = vpop.f32.mrf.mxu0
          %510 = vdwg.mxu0
          %v511 = vld [vmem:[#allocation11] sm:$0xff]
          %v512 = vld [vmem:[#allocation11 + $0x8] sm:$0xff]
          %v513 = vld [vmem:[#allocation11 + $0x10] sm:$0xff]
          %v514 = vld [vmem:[#allocation11 + $0x18] sm:$0xff]
          %v515 = vld [vmem:[%s6] sm:$0x1]
          %v517 = vlaneseq
          %v518 = vshrl.u32 %v517, 7
          %v519 = vsub.s32 0, %v518
          %v520 = vrot.slane %v515, %v519
          %522 = vmatprep.subr.mxu0 0.0
          %523 = vmatpush1.msra.mxu0 0.0
          %524 = vmatprep.subr.mxu0 0.0
          %525 = vmatpush1.msra.mxu0 0.0
          %526 = vmatprep.subr.mxu0 0.0
          %527 = vmatpush1.msra.mxu0 0.0
          %528 = vmatprep.subr.mxu0 0.0
          %529 = vmatpush1.msra.mxu0 0.0
          %530 = vmatprep.subr.mxu0 0.0
          %531 = vmatpush1.msra.mxu0 0.0
          %532 = vmatprep.subr.mxu0 0.0
          %533 = vmatpush1.msra.mxu0 0.0
          %534 = vmatprep.subr.mxu0 0.0
          %535 = vmatpush1.msra.mxu0 0.0
          %536 = vmatprep.subr.mxu0 0.0
          %537 = vmatpush1.msra.mxu0 0.0
          %538 = vmatprep.subr.mxu0 0.0
          %539 = vmatpush1.msra.mxu0 0.0
          %540 = vmatprep.subr.mxu0 0.0
          %541 = vmatpush1.msra.mxu0 0.0
          %542 = vmatprep.subr.mxu0 0.0
          %543 = vmatpush1.msra.mxu0 0.0
          %544 = vmatprep.subr.mxu0 0.0
          %545 = vmatpush1.msra.mxu0 0.0
          %546 = vmatprep.subr.mxu0 0.0
          %547 = vmatpush1.msra.mxu0 %v514
          %548 = vmatprep.subr.mxu0 0.0
          %549 = vmatpush1.msra.mxu0 %v513
          %550 = vmatprep.subr.mxu0 0.0
          %551 = vmatpush1.msra.mxu0 %v512
          %552 = vmatprep.subr.mxu0 0.0
          %553 = vmatpush1.msra.mxu0 %v511
          %554 = vmatprep.subr.mxu0 0.0
          %555 = vmatpush2.msra.mxu0 0.0
          %556 = vmatprep.subr.mxu0 0.0
          %557 = vmatpush2.msra.mxu0 0.0
          %558 = vmatprep.subr.mxu0 0.0
          %559 = vmatpush2.msra.mxu0 0.0
          %560 = vmatprep.subr.mxu0 0.0
          %561 = vmatpush2.msra.mxu0 0.0
          %562 = vmatprep.subr.mxu0 0.0
          %563 = vmatpush2.msra.mxu0 0.0
          %564 = vmatprep.subr.mxu0 0.0
          %565 = vmatpush2.msra.mxu0 0.0
          %566 = vmatprep.subr.mxu0 0.0
          %567 = vmatpush2.msra.mxu0 0.0
          %568 = vmatprep.subr.mxu0 0.0
          %569 = vmatpush2.msra.mxu0 0.0
          %570 = vmatprep.subr.mxu0 0.0
          %571 = vmatpush2.msra.mxu0 0.0
          %572 = vmatprep.subr.mxu0 0.0
          %573 = vmatpush2.msra.mxu0 0.0
          %574 = vmatprep.subr.mxu0 0.0
          %575 = vmatpush2.msra.mxu0 0.0
          %576 = vmatprep.subr.mxu0 0.0
          %577 = vmatpush2.msra.mxu0 0.0
          %578 = vmatprep.subr.mxu0 0.0
          %579 = vmatpush2.msra.mxu0 0.0
          %580 = vmatprep.subr.mxu0 0.0
          %581 = vmatpush2.msra.mxu0 0.0
          %582 = vmatprep.subr.mxu0 0.0
          %583 = vmatpush2.msra.mxu0 0.0
          %584 = vmatprep.subr.mxu0 0.0
          %585 = vmatpush2.msra.mxu0 0.0
          %586 = vmatprep.mubr.f32.mxu0 0.0
          %587 = vmatmul.mubr.f32.gmra.mxu0 %v439
          %v588 = vpop.f32.mrf.mxu0
          %v589 = vadd.f32 %v520, %v588
          %v590 = vpop.f32.mrf.mxu0
          %591 = vdwg.mxu0
          %592 = vst.msk [vmem:[#allocation2] sm:$0xff] %vm437, %v508
          %593 = vst.msk [vmem:[#allocation3] sm:$0xff] %vm437, %v589
        $region80: #{tpu_custom_call.1} parent=55 // pred_fallthru
          _
        %s594 = scalar_lea.vmem %s369, %s420 [#allocation5]
        %v595 = vld [vmem:[%s594] sm:$0xff]
        %v596 = vld [vmem:[#allocation8] sm:$0xff]
        %v597 = vld [vmem:[#allocation8 + $0x8] sm:$0xff]
        %v598 = vld [vmem:[#allocation8 + $0x10] sm:$0xff]
        %v599 = vld [vmem:[#allocation8 + $0x18] sm:$0xff]
        %v600 = vld [vmem:[%s2] sm:$0x1]
        %v602 = vlaneseq
        %v603 = vshrl.u32 %v602, 7
        %v604 = vsub.s32 0, %v603
        %v605 = vrot.slane %v600, %v604
        %vm607 = vcmask 261120
        %v609 = vsel %vm607, %v595, 0
        %611 = vmatprep.subr.mxu0 0.0
        %612 = vmatpush1.msra.mxu0 0.0
        %613 = vmatprep.subr.mxu0 0.0
        %614 = vmatpush1.msra.mxu0 0.0
        %615 = vmatprep.subr.mxu0 0.0
        %616 = vmatpush1.msra.mxu0 0.0
        %617 = vmatprep.subr.mxu0 0.0
        %618 = vmatpush1.msra.mxu0 0.0
        %619 = vmatprep.subr.mxu0 0.0
        %620 = vmatpush1.msra.mxu0 0.0
        %621 = vmatprep.subr.mxu0 0.0
        %622 = vmatpush1.msra.mxu0 0.0
        %623 = vmatprep.subr.mxu0 0.0
        %624 = vmatpush1.msra.mxu0 0.0
        %625 = vmatprep.subr.mxu0 0.0
        %626 = vmatpush1.msra.mxu0 0.0
        %627 = vmatprep.subr.mxu0 0.0
        %628 = vmatpush1.msra.mxu0 0.0
        %629 = vmatprep.subr.mxu0 0.0
        %630 = vmatpush1.msra.mxu0 0.0
        %631 = vmatprep.subr.mxu0 0.0
        %632 = vmatpush1.msra.mxu0 0.0
        %633 = vmatprep.subr.mxu0 0.0
        %634 = vmatpush1.msra.mxu0 0.0
        %635 = vmatprep.subr.mxu0 0.0
        %636 = vmatpush1.msra.mxu0 %v599
        %637 = vmatprep.subr.mxu0 0.0
        %638 = vmatpush1.msra.mxu0 %v598
        %639 = vmatprep.subr.mxu0 0.0
        %640 = vmatpush1.msra.mxu0 %v597
        %641 = vmatprep.subr.mxu0 0.0
        %642 = vmatpush1.msra.mxu0 %v596
        %643 = vmatprep.subr.mxu0 0.0
        %644 = vmatpush2.msra.mxu0 0.0
        %645 = vmatprep.subr.mxu0 0.0
        %646 = vmatpush2.msra.mxu0 0.0
        %647 = vmatprep.subr.mxu0 0.0
        %648 = vmatpush2.msra.mxu0 0.0
        %649 = vmatprep.subr.mxu0 0.0
        %650 = vmatpush2.msra.mxu0 0.0
        %651 = vmatprep.subr.mxu0 0.0
        %652 = vmatpush2.msra.mxu0 0.0
        %653 = vmatprep.subr.mxu0 0.0
        %654 = vmatpush2.msra.mxu0 0.0
        %655 = vmatprep.subr.mxu0 0.0
        %656 = vmatpush2.msra.mxu0 0.0
        %657 = vmatprep.subr.mxu0 0.0
        %658 = vmatpush2.msra.mxu0 0.0
        %659 = vmatprep.subr.mxu0 0.0
        %660 = vmatpush2.msra.mxu0 0.0
        %661 = vmatprep.subr.mxu0 0.0
        %662 = vmatpush2.msra.mxu0 0.0
        %663 = vmatprep.subr.mxu0 0.0
        %664 = vmatpush2.msra.mxu0 0.0
        %665 = vmatprep.subr.mxu0 0.0
        %666 = vmatpush2.msra.mxu0 0.0
        %667 = vmatprep.subr.mxu0 0.0
        %668 = vmatpush2.msra.mxu0 0.0
        %669 = vmatprep.subr.mxu0 0.0
        %670 = vmatpush2.msra.mxu0 0.0
        %671 = vmatprep.subr.mxu0 0.0
        %672 = vmatpush2.msra.mxu0 0.0
        %673 = vmatprep.subr.mxu0 0.0
        %674 = vmatpush2.msra.mxu0 0.0
        %675 = vmatprep.mubr.f32.mxu0 0.0
        %676 = vmatmul.mubr.f32.gmra.mxu0 %v609
        %v677 = vpop.f32.mrf.mxu0
        %v678 = vadd.f32 %v605, %v677
        %v679 = vpop.f32.mrf.mxu0
        %680 = vdwg.mxu0
        %v681 = vld [vmem:[#allocation2] sm:$0xff]
        %v682 = vld [vmem:[#allocation3] sm:$0xff]
        %vm683 = vcmask 64512
        %v685 = vsel %vm683, %v678, 0
        %v688 = vsel %vm683, %v681, 0
        %690 = vmatprep.subr.mxu0 0.0
        %691 = vmatpush1.xpose.msra.mxu0 0.0
        %692 = vmatprep.subr.mxu0 0.0
        %693 = vmatpush1.xpose.msra.mxu0 0.0
        %694 = vmatprep.subr.mxu0 0.0
        %695 = vmatpush1.xpose.msra.mxu0 0.0
        %696 = vmatprep.subr.mxu0 0.0
        %697 = vmatpush1.xpose.msra.mxu0 0.0
        %698 = vmatprep.subr.mxu0 0.0
        %699 = vmatpush1.xpose.msra.mxu0 0.0
        %700 = vmatprep.subr.mxu0 0.0
        %701 = vmatpush1.xpose.msra.mxu0 0.0
        %702 = vmatprep.subr.mxu0 0.0
        %703 = vmatpush1.xpose.msra.mxu0 0.0
        %704 = vmatprep.subr.mxu0 0.0
        %705 = vmatpush1.xpose.msra.mxu0 0.0
        %706 = vmatprep.subr.mxu0 0.0
        %707 = vmatpush1.xpose.msra.mxu0 0.0
        %708 = vmatprep.subr.mxu0 0.0
        %709 = vmatpush1.xpose.msra.mxu0 0.0
        %710 = vmatprep.subr.mxu0 0.0
        %711 = vmatpush1.xpose.msra.mxu0 0.0
        %712 = vmatprep.subr.mxu0 0.0
        %713 = vmatpush1.xpose.msra.mxu0 0.0
        %714 = vmatprep.subr.mxu0 0.0
        %715 = vmatpush1.xpose.msra.mxu0 0.0
        %716 = vmatprep.subr.mxu0 0.0
        %717 = vmatpush1.xpose.msra.mxu0 0.0
        %718 = vmatprep.subr.mxu0 0.0
        %719 = vmatpush1.xpose.msra.mxu0 0.0
        %720 = vmatprep.subr.mxu0 0.0
        %721 = vmatpush1.xpose.msra.mxu0 %v688
        %722 = vmatprep.subr.mxu0 0.0
        %723 = vmatpush2.xpose.msra.mxu0 0.0
        %724 = vmatprep.subr.mxu0 0.0
        %725 = vmatpush2.xpose.msra.mxu0 0.0
        %726 = vmatprep.subr.mxu0 0.0
        %727 = vmatpush2.xpose.msra.mxu0 0.0
        %728 = vmatprep.subr.mxu0 0.0
        %729 = vmatpush2.xpose.msra.mxu0 0.0
        %730 = vmatprep.subr.mxu0 0.0
        %731 = vmatpush2.xpose.msra.mxu0 0.0
        %732 = vmatprep.subr.mxu0 0.0
        %733 = vmatpush2.xpose.msra.mxu0 0.0
        %734 = vmatprep.subr.mxu0 0.0
        %735 = vmatpush2.xpose.msra.mxu0 0.0
        %736 = vmatprep.subr.mxu0 0.0
        %737 = vmatpush2.xpose.msra.mxu0 0.0
        %738 = vmatprep.subr.mxu0 0.0
        %739 = vmatpush2.xpose.msra.mxu0 0.0
        %740 = vmatprep.subr.mxu0 0.0
        %741 = vmatpush2.xpose.msra.mxu0 0.0
        %742 = vmatprep.subr.mxu0 0.0
        %743 = vmatpush2.xpose.msra.mxu0 0.0
        %744 = vmatprep.subr.mxu0 0.0
        %745 = vmatpush2.xpose.msra.mxu0 0.0
        %746 = vmatprep.subr.mxu0 0.0
        %747 = vmatpush2.xpose.msra.mxu0 0.0
        %748 = vmatprep.subr.mxu0 0.0
        %749 = vmatpush2.xpose.msra.mxu0 0.0
        %750 = vmatprep.subr.mxu0 0.0
        %751 = vmatpush2.xpose.msra.mxu0 0.0
        %752 = vmatprep.subr.mxu0 0.0
        %753 = vmatpush2.xpose.msra.mxu0 0.0
        %754 = vmatprep.mubr.f32.mxu0 0.0
        %755 = vmatmul.mubr.f32.gmra.mxu0 %v685
        %v756 = vpop.f32.mrf.mxu0
        %v757 = vadd.f32 0.0, %v756
        %v758 = vpop.f32.mrf.mxu0
        %759 = vdwg.mxu0
        %v760 = vmul.f32 %v757, 0.35355338
        %v761 = vsel %vm683, %v760, -inf
        %762 = vmax.xlane.f32.xlu0 %v761
        %v763 = vpop.xlane.xlu0 %762
        %v764 = vsub.f32 %v760, %v763
        %v765 = vmul.f32 %v764, 1.442695
        %v766 = vpow.pop %v765
        %v767 = vsel %vm683, %v766, 0.0
        %768 = vadd.xlane.f32.xlu0 %v767
        %v769 = vpop.xlane.xlu0 %768
        %v770 = vrcp.pop %v769
        %v772 = vsel %vm683, %v766, 0
        %774 = vmatprep.subr.mxu0 0.0
        %775 = vmatpush1.msra.mxu0 0.0
        %776 = vmatprep.subr.mxu0 0.0
        %777 = vmatpush1.msra.mxu0 0.0
        %778 = vmatprep.subr.mxu0 0.0
        %779 = vmatpush1.msra.mxu0 0.0
        %780 = vmatprep.subr.mxu0 0.0
        %781 = vmatpush1.msra.mxu0 0.0
        %782 = vmatprep.subr.mxu0 0.0
        %783 = vmatpush1.msra.mxu0 0.0
        %784 = vmatprep.subr.mxu0 0.0
        %785 = vmatpush1.msra.mxu0 0.0
        %786 = vmatprep.subr.mxu0 0.0
        %787 = vmatpush1.msra.mxu0 0.0
        %788 = vmatprep.subr.mxu0 0.0
        %789 = vmatpush1.msra.mxu0 0.0
        %790 = vmatprep.subr.mxu0 0.0
        %791 = vmatpush1.msra.mxu0 0.0
        %792 = vmatprep.subr.mxu0 0.0
        %793 = vmatpush1.msra.mxu0 0.0
        %794 = vmatprep.subr.mxu0 0.0
        %795 = vmatpush1.msra.mxu0 0.0
        %796 = vmatprep.subr.mxu0 0.0
        %797 = vmatpush1.msra.mxu0 0.0
        %798 = vmatprep.subr.mxu0 0.0
        %799 = vmatpush1.msra.mxu0 0.0
        %800 = vmatprep.subr.mxu0 0.0
        %801 = vmatpush1.msra.mxu0 0.0
        %802 = vmatprep.subr.mxu0 0.0
        %803 = vmatpush1.msra.mxu0 0.0
        %804 = vmatprep.subr.mxu0 0.0
        %805 = vmatpush1.msra.mxu0 %v682
        %806 = vmatprep.subr.mxu0 0.0
        %807 = vmatpush2.msra.mxu0 0.0
        %808 = vmatprep.subr.mxu0 0.0
        %809 = vmatpush2.msra.mxu0 0.0
        %810 = vmatprep.subr.mxu0 0.0
        %811 = vmatpush2.msra.mxu0 0.0
        %812 = vmatprep.subr.mxu0 0.0
        %813 = vmatpush2.msra.mxu0 0.0
        %814 = vmatprep.subr.mxu0 0.0
        %815 = vmatpush2.msra.mxu0 0.0
        %816 = vmatprep.subr.mxu0 0.0
        %817 = vmatpush2.msra.mxu0 0.0
        %818 = vmatprep.subr.mxu0 0.0
        %819 = vmatpush2.msra.mxu0 0.0
        %820 = vmatprep.subr.mxu0 0.0
        %821 = vmatpush2.msra.mxu0 0.0
        %822 = vmatprep.subr.mxu0 0.0
        %823 = vmatpush2.msra.mxu0 0.0
        %824 = vmatprep.subr.mxu0 0.0
        %825 = vmatpush2.msra.mxu0 0.0
        %826 = vmatprep.subr.mxu0 0.0
        %827 = vmatpush2.msra.mxu0 0.0
        %828 = vmatprep.subr.mxu0 0.0
        %829 = vmatpush2.msra.mxu0 0.0
        %830 = vmatprep.subr.mxu0 0.0
        %831 = vmatpush2.msra.mxu0 0.0
        %832 = vmatprep.subr.mxu0 0.0
        %833 = vmatpush2.msra.mxu0 0.0
        %834 = vmatprep.subr.mxu0 0.0
        %835 = vmatpush2.msra.mxu0 0.0
        %836 = vmatprep.subr.mxu0 0.0
        %837 = vmatpush2.msra.mxu0 0.0
        %838 = vmatprep.mubr.f32.mxu0 0.0
        %839 = vmatmul.mubr.f32.gmra.mxu0 %v772
        %v840 = vpop.f32.mrf.mxu0
        %v841 = vadd.f32 0.0, %v840
        %v842 = vpop.f32.mrf.mxu0
        %843 = vdwg.mxu0
        %v844 = vmul.f32 %v841, %v770
        %845 = vst.msk [vmem:[#allocation4] sm:$0xff] %vm683, %v844
        %846 = vrot.lane.b32.xlu0 %v678, 120
        %v847 = vpop.permute.xlu0 %846
        %848 = vrot.lane.b32.xlu0 %v681, 120
        %v849 = vpop.permute.xlu0 %848
        %v850 = vsel %vm683, %v847, 0
        %v852 = vsel %vm683, %v849, 0
        %854 = vmatprep.subr.mxu0 0.0
        %855 = vmatpush1.xpose.msra.mxu0 0.0
        %856 = vmatprep.subr.mxu0 0.0
        %857 = vmatpush1.xpose.msra.mxu0 0.0
        %858 = vmatprep.subr.mxu0 0.0
        %859 = vmatpush1.xpose.msra.mxu0 0.0
        %860 = vmatprep.subr.mxu0 0.0
        %861 = vmatpush1.xpose.msra.mxu0 0.0
        %862 = vmatprep.subr.mxu0 0.0
        %863 = vmatpush1.xpose.msra.mxu0 0.0
        %864 = vmatprep.subr.mxu0 0.0
        %865 = vmatpush1.xpose.msra.mxu0 0.0
        %866 = vmatprep.subr.mxu0 0.0
        %867 = vmatpush1.xpose.msra.mxu0 0.0
        %868 = vmatprep.subr.mxu0 0.0
        %869 = vmatpush1.xpose.msra.mxu0 0.0
        %870 = vmatprep.subr.mxu0 0.0
        %871 = vmatpush1.xpose.msra.mxu0 0.0
        %872 = vmatprep.subr.mxu0 0.0
        %873 = vmatpush1.xpose.msra.mxu0 0.0
        %874 = vmatprep.subr.mxu0 0.0
        %875 = vmatpush1.xpose.msra.mxu0 0.0
        %876 = vmatprep.subr.mxu0 0.0
        %877 = vmatpush1.xpose.msra.mxu0 0.0
        %878 = vmatprep.subr.mxu0 0.0
        %879 = vmatpush1.xpose.msra.mxu0 0.0
        %880 = vmatprep.subr.mxu0 0.0
        %881 = vmatpush1.xpose.msra.mxu0 0.0
        %882 = vmatprep.subr.mxu0 0.0
        %883 = vmatpush1.xpose.msra.mxu0 0.0
        %884 = vmatprep.subr.mxu0 0.0
        %885 = vmatpush1.xpose.msra.mxu0 %v852
        %886 = vmatprep.subr.mxu0 0.0
        %887 = vmatpush2.xpose.msra.mxu0 0.0
        %888 = vmatprep.subr.mxu0 0.0
        %889 = vmatpush2.xpose.msra.mxu0 0.0
        %890 = vmatprep.subr.mxu0 0.0
        %891 = vmatpush2.xpose.msra.mxu0 0.0
        %892 = vmatprep.subr.mxu0 0.0
        %893 = vmatpush2.xpose.msra.mxu0 0.0
        %894 = vmatprep.subr.mxu0 0.0
        %895 = vmatpush2.xpose.msra.mxu0 0.0
        %896 = vmatprep.subr.mxu0 0.0
        %897 = vmatpush2.xpose.msra.mxu0 0.0
        %898 = vmatprep.subr.mxu0 0.0
        %899 = vmatpush2.xpose.msra.mxu0 0.0
        %900 = vmatprep.subr.mxu0 0.0
        %901 = vmatpush2.xpose.msra.mxu0 0.0
        %902 = vmatprep.subr.mxu0 0.0
        %903 = vmatpush2.xpose.msra.mxu0 0.0
        %904 = vmatprep.subr.mxu0 0.0
        %905 = vmatpush2.xpose.msra.mxu0 0.0
        %906 = vmatprep.subr.mxu0 0.0
        %907 = vmatpush2.xpose.msra.mxu0 0.0
        %908 = vmatprep.subr.mxu0 0.0
        %909 = vmatpush2.xpose.msra.mxu0 0.0
        %910 = vmatprep.subr.mxu0 0.0
        %911 = vmatpush2.xpose.msra.mxu0 0.0
        %912 = vmatprep.subr.mxu0 0.0
        %913 = vmatpush2.xpose.msra.mxu0 0.0
        %914 = vmatprep.subr.mxu0 0.0
        %915 = vmatpush2.xpose.msra.mxu0 0.0
        %916 = vmatprep.subr.mxu0 0.0
        %917 = vmatpush2.xpose.msra.mxu0 0.0
        %918 = vmatprep.mubr.f32.mxu0 0.0
        %919 = vmatmul.mubr.f32.gmra.mxu0 %v850
        %v920 = vpop.f32.mrf.mxu0
        %v921 = vadd.f32 0.0, %v920
        %v922 = vpop.f32.mrf.mxu0
        %923 = vdwg.mxu0
        %v924 = vmul.f32 %v921, 0.35355338
        %v925 = vsel %vm683, %v924, -inf
        %926 = vmax.xlane.f32.xlu0 %v925
        %v927 = vpop.xlane.xlu0 %926
        %v928 = vsub.f32 %v924, %v927
        %v929 = vmul.f32 %v928, 1.442695
        %v930 = vpow.pop %v929
        %v931 = vsel %vm683, %v930, 0.0
        %932 = vadd.xlane.f32.xlu0 %v931
        %v933 = vpop.xlane.xlu0 %932
        %v934 = vrcp.pop %v933
        %936 = vrot.lane.b32.xlu0 %v682, 120
        %v937 = vpop.permute.xlu0 %936
        %v940 = vsel %vm683, %v930, 0
        %942 = vmatprep.subr.mxu0 0.0
        %943 = vmatpush1.msra.mxu0 0.0
        %944 = vmatprep.subr.mxu0 0.0
        %945 = vmatpush1.msra.mxu0 0.0
        %946 = vmatprep.subr.mxu0 0.0
        %947 = vmatpush1.msra.mxu0 0.0
        %948 = vmatprep.subr.mxu0 0.0
        %949 = vmatpush1.msra.mxu0 0.0
        %950 = vmatprep.subr.mxu0 0.0
        %951 = vmatpush1.msra.mxu0 0.0
        %952 = vmatprep.subr.mxu0 0.0
        %953 = vmatpush1.msra.mxu0 0.0
        %954 = vmatprep.subr.mxu0 0.0
        %955 = vmatpush1.msra.mxu0 0.0
        %956 = vmatprep.subr.mxu0 0.0
        %957 = vmatpush1.msra.mxu0 0.0
        %958 = vmatprep.subr.mxu0 0.0
        %959 = vmatpush1.msra.mxu0 0.0
        %960 = vmatprep.subr.mxu0 0.0
        %961 = vmatpush1.msra.mxu0 0.0
        %962 = vmatprep.subr.mxu0 0.0
        %963 = vmatpush1.msra.mxu0 0.0
        %964 = vmatprep.subr.mxu0 0.0
        %965 = vmatpush1.msra.mxu0 0.0
        %966 = vmatprep.subr.mxu0 0.0
        %967 = vmatpush1.msra.mxu0 0.0
        %968 = vmatprep.subr.mxu0 0.0
        %969 = vmatpush1.msra.mxu0 0.0
        %970 = vmatprep.subr.mxu0 0.0
        %971 = vmatpush1.msra.mxu0 0.0
        %972 = vmatprep.subr.mxu0 0.0
        %973 = vmatpush1.msra.mxu0 %v937
        %974 = vmatprep.subr.mxu0 0.0
        %975 = vmatpush2.msra.mxu0 0.0
        %976 = vmatprep.subr.mxu0 0.0
        %977 = vmatpush2.msra.mxu0 0.0
        %978 = vmatprep.subr.mxu0 0.0
        %979 = vmatpush2.msra.mxu0 0.0
        %980 = vmatprep.subr.mxu0 0.0
        %981 = vmatpush2.msra.mxu0 0.0
        %982 = vmatprep.subr.mxu0 0.0
        %983 = vmatpush2.msra.mxu0 0.0
        %984 = vmatprep.subr.mxu0 0.0
        %985 = vmatpush2.msra.mxu0 0.0
        %986 = vmatprep.subr.mxu0 0.0
        %987 = vmatpush2.msra.mxu0 0.0
        %988 = vmatprep.subr.mxu0 0.0
        %989 = vmatpush2.msra.mxu0 0.0
        %990 = vmatprep.subr.mxu0 0.0
        %991 = vmatpush2.msra.mxu0 0.0
        %992 = vmatprep.subr.mxu0 0.0
        %993 = vmatpush2.msra.mxu0 0.0
        %994 = vmatprep.subr.mxu0 0.0
        %995 = vmatpush2.msra.mxu0 0.0
        %996 = vmatprep.subr.mxu0 0.0
        %997 = vmatpush2.msra.mxu0 0.0
        %998 = vmatprep.subr.mxu0 0.0
        %999 = vmatpush2.msra.mxu0 0.0
        %1000 = vmatprep.subr.mxu0 0.0
        %1001 = vmatpush2.msra.mxu0 0.0
        %1002 = vmatprep.subr.mxu0 0.0
        %1003 = vmatpush2.msra.mxu0 0.0
        %1004 = vmatprep.subr.mxu0 0.0
        %1005 = vmatpush2.msra.mxu0 0.0
        %1006 = vmatprep.mubr.f32.mxu0 0.0
        %1007 = vmatmul.mubr.f32.gmra.mxu0 %v940
        %v1008 = vpop.f32.mrf.mxu0
        %v1009 = vadd.f32 0.0, %v1008
        %v1010 = vpop.f32.mrf.mxu0
        %1011 = vdwg.mxu0
        %v1012 = vmul.f32 %v1009, %v934
        %1014 = vrot.lane.b32.xlu0 %v1012, 8
        %v1015 = vpop.permute.xlu0 %1014
        %vm1017 = vcmask 130112
        %1018 = vst.msk [vmem:[#allocation4] sm:$0xff] %vm1017, %v1015
        %1019 = vrot.lane.b32.xlu0 %v678, 112
        %v1020 = vpop.permute.xlu0 %1019
        %1021 = vrot.lane.b32.xlu0 %v681, 112
        %v1022 = vpop.permute.xlu0 %1021
        %v1023 = vsel %vm683, %v1020, 0
        %v1025 = vsel %vm683, %v1022, 0
        %1027 = vmatprep.subr.mxu0 0.0
        %1028 = vmatpush1.xpose.msra.mxu0 0.0
        %1029 = vmatprep.subr.mxu0 0.0
        %1030 = vmatpush1.xpose.msra.mxu0 0.0
        %1031 = vmatprep.subr.mxu0 0.0
        %1032 = vmatpush1.xpose.msra.mxu0 0.0
        %1033 = vmatprep.subr.mxu0 0.0
        %1034 = vmatpush1.xpose.msra.mxu0 0.0
        %1035 = vmatprep.subr.mxu0 0.0
        %1036 = vmatpush1.xpose.msra.mxu0 0.0
        %1037 = vmatprep.subr.mxu0 0.0
        %1038 = vmatpush1.xpose.msra.mxu0 0.0
        %1039 = vmatprep.subr.mxu0 0.0
        %1040 = vmatpush1.xpose.msra.mxu0 0.0
        %1041 = vmatprep.subr.mxu0 0.0
        %1042 = vmatpush1.xpose.msra.mxu0 0.0
        %1043 = vmatprep.subr.mxu0 0.0
        %1044 = vmatpush1.xpose.msra.mxu0 0.0
        %1045 = vmatprep.subr.mxu0 0.0
        %1046 = vmatpush1.xpose.msra.mxu0 0.0
        %1047 = vmatprep.subr.mxu0 0.0
        %1048 = vmatpush1.xpose.msra.mxu0 0.0
        %1049 = vmatprep.subr.mxu0 0.0
        %1050 = vmatpush1.xpose.msra.mxu0 0.0
        %1051 = vmatprep.subr.mxu0 0.0
        %1052 = vmatpush1.xpose.msra.mxu0 0.0
        %1053 = vmatprep.subr.mxu0 0.0
        %1054 = vmatpush1.xpose.msra.mxu0 0.0
        %1055 = vmatprep.subr.mxu0 0.0
        %1056 = vmatpush1.xpose.msra.mxu0 0.0
        %1057 = vmatprep.subr.mxu0 0.0
        %1058 = vmatpush1.xpose.msra.mxu0 %v1025
        %1059 = vmatprep.subr.mxu0 0.0
        %1060 = vmatpush2.xpose.msra.mxu0 0.0
        %1061 = vmatprep.subr.mxu0 0.0
        %1062 = vmatpush2.xpose.msra.mxu0 0.0
        %1063 = vmatprep.subr.mxu0 0.0
        %1064 = vmatpush2.xpose.msra.mxu0 0.0
        %1065 = vmatprep.subr.mxu0 0.0
        %1066 = vmatpush2.xpose.msra.mxu0 0.0
        %1067 = vmatprep.subr.mxu0 0.0
        %1068 = vmatpush2.xpose.msra.mxu0 0.0
        %1069 = vmatprep.subr.mxu0 0.0
        %1070 = vmatpush2.xpose.msra.mxu0 0.0
        %1071 = vmatprep.subr.mxu0 0.0
        %1072 = vmatpush2.xpose.msra.mxu0 0.0
        %1073 = vmatprep.subr.mxu0 0.0
        %1074 = vmatpush2.xpose.msra.mxu0 0.0
        %1075 = vmatprep.subr.mxu0 0.0
        %1076 = vmatpush2.xpose.msra.mxu0 0.0
        %1077 = vmatprep.subr.mxu0 0.0
        %1078 = vmatpush2.xpose.msra.mxu0 0.0
        %1079 = vmatprep.subr.mxu0 0.0
        %1080 = vmatpush2.xpose.msra.mxu0 0.0
        %1081 = vmatprep.subr.mxu0 0.0
        %1082 = vmatpush2.xpose.msra.mxu0 0.0
        %1083 = vmatprep.subr.mxu0 0.0
        %1084 = vmatpush2.xpose.msra.mxu0 0.0
        %1085 = vmatprep.subr.mxu0 0.0
        %1086 = vmatpush2.xpose.msra.mxu0 0.0
        %1087 = vmatprep.subr.mxu0 0.0
        %1088 = vmatpush2.xpose.msra.mxu0 0.0
        %1089 = vmatprep.subr.mxu0 0.0
        %1090 = vmatpush2.xpose.msra.mxu0 0.0
        %1091 = vmatprep.mubr.f32.mxu0 0.0
        %1092 = vmatmul.mubr.f32.gmra.mxu0 %v1023
        %v1093 = vpop.f32.mrf.mxu0
        %v1094 = vadd.f32 0.0, %v1093
        %v1095 = vpop.f32.mrf.mxu0
        %1096 = vdwg.mxu0
        %v1097 = vmul.f32 %v1094, 0.35355338
        %v1098 = vsel %vm683, %v1097, -inf
        %1099 = vmax.xlane.f32.xlu0 %v1098
        %v1100 = vpop.xlane.xlu0 %1099
        %v1101 = vsub.f32 %v1097, %v1100
        %v1102 = vmul.f32 %v1101, 1.442695
        %v1103 = vpow.pop %v1102
        %v1104 = vsel %vm683, %v1103, 0.0
        %1105 = vadd.xlane.f32.xlu0 %v1104
        %v1106 = vpop.xlane.xlu0 %1105
        %v1107 = vrcp.pop %v1106
        %1108 = vrot.lane.b32.xlu0 %v682, 112
        %v1109 = vpop.permute.xlu0 %1108
        %v1112 = vsel %vm683, %v1103, 0
        %1114 = vmatprep.subr.mxu0 0.0
        %1115 = vmatpush1.msra.mxu0 0.0
        %1116 = vmatprep.subr.mxu0 0.0
        %1117 = vmatpush1.msra.mxu0 0.0
        %1118 = vmatprep.subr.mxu0 0.0
        %1119 = vmatpush1.msra.mxu0 0.0
        %1120 = vmatprep.subr.mxu0 0.0
        %1121 = vmatpush1.msra.mxu0 0.0
        %1122 = vmatprep.subr.mxu0 0.0
        %1123 = vmatpush1.msra.mxu0 0.0
        %1124 = vmatprep.subr.mxu0 0.0
        %1125 = vmatpush1.msra.mxu0 0.0
        %1126 = vmatprep.subr.mxu0 0.0
        %1127 = vmatpush1.msra.mxu0 0.0
        %1128 = vmatprep.subr.mxu0 0.0
        %1129 = vmatpush1.msra.mxu0 0.0
        %1130 = vmatprep.subr.mxu0 0.0
        %1131 = vmatpush1.msra.mxu0 0.0
        %1132 = vmatprep.subr.mxu0 0.0
        %1133 = vmatpush1.msra.mxu0 0.0
        %1134 = vmatprep.subr.mxu0 0.0
        %1135 = vmatpush1.msra.mxu0 0.0
        %1136 = vmatprep.subr.mxu0 0.0
        %1137 = vmatpush1.msra.mxu0 0.0
        %1138 = vmatprep.subr.mxu0 0.0
        %1139 = vmatpush1.msra.mxu0 0.0
        %1140 = vmatprep.subr.mxu0 0.0
        %1141 = vmatpush1.msra.mxu0 0.0
        %1142 = vmatprep.subr.mxu0 0.0
        %1143 = vmatpush1.msra.mxu0 0.0
        %1144 = vmatprep.subr.mxu0 0.0
        %1145 = vmatpush1.msra.mxu0 %v1109
        %1146 = vmatprep.subr.mxu0 0.0
        %1147 = vmatpush2.msra.mxu0 0.0
        %1148 = vmatprep.subr.mxu0 0.0
        %1149 = vmatpush2.msra.mxu0 0.0
        %1150 = vmatprep.subr.mxu0 0.0
        %1151 = vmatpush2.msra.mxu0 0.0
        %1152 = vmatprep.subr.mxu0 0.0
        %1153 = vmatpush2.msra.mxu0 0.0
        %1154 = vmatprep.subr.mxu0 0.0
        %1155 = vmatpush2.msra.mxu0 0.0
        %1156 = vmatprep.subr.mxu0 0.0
        %1157 = vmatpush2.msra.mxu0 0.0
        %1158 = vmatprep.subr.mxu0 0.0
        %1159 = vmatpush2.msra.mxu0 0.0
        %1160 = vmatprep.subr.mxu0 0.0
        %1161 = vmatpush2.msra.mxu0 0.0
        %1162 = vmatprep.subr.mxu0 0.0
        %1163 = vmatpush2.msra.mxu0 0.0
        %1164 = vmatprep.subr.mxu0 0.0
        %1165 = vmatpush2.msra.mxu0 0.0
        %1166 = vmatprep.subr.mxu0 0.0
        %1167 = vmatpush2.msra.mxu0 0.0
        %1168 = vmatprep.subr.mxu0 0.0
        %1169 = vmatpush2.msra.mxu0 0.0
        %1170 = vmatprep.subr.mxu0 0.0
        %1171 = vmatpush2.msra.mxu0 0.0
        %1172 = vmatprep.subr.mxu0 0.0
        %1173 = vmatpush2.msra.mxu0 0.0
        %1174 = vmatprep.subr.mxu0 0.0
        %1175 = vmatpush2.msra.mxu0 0.0
        %1176 = vmatprep.subr.mxu0 0.0
        %1177 = vmatpush2.msra.mxu0 0.0
        %1178 = vmatprep.mubr.f32.mxu0 0.0
        %1179 = vmatmul.mubr.f32.gmra.mxu0 %v1112
        %v1180 = vpop.f32.mrf.mxu0
        %v1181 = vadd.f32 0.0, %v1180
        %v1182 = vpop.f32.mrf.mxu0
        %1183 = vdwg.mxu0
        %v1184 = vmul.f32 %v1181, %v1107
        %1186 = vrot.lane.b32.xlu0 %v1184, 16
        %v1187 = vpop.permute.xlu0 %1186
        %vm1189 = vcmask 195712
        %1190 = vst.msk [vmem:[#allocation4] sm:$0xff] %vm1189, %v1187
        %1191 = vrot.lane.b32.xlu0 %v678, 104
        %v1192 = vpop.permute.xlu0 %1191
        %1193 = vrot.lane.b32.xlu0 %v681, 104
        %v1194 = vpop.permute.xlu0 %1193
        %v1195 = vsel %vm683, %v1192, 0
        %v1197 = vsel %vm683, %v1194, 0
        %1199 = vmatprep.subr.mxu0 0.0
        %1200 = vmatpush1.xpose.msra.mxu0 0.0
        %1201 = vmatprep.subr.mxu0 0.0
        %1202 = vmatpush1.xpose.msra.mxu0 0.0
        %1203 = vmatprep.subr.mxu0 0.0
        %1204 = vmatpush1.xpose.msra.mxu0 0.0
        %1205 = vmatprep.subr.mxu0 0.0
        %1206 = vmatpush1.xpose.msra.mxu0 0.0
        %1207 = vmatprep.subr.mxu0 0.0
        %1208 = vmatpush1.xpose.msra.mxu0 0.0
        %1209 = vmatprep.subr.mxu0 0.0
        %1210 = vmatpush1.xpose.msra.mxu0 0.0
        %1211 = vmatprep.subr.mxu0 0.0
        %1212 = vmatpush1.xpose.msra.mxu0 0.0
        %1213 = vmatprep.subr.mxu0 0.0
        %1214 = vmatpush1.xpose.msra.mxu0 0.0
        %1215 = vmatprep.subr.mxu0 0.0
        %1216 = vmatpush1.xpose.msra.mxu0 0.0
        %1217 = vmatprep.subr.mxu0 0.0
        %1218 = vmatpush1.xpose.msra.mxu0 0.0
        %1219 = vmatprep.subr.mxu0 0.0
        %1220 = vmatpush1.xpose.msra.mxu0 0.0
        %1221 = vmatprep.subr.mxu0 0.0
        %1222 = vmatpush1.xpose.msra.mxu0 0.0
        %1223 = vmatprep.subr.mxu0 0.0
        %1224 = vmatpush1.xpose.msra.mxu0 0.0
        %1225 = vmatprep.subr.mxu0 0.0
        %1226 = vmatpush1.xpose.msra.mxu0 0.0
        %1227 = vmatprep.subr.mxu0 0.0
        %1228 = vmatpush1.xpose.msra.mxu0 0.0
        %1229 = vmatprep.subr.mxu0 0.0
        %1230 = vmatpush1.xpose.msra.mxu0 %v1197
        %1231 = vmatprep.subr.mxu0 0.0
        %1232 = vmatpush2.xpose.msra.mxu0 0.0
        %1233 = vmatprep.subr.mxu0 0.0
        %1234 = vmatpush2.xpose.msra.mxu0 0.0
        %1235 = vmatprep.subr.mxu0 0.0
        %1236 = vmatpush2.xpose.msra.mxu0 0.0
        %1237 = vmatprep.subr.mxu0 0.0
        %1238 = vmatpush2.xpose.msra.mxu0 0.0
        %1239 = vmatprep.subr.mxu0 0.0
        %1240 = vmatpush2.xpose.msra.mxu0 0.0
        %1241 = vmatprep.subr.mxu0 0.0
        %1242 = vmatpush2.xpose.msra.mxu0 0.0
        %1243 = vmatprep.subr.mxu0 0.0
        %1244 = vmatpush2.xpose.msra.mxu0 0.0
        %1245 = vmatprep.subr.mxu0 0.0
        %1246 = vmatpush2.xpose.msra.mxu0 0.0
        %1247 = vmatprep.subr.mxu0 0.0
        %1248 = vmatpush2.xpose.msra.mxu0 0.0
        %1249 = vmatprep.subr.mxu0 0.0
        %1250 = vmatpush2.xpose.msra.mxu0 0.0
        %1251 = vmatprep.subr.mxu0 0.0
        %1252 = vmatpush2.xpose.msra.mxu0 0.0
        %1253 = vmatprep.subr.mxu0 0.0
        %1254 = vmatpush2.xpose.msra.mxu0 0.0
        %1255 = vmatprep.subr.mxu0 0.0
        %1256 = vmatpush2.xpose.msra.mxu0 0.0
        %1257 = vmatprep.subr.mxu0 0.0
        %1258 = vmatpush2.xpose.msra.mxu0 0.0
        %1259 = vmatprep.subr.mxu0 0.0
        %1260 = vmatpush2.xpose.msra.mxu0 0.0
        %1261 = vmatprep.subr.mxu0 0.0
        %1262 = vmatpush2.xpose.msra.mxu0 0.0
        %1263 = vmatprep.mubr.f32.mxu0 0.0
        %1264 = vmatmul.mubr.f32.gmra.mxu0 %v1195
        %v1265 = vpop.f32.mrf.mxu0
        %v1266 = vadd.f32 0.0, %v1265
        %v1267 = vpop.f32.mrf.mxu0
        %1268 = vdwg.mxu0
        %v1269 = vmul.f32 %v1266, 0.35355338
        %v1270 = vsel %vm683, %v1269, -inf
        %1271 = vmax.xlane.f32.xlu0 %v1270
        %v1272 = vpop.xlane.xlu0 %1271
        %v1273 = vsub.f32 %v1269, %v1272
        %v1274 = vmul.f32 %v1273, 1.442695
        %v1275 = vpow.pop %v1274
        %v1276 = vsel %vm683, %v1275, 0.0
        %1277 = vadd.xlane.f32.xlu0 %v1276
        %v1278 = vpop.xlane.xlu0 %1277
        %v1279 = vrcp.pop %v1278
        %1280 = vrot.lane.b32.xlu0 %v682, 104
        %v1281 = vpop.permute.xlu0 %1280
        %v1284 = vsel %vm683, %v1275, 0
        %1286 = vmatprep.subr.mxu0 0.0
        %1287 = vmatpush1.msra.mxu0 0.0
        %1288 = vmatprep.subr.mxu0 0.0
        %1289 = vmatpush1.msra.mxu0 0.0
        %1290 = vmatprep.subr.mxu0 0.0
        %1291 = vmatpush1.msra.mxu0 0.0
        %1292 = vmatprep.subr.mxu0 0.0
        %1293 = vmatpush1.msra.mxu0 0.0
        %1294 = vmatprep.subr.mxu0 0.0
        %1295 = vmatpush1.msra.mxu0 0.0
        %1296 = vmatprep.subr.mxu0 0.0
        %1297 = vmatpush1.msra.mxu0 0.0
        %1298 = vmatprep.subr.mxu0 0.0
        %1299 = vmatpush1.msra.mxu0 0.0
        %1300 = vmatprep.subr.mxu0 0.0
        %1301 = vmatpush1.msra.mxu0 0.0
        %1302 = vmatprep.subr.mxu0 0.0
        %1303 = vmatpush1.msra.mxu0 0.0
        %1304 = vmatprep.subr.mxu0 0.0
        %1305 = vmatpush1.msra.mxu0 0.0
        %1306 = vmatprep.subr.mxu0 0.0
        %1307 = vmatpush1.msra.mxu0 0.0
        %1308 = vmatprep.subr.mxu0 0.0
        %1309 = vmatpush1.msra.mxu0 0.0
        %1310 = vmatprep.subr.mxu0 0.0
        %1311 = vmatpush1.msra.mxu0 0.0
        %1312 = vmatprep.subr.mxu0 0.0
        %1313 = vmatpush1.msra.mxu0 0.0
        %1314 = vmatprep.subr.mxu0 0.0
        %1315 = vmatpush1.msra.mxu0 0.0
        %1316 = vmatprep.subr.mxu0 0.0
        %1317 = vmatpush1.msra.mxu0 %v1281
        %1318 = vmatprep.subr.mxu0 0.0
        %1319 = vmatpush2.msra.mxu0 0.0
        %1320 = vmatprep.subr.mxu0 0.0
        %1321 = vmatpush2.msra.mxu0 0.0
        %1322 = vmatprep.subr.mxu0 0.0
        %1323 = vmatpush2.msra.mxu0 0.0
        %1324 = vmatprep.subr.mxu0 0.0
        %1325 = vmatpush2.msra.mxu0 0.0
        %1326 = vmatprep.subr.mxu0 0.0
        %1327 = vmatpush2.msra.mxu0 0.0
        %1328 = vmatprep.subr.mxu0 0.0
        %1329 = vmatpush2.msra.mxu0 0.0
        %1330 = vmatprep.subr.mxu0 0.0
        %1331 = vmatpush2.msra.mxu0 0.0
        %1332 = vmatprep.subr.mxu0 0.0
        %1333 = vmatpush2.msra.mxu0 0.0
        %1334 = vmatprep.subr.mxu0 0.0
        %1335 = vmatpush2.msra.mxu0 0.0
        %1336 = vmatprep.subr.mxu0 0.0
        %1337 = vmatpush2.msra.mxu0 0.0
        %1338 = vmatprep.subr.mxu0 0.0
        %1339 = vmatpush2.msra.mxu0 0.0
        %1340 = vmatprep.subr.mxu0 0.0
        %1341 = vmatpush2.msra.mxu0 0.0
        %1342 = vmatprep.subr.mxu0 0.0
        %1343 = vmatpush2.msra.mxu0 0.0
        %1344 = vmatprep.subr.mxu0 0.0
        %1345 = vmatpush2.msra.mxu0 0.0
        %1346 = vmatprep.subr.mxu0 0.0
        %1347 = vmatpush2.msra.mxu0 0.0
        %1348 = vmatprep.subr.mxu0 0.0
        %1349 = vmatpush2.msra.mxu0 0.0
        %1350 = vmatprep.mubr.f32.mxu0 0.0
        %1351 = vmatmul.mubr.f32.gmra.mxu0 %v1284
        %v1352 = vpop.f32.mrf.mxu0
        %v1353 = vadd.f32 0.0, %v1352
        %v1354 = vpop.f32.mrf.mxu0
        %1355 = vdwg.mxu0
        %v1356 = vmul.f32 %v1353, %v1279
        %1358 = vrot.lane.b32.xlu0 %v1356, 24
        %v1359 = vpop.permute.xlu0 %1358
        %vm1361 = vcmask 261312
        %1362 = vst.msk [vmem:[#allocation4] sm:$0xff] %vm1361, %v1359
        %v1363 = vld [vmem:[#allocation4] sm:$0xff]
        %v1364 = vld [vmem:[#allocation13] sm:$0xff]
        %v1365 = vld [vmem:[#allocation13 + $0x8] sm:$0xff]
        %v1366 = vld [vmem:[#allocation13 + $0x10] sm:$0xff]
        %v1367 = vld [vmem:[#allocation13 + $0x18] sm:$0xff]
        %v1368 = vld [vmem:[%s8] sm:$0x1]
        %v1370 = vlaneseq
        %v1371 = vshrl.u32 %v1370, 7
        %v1372 = vsub.s32 0, %v1371
        %v1373 = vrot.slane %v1368, %v1372
        %v1376 = vsel %vm607, %v1363, 0
        %1378 = vmatprep.subr.mxu0 0.0
        %1379 = vmatpush1.msra.mxu0 0.0
        %1380 = vmatprep.subr.mxu0 0.0
        %1381 = vmatpush1.msra.mxu0 0.0
        %1382 = vmatprep.subr.mxu0 0.0
        %1383 = vmatpush1.msra.mxu0 0.0
        %1384 = vmatprep.subr.mxu0 0.0
        %1385 = vmatpush1.msra.mxu0 0.0
        %1386 = vmatprep.subr.mxu0 0.0
        %1387 = vmatpush1.msra.mxu0 0.0
        %1388 = vmatprep.subr.mxu0 0.0
        %1389 = vmatpush1.msra.mxu0 0.0
        %1390 = vmatprep.subr.mxu0 0.0
        %1391 = vmatpush1.msra.mxu0 0.0
        %1392 = vmatprep.subr.mxu0 0.0
        %1393 = vmatpush1.msra.mxu0 0.0
        %1394 = vmatprep.subr.mxu0 0.0
        %1395 = vmatpush1.msra.mxu0 0.0
        %1396 = vmatprep.subr.mxu0 0.0
        %1397 = vmatpush1.msra.mxu0 0.0
        %1398 = vmatprep.subr.mxu0 0.0
        %1399 = vmatpush1.msra.mxu0 0.0
        %1400 = vmatprep.subr.mxu0 0.0
        %1401 = vmatpush1.msra.mxu0 0.0
        %1402 = vmatprep.subr.mxu0 0.0
        %1403 = vmatpush1.msra.mxu0 %v1367
        %1404 = vmatprep.subr.mxu0 0.0
        %1405 = vmatpush1.msra.mxu0 %v1366
        %1406 = vmatprep.subr.mxu0 0.0
        %1407 = vmatpush1.msra.mxu0 %v1365
        %1408 = vmatprep.subr.mxu0 0.0
        %1409 = vmatpush1.msra.mxu0 %v1364
        %1410 = vmatprep.subr.mxu0 0.0
        %1411 = vmatpush2.msra.mxu0 0.0
        %1412 = vmatprep.subr.mxu0 0.0
        %1413 = vmatpush2.msra.mxu0 0.0
        %1414 = vmatprep.subr.mxu0 0.0
        %1415 = vmatpush2.msra.mxu0 0.0
        %1416 = vmatprep.subr.mxu0 0.0
        %1417 = vmatpush2.msra.mxu0 0.0
        %1418 = vmatprep.subr.mxu0 0.0
        %1419 = vmatpush2.msra.mxu0 0.0
        %1420 = vmatprep.subr.mxu0 0.0
        %1421 = vmatpush2.msra.mxu0 0.0
        %1422 = vmatprep.subr.mxu0 0.0
        %1423 = vmatpush2.msra.mxu0 0.0
        %1424 = vmatprep.subr.mxu0 0.0
        %1425 = vmatpush2.msra.mxu0 0.0
        %1426 = vmatprep.subr.mxu0 0.0
        %1427 = vmatpush2.msra.mxu0 0.0
        %1428 = vmatprep.subr.mxu0 0.0
        %1429 = vmatpush2.msra.mxu0 0.0
        %1430 = vmatprep.subr.mxu0 0.0
        %1431 = vmatpush2.msra.mxu0 0.0
        %1432 = vmatprep.subr.mxu0 0.0
        %1433 = vmatpush2.msra.mxu0 0.0
        %1434 = vmatprep.subr.mxu0 0.0
        %1435 = vmatpush2.msra.mxu0 0.0
        %1436 = vmatprep.subr.mxu0 0.0
        %1437 = vmatpush2.msra.mxu0 0.0
        %1438 = vmatprep.subr.mxu0 0.0
        %1439 = vmatpush2.msra.mxu0 0.0
        %1440 = vmatprep.subr.mxu0 0.0
        %1441 = vmatpush2.msra.mxu0 0.0
        %1442 = vmatprep.mubr.f32.mxu0 0.0
        %1443 = vmatmul.mubr.f32.gmra.mxu0 %v1376
        %v1444 = vpop.f32.mrf.mxu0
        %v1445 = vadd.f32 %v1373, %v1444
        %v1446 = vpop.f32.mrf.mxu0
        %1447 = vdwg.mxu0
        %1448 = vst.msk [vmem:[%s419] sm:$0xff] %vm607, %v1445
        %s1449 = sand.u32 %s244, 1
        %s1450 = scalar_lea.sflag [#allocation7], %s1449
        %s1451 = sand.u32 %s244, 1
        %s1452 = smul.addr %s1451, 8
        %s1453 = scalar_lea.vmem [#allocation14], %s1452
        // Predicated region
        $region81: #{tpu_custom_call.1} parent=55 // pred_check
          %p1454 = pneg %p254
        $region82: #{tpu_custom_call.1} parent=55 // pred_check_branch
          %1456 = sbr.rel (%p1454) target = $region84
        $region83: #{tpu_custom_call.1} parent=55 // pred_region
          %s1458 = ssub.s32 128, 128
          %1459 = vsyncadd %s1450, %s1458
          %s1460 = sadd.s32 %s33, %s32
          %s1461 = smul.addr %s1460, 128
          %s1462 = scalar_lea.hbm %s9, %s1461
          %s1464 = sshll.u32 %s1453, 4
          %s1465 = int_to_ptr.vmem [resolvable:$true] %s1464
          %1467 = dma.vmem_to_hbm [thread:$0]  %s1465, 128, %s1462, %s1450
        $region84: #{tpu_custom_call.1} parent=55 // pred_fallthru
          _
      $region56: #{tpu_custom_call.1} parent=5 // pred_fallthru
        _
      %p1468 = scmp.le.s32.totalorder 2, %s23
      // Predicated region
      $region85: #{tpu_custom_call.1} parent=5 // pred_check
        %p1469 = pneg %p1468
      $region86: #{tpu_custom_call.1} parent=5 // pred_check_branch
        %1471 = sbr.rel (%p1469) target = $region88
      $region87: #{tpu_custom_call.1} parent=5 // pred_region
        %s1472 = ssub.s32 %s23, 2
        // Predicated region
        $region89: #{tpu_custom_call.1} parent=87 // pred_check
          %p1473 = pneg %p260
        $region90: #{tpu_custom_call.1} parent=87 // pred_check_branch
          %1475 = sbr.rel (%p1473) target = $region92
        $region91: #{tpu_custom_call.1} parent=87 // pred_region
          %s1476 = sand.u32 %s245, 1
          %s1477 = scalar_lea.sflag [#allocation7], %s1476
          %s1478 = sand.u32 %s245, 1
          %s1479 = smul.addr %s1478, 8
          %s1480 = scalar_lea.vmem [#allocation14], %s1479
          %1481 = dma.done %s1477, 128
        $region92: #{tpu_custom_call.1} parent=87 // pred_fallthru
          _
      $region88: #{tpu_custom_call.1} parent=5 // pred_fallthru
        _
    $region6: #{tpu_custom_call.1} parent=1 // loop_footer
      %s27 = sadd.s32 1, %s23
    $region7: #{tpu_custom_call.1} parent=1 // loop_footer_branch
      %22 = sbr.rel target = $region3
    $region8: #{tpu_custom_call.1} parent=1 // loop_exit
      _
    %1482 = vsyncpa [#allocation6], 1
    %s1483 = scalar_lea.sflag [#allocation6], 1
    %1484 = vsyncpa %s1483, 1
    %1485 = vsyncpa [#allocation9], 1
    %1486 = vsyncpa [#allocation12], 1
    %1487 = vsyncpa [#allocation7], 1
    %s1488 = scalar_lea.sflag [#allocation7], 1
    %1489 = vsyncpa %s1488, 1

// kernel: tpu_custom_call.1
$region0: #{tpu_custom_call.1}
  #allocation0 [shape = 'u32[]', space=smem, size = 0x4, offset = 0x4, fixed_abs, tag = 'smem constant byte address 0x4 - core index']
  #allocation1 [shape = 'u32[144,128]{1,0:T(1,128)}', space=vmem, size = 0x12000, scoped, tag = 'internal scratch']
  #allocation2 [shape = 'f32[8,32]{1,0:T(8,128)}', space=vmem, size = 0x1000, scoped, tag = 'scratch operand']
  #allocation3 [shape = 'f32[8,32]{1,0:T(8,128)}', space=vmem, size = 0x1000, scoped, tag = 'scratch operand']
  #allocation4 [shape = 'f32[8,32]{1,0:T(8,128)}', space=vmem, size = 0x1000, scoped, tag = 'scratch operand']
  %s0 = inlined_call_operand.hbm [shape: f32[2,8,32], index: 0, kind: input, shape index: {}]
  %s1 = inlined_call_operand.hbm [shape: f32[32,32], index: 1, kind: input, shape index: {}]
  %s2 = inlined_call_operand.vmem [shape: f32[1,32], index: 2, kind: input, shape index: {}]
  %s3 = inlined_call_operand.hbm [shape: f32[32,32], index: 3, kind: input, shape index: {}]
  %s4 = inlined_call_operand.vmem [shape: f32[1,32], index: 4, kind: input, shape index: {}]
  %s5 = inlined_call_operand.hbm [shape: f32[32,32], index: 5, kind: input, shape index: {}]
  %s6 = inlined_call_operand.vmem [shape: f32[1,32], index: 6, kind: input, shape index: {}]
  %s7 = inlined_call_operand.hbm [shape: f32[32,32], index: 7, kind: input, shape index: {}]
  %s8 = inlined_call_operand.vmem [shape: f32[1,32], index: 8, kind: input, shape index: {}]
  %s9 = inlined_call_operand.hbm [shape: f32[2,8,32], index: 9, kind: output, shape index: {}]
  %s10 = sld [smem:[#allocation0]]
  $region93: #{tpu_custom_call.1} parent=0
    _
  %s12 = ssub.s32 1, %s10
  %s13 = scalar_select 0, %s12, %s10
  $region1: #{tpu_custom_call.1} parent=0
    #allocation5 [shape = 'u8[8192]{0}', space=vmem, size = 0x2000, scoped, tag = 'input window, operand 0']
    #allocation6 [shape = 's32[2]{0}', space=sflag, size = 0x8, scoped, tag = 'scoped memory for tpu_custom_call.1']
    #allocation7 [shape = 's32[2]{0}', space=sflag, size = 0x8, scoped, tag = 'scoped memory for tpu_custom_call.1']
    #allocation8 [shape = 'u8[16384]{0}', space=vmem, size = 0x4000, scoped, tag = 'input window, operand 1, single buffered']
    #allocation9 [shape = 's32[1]{0}', space=sflag, size = 0x4, scoped, tag = 'scoped memory for tpu_custom_call.1']
    #allocation10 [shape = 'u8[16384]{0}', space=vmem, size = 0x4000, scoped, tag = 'input window, operand 3, single buffered']
    #allocation11 [shape = 'u8[16384]{0}', space=vmem, size = 0x4000, scoped, tag = 'input window, operand 5, single buffered']
    #allocation12 [shape = 's32[1]{0}', space=sflag, size = 0x4, scoped, tag = 'scoped memory for tpu_custom_call.1']
    #allocation13 [shape = 'u8[16384]{0}', space=vmem, size = 0x4000, scoped, tag = 'input window, operand 7, single buffered']
    #allocation14 [shape = 'u8[8192]{0}', space=vmem, size = 0x2000, scoped, tag = 'output window, operand 0']
    %14 = vsyncpa [#allocation6], 0
    %s15 = scalar_lea.sflag [#allocation6], 1
    %16 = vsyncpa %s15, 0
    %17 = vsyncpa [#allocation9], 0
    %18 = vsyncpa [#allocation12], 0
    %19 = vsyncpa [#allocation7], 0
    %s20 = scalar_lea.sflag [#allocation7], 1
    %21 = vsyncpa %s20, 0
    loop: start=0, step=1, limit=4
    $region2: #{tpu_custom_call.1} parent=1 // loop_pre_header
      _
    $region3: #{tpu_custom_call.1} parent=1 // loop_header
      %s23 = sphi 0, %s27
      %p24 = scmp.ge.s32.totalorder %s23, 4
      %s30 = sphi 0, %s42
      %s31 = sphi 0, %s38
      %s32 = sphi 0, %s30
      %s33 = sphi 0, %s31
      %s34 = sphi 0, %s32
      %s35 = sphi 0, %s33
      %s45 = sphi 0, %s47
      %s48 = sphi 0, %s45
      %s49 = sphi 0, %s48
      %s65 = sphi 0, %s49
      %s69 = sphi 0, %s69
      %s71 = sphi 0, %s69
      %s72 = sphi 0, %s71
      %s86 = sphi 0, %s72
      %s90 = sphi 0, %s90
      %s92 = sphi 0, %s90
      %s93 = sphi 0, %s92
      %s107 = sphi 0, %s93
      %s111 = sphi 0, %s111
      %s113 = sphi 0, %s111
      %s114 = sphi 0, %s113
      %s128 = sphi 0, %s114
      %s132 = sphi 0, %s132
      %s134 = sphi 0, %s132
      %s135 = sphi 0, %s134
      %s149 = sphi 0, %s135
      %s153 = sphi 0, %s153
      %s155 = sphi 0, %s153
      %s156 = sphi 0, %s155
      %s170 = sphi 0, %s156
      %s174 = sphi 0, %s174
      %s176 = sphi 0, %s174
      %s177 = sphi 0, %s176
      %s191 = sphi 0, %s177
      %s195 = sphi 0, %s195
      %s197 = sphi 0, %s195
      %s198 = sphi 0, %s197
      %s212 = sphi 0, %s198
      %s216 = sphi 0, %s216
      %s218 = sphi 0, %s216
      %s219 = sphi 0, %s218
      %s233 = sphi 0, %s219
      %s241 = sphi 0, %s243
      %s244 = sphi 0, %s241
      %s245 = sphi 0, %s244
      %s261 = sphi 0, %s245
    $region4: #{tpu_custom_call.1} parent=1 // loop_header_branch
      %26 = sbr.rel (%p24) target = $region8
    $region5: #{tpu_custom_call.1} parent=1 // loop_body
      %s28 = ssub.s32 %s23, 1
      %s29 = ssub.s32 %s23, 2
      %s36 = sadd.s32 1, %s31
      %p37 = scmp.ge.s32.totalorder %s36, 1
      %s38 = scalar_select %p37, 0, %s36
      %s39 = sadd.s32 1, %s30
      %s40 = scalar_select %p37, %s39, %s30
      %p41 = scmp.ge.s32.totalorder %s40, 2
      %s42 = scalar_select %p41, 0, %s40
      %s43 = ssub.s32 %s30, %s42
      %p44 = scmp.eq.s32.totalorder %s43, 0
      %s46 = sadd.s32 %s45, 1
      %s47 = scalar_select %p44, %s45, %s46
      %p50 = pneg %p44
      %p51 = scmp.eq.s32.totalorder %s23, 1
      %p52 = por %p50, %p51
      %p53 = scmp.ne.s32.totalorder %s45, %s48
      %p54 = scmp.eq.s32.totalorder %s23, 0
      %p55 = por %p53, %p54
      %p56 = scmp.ne.s32.totalorder %s45, %s48
      %p57 = scmp.eq.s32.totalorder %s28, 1
      %p58 = por %p56, %p57
      %p59 = scmp.ne.s32.totalorder %s48, %s49
      %p60 = scmp.eq.s32.totalorder %s28, 0
      %p61 = por %p59, %p60
      %p62 = scmp.ne.s32.totalorder %s48, %s49
      %p63 = scmp.eq.s32.totalorder %s29, 1
      %p64 = por %p62, %p63
      %p66 = scmp.ne.s32.totalorder %s49, %s65
      %p67 = scmp.eq.s32.totalorder %s29, 0
      %p68 = por %p66, %p67
      %s70 = sadd.s32 %s69, 1
      %p73 = scmp.eq.s32.totalorder %s23, 1
      %p74 = scmp.ne.s32.totalorder %s69, %s71
      %p75 = scmp.eq.s32.totalorder %s23, 0
      %p76 = por %p74, %p75
      %p77 = scmp.ne.s32.totalorder %s69, %s71
      %p78 = scmp.eq.s32.totalorder %s28, 1
      %p79 = por %p77, %p78
      %p80 = scmp.ne.s32.totalorder %s71, %s72
      %p81 = scmp.eq.s32.totalorder %s28, 0
      %p82 = por %p80, %p81
      %p83 = scmp.ne.s32.totalorder %s71, %s72
      %p84 = scmp.eq.s32.totalorder %s29, 1
      %p85 = por %p83, %p84
      %p87 = scmp.ne.s32.totalorder %s72, %s86
      %p88 = scmp.eq.s32.totalorder %s29, 0
      %p89 = por %p87, %p88
      %s91 = sadd.s32 %s90, 1
      %p94 = scmp.eq.s32.totalorder %s23, 1
      %p95 = scmp.ne.s32.totalorder %s90, %s92
      %p96 = scmp.eq.s32.totalorder %s23, 0
      %p97 = por %p95, %p96
      %p98 = scmp.ne.s32.totalorder %s90, %s92
      %p99 = scmp.eq.s32.totalorder %s28, 1
      %p100 = por %p98, %p99
      %p101 = scmp.ne.s32.totalorder %s92, %s93
      %p102 = scmp.eq.s32.totalorder %s28, 0
      %p103 = por %p101, %p102
      %p104 = scmp.ne.s32.totalorder %s92, %s93
      %p105 = scmp.eq.s32.totalorder %s29, 1
      %p106 = por %p104, %p105
      %p108 = scmp.ne.s32.totalorder %s93, %s107
      %p109 = scmp.eq.s32.totalorder %s29, 0
      %p110 = por %p108, %p109
      %s112 = sadd.s32 %s111, 1
      %p115 = scmp.eq.s32.totalorder %s23, 1
      %p116 = scmp.ne.s32.totalorder %s111, %s113
      %p117 = scmp.eq.s32.totalorder %s23, 0
      %p118 = por %p116, %p117
      %p119 = scmp.ne.s32.totalorder %s111, %s113
      %p120 = scmp.eq.s32.totalorder %s28, 1
      %p121 = por %p119, %p120
      %p122 = scmp.ne.s32.totalorder %s113, %s114
      %p123 = scmp.eq.s32.totalorder %s28, 0
      %p124 = por %p122, %p123
      %p125 = scmp.ne.s32.totalorder %s113, %s114
      %p126 = scmp.eq.s32.totalorder %s29, 1
      %p127 = por %p125, %p126
      %p129 = scmp.ne.s32.totalorder %s114, %s128
      %p130 = scmp.eq.s32.totalorder %s29, 0
      %p131 = por %p129, %p130
      %s133 = sadd.s32 %s132, 1
      %p136 = scmp.eq.s32.totalorder %s23, 1
      %p137 = scmp.ne.s32.totalorder %s132, %s134
      %p138 = scmp.eq.s32.totalorder %s23, 0
      %p139 = por %p137, %p138
      %p140 = scmp.ne.s32.totalorder %s132, %s134
      %p141 = scmp.eq.s32.totalorder %s28, 1
      %p142 = por %p140, %p141
      %p143 = scmp.ne.s32.totalorder %s134, %s135
      %p144 = scmp.eq.s32.totalorder %s28, 0
      %p145 = por %p143, %p144
      %p146 = scmp.ne.s32.totalorder %s134, %s135
      %p147 = scmp.eq.s32.totalorder %s29, 1
      %p148 = por %p146, %p147
      %p150 = scmp.ne.s32.totalorder %s135, %s149
      %p151 = scmp.eq.s32.totalorder %s29, 0
      %p152 = por %p150, %p151
      %s154 = sadd.s32 %s153, 1
      %p157 = scmp.eq.s32.totalorder %s23, 1
      %p158 = scmp.ne.s32.totalorder %s153, %s155
      %p159 = scmp.eq.s32.totalorder %s23, 0
      %p160 = por %p158, %p159
      %p161 = scmp.ne.s32.totalorder %s153, %s155
      %p162 = scmp.eq.s32.totalorder %s28, 1
      %p163 = por %p161, %p162
      %p164 = scmp.ne.s32.totalorder %s155, %s156
      %p165 = scmp.eq.s32.totalorder %s28, 0
      %p166 = por %p164, %p165
      %p167 = scmp.ne.s32.totalorder %s155, %s156
      %p168 = scmp.eq.s32.totalorder %s29, 1
      %p169 = por %p167, %p168
      %p171 = scmp.ne.s32.totalorder %s156, %s170
      %p172 = scmp.eq.s32.totalorder %s29, 0
      %p173 = por %p171, %p172
      %s175 = sadd.s32 %s174, 1
      %p178 = scmp.eq.s32.totalorder %s23, 1
      %p179 = scmp.ne.s32.totalorder %s174, %s176
      %p180 = scmp.eq.s32.totalorder %s23, 0
      %p181 = por %p179, %p180
      %p182 = scmp.ne.s32.totalorder %s174, %s176
      %p183 = scmp.eq.s32.totalorder %s28, 1
      %p184 = por %p182, %p183
      %p185 = scmp.ne.s32.totalorder %s176, %s177
      %p186 = scmp.eq.s32.totalorder %s28, 0
      %p187 = por %p185, %p186
      %p188 = scmp.ne.s32.totalorder %s176, %s177
      %p189 = scmp.eq.s32.totalorder %s29, 1
      %p190 = por %p188, %p189
      %p192 = scmp.ne.s32.totalorder %s177, %s191
      %p193 = scmp.eq.s32.totalorder %s29, 0
      %p194 = por %p192, %p193
      %s196 = sadd.s32 %s195, 1
      %p199 = scmp.eq.s32.totalorder %s23, 1
      %p200 = scmp.ne.s32.totalorder %s195, %s197
      %p201 = scmp.eq.s32.totalorder %s23, 0
      %p202 = por %p200, %p201
      %p203 = scmp.ne.s32.totalorder %s195, %s197
      %p204 = scmp.eq.s32.totalorder %s28, 1
      %p205 = por %p203, %p204
      %p206 = scmp.ne.s32.totalorder %s197, %s198
      %p207 = scmp.eq.s32.totalorder %s28, 0
      %p208 = por %p206, %p207
      %p209 = scmp.ne.s32.totalorder %s197, %s198
      %p210 = scmp.eq.s32.totalorder %s29, 1
      %p211 = por %p209, %p210
      %p213 = scmp.ne.s32.totalorder %s198, %s212
      %p214 = scmp.eq.s32.totalorder %s29, 0
      %p215 = por %p213, %p214
      %s217 = sadd.s32 %s216, 1
      %p220 = scmp.eq.s32.totalorder %s23, 1
      %p221 = scmp.ne.s32.totalorder %s216, %s218
      %p222 = scmp.eq.s32.totalorder %s23, 0
      %p223 = por %p221, %p222
      %p224 = scmp.ne.s32.totalorder %s216, %s218
      %p225 = scmp.eq.s32.totalorder %s28, 1
      %p226 = por %p224, %p225
      %p227 = scmp.ne.s32.totalorder %s218, %s219
      %p228 = scmp.eq.s32.totalorder %s28, 0
      %p229 = por %p227, %p228
      %p230 = scmp.ne.s32.totalorder %s218, %s219
      %p231 = scmp.eq.s32.totalorder %s29, 1
      %p232 = por %p230, %p231
      %p234 = scmp.ne.s32.totalorder %s219, %s233
      %p235 = scmp.eq.s32.totalorder %s29, 0
      %p236 = por %p234, %p235
      %s237 = ssub.s32 %s30, %s42
      %s238 = ssub.s32 %s31, %s38
      %s239 = sor.u32 %s237, %s238
      %p240 = scmp.eq.s32.totalorder %s239, 0
      %s242 = sadd.s32 %s241, 1
      %s243 = scalar_select %p240, %s241, %s242
      %p246 = pneg %p240
      %p247 = scmp.eq.s32.totalorder %s23, 1
      %p248 = por %p246, %p247
      %p249 = scmp.ne.s32.totalorder %s241, %s244
      %p250 = scmp.eq.s32.totalorder %s23, 0
      %p251 = por %p249, %p250
      %p252 = scmp.ne.s32.totalorder %s241, %s244
      %p253 = scmp.eq.s32.totalorder %s28, 1
      %p254 = por %p252, %p253
      %p255 = scmp.ne.s32.totalorder %s244, %s245
      %p256 = scmp.eq.s32.totalorder %s28, 0
      %p257 = por %p255, %p256
      %p258 = scmp.ne.s32.totalorder %s244, %s245
      %p259 = scmp.eq.s32.totalorder %s29, 1
      %p260 = por %p258, %p259
      %p262 = scmp.ne.s32.totalorder %s245, %s261
      %p263 = scmp.eq.s32.totalorder %s29, 0
      %p264 = por %p262, %p263
      %p265 = scmp.le.s32.totalorder 1, %s23
      %p266 = scmp.lt.s32.totalorder %s23, 3
      %p267 = pnand %p265, %p266
      %p268 = pneg %p267
      // Predicated region
      $region9: #{tpu_custom_call.1} parent=5 // pred_check
        _
      $region10: #{tpu_custom_call.1} parent=5 // pred_check_branch
        %270 = sbr.rel (%p267) target = $region12
      $region11: #{tpu_custom_call.1} parent=5 // pred_region
        %s271 = ssub.s32 %s23, 1
        // Predicated region
        $region13: #{tpu_custom_call.1} parent=11 // pred_check
          %p272 = pneg %p82
        $region14: #{tpu_custom_call.1} parent=11 // pred_check_branch
          %274 = sbr.rel (%p272) target = $region16
        $region15: #{tpu_custom_call.1} parent=11 // pred_region
          %s276 = ssub.s32 512, 512
          %277 = vsyncadd [#allocation9], %s276
          %s278 = sshll.u32 [#allocation8], 4
          %s279 = int_to_ptr.vmem [resolvable:$true] %s278
          %284 = dma.hbm_to_vmem [thread:$0]  %s1, 512, %s279, [#allocation9], 128, 128, 8
        $region16: #{tpu_custom_call.1} parent=11 // pred_fallthru
          _
        // Predicated region
        $region17: #{tpu_custom_call.1} parent=11 // pred_check
          %p285 = pneg %p103
        $region18: #{tpu_custom_call.1} parent=11 // pred_check_branch
          %287 = sbr.rel (%p285) target = $region20
        $region19: #{tpu_custom_call.1} parent=11 // pred_region
          _
        $region20: #{tpu_custom_call.1} parent=11 // pred_fallthru
          _
        // Predicated region
        $region21: #{tpu_custom_call.1} parent=11 // pred_check
          %p288 = pneg %p124
        $region22: #{tpu_custom_call.1} parent=11 // pred_check_branch
          %290 = sbr.rel (%p288) target = $region24
        $region23: #{tpu_custom_call.1} parent=11 // pred_region
          %s292 = ssub.s32 512, 512
          %293 = vsyncadd [#allocation9], %s292
          %s294 = sshll.u32 [#allocation10], 4
          %s295 = int_to_ptr.vmem [resolvable:$true] %s294
          %300 = dma.hbm_to_vmem [thread:$0]  %s3, 512, %s295, [#allocation9], 128, 128, 8
        $region24: #{tpu_custom_call.1} parent=11 // pred_fallthru
          _
        // Predicated region
        $region25: #{tpu_custom_call.1} parent=11 // pred_check
          %p301 = pneg %p145
        $region26: #{tpu_custom_call.1} parent=11 // pred_check_branch
          %303 = sbr.rel (%p301) target = $region28
        $region27: #{tpu_custom_call.1} parent=11 // pred_region
          _
        $region28: #{tpu_custom_call.1} parent=11 // pred_fallthru
          _
        // Predicated region
        $region29: #{tpu_custom_call.1} parent=11 // pred_check
          %p304 = pneg %p166
        $region30: #{tpu_custom_call.1} parent=11 // pred_check_branch
          %306 = sbr.rel (%p304) target = $region32
        $region31: #{tpu_custom_call.1} parent=11 // pred_region
          %s308 = ssub.s32 512, 512
          %309 = vsyncadd [#allocation12], %s308
          %s310 = sshll.u32 [#allocation11], 4
          %s311 = int_to_ptr.vmem [resolvable:$true] %s310
          %316 = dma.hbm_to_vmem [thread:$0]  %s5, 512, %s311, [#allocation12], 128, 128, 8
        $region32: #{tpu_custom_call.1} parent=11 // pred_fallthru
          _
        // Predicated region
        $region33: #{tpu_custom_call.1} parent=11 // pred_check
          %p317 = pneg %p187
        $region34: #{tpu_custom_call.1} parent=11 // pred_check_branch
          %319 = sbr.rel (%p317) target = $region36
        $region35: #{tpu_custom_call.1} parent=11 // pred_region
          _
        $region36: #{tpu_custom_call.1} parent=11 // pred_fallthru
          _
        // Predicated region
        $region37: #{tpu_custom_call.1} parent=11 // pred_check
          %p320 = pneg %p208
        $region38: #{tpu_custom_call.1} parent=11 // pred_check_branch
          %322 = sbr.rel (%p320) target = $region40
        $region39: #{tpu_custom_call.1} parent=11 // pred_region
          %s324 = ssub.s32 512, 512
          %325 = vsyncadd [#allocation12], %s324
          %s326 = sshll.u32 [#allocation13], 4
          %s327 = int_to_ptr.vmem [resolvable:$true] %s326
          %332 = dma.hbm_to_vmem [thread:$0]  %s7, 512, %s327, [#allocation12], 128, 128, 8
        $region40: #{tpu_custom_call.1} parent=11 // pred_fallthru
          _
        // Predicated region
        $region41: #{tpu_custom_call.1} parent=11 // pred_check
          %p333 = pneg %p229
        $region42: #{tpu_custom_call.1} parent=11 // pred_check_branch
          %335 = sbr.rel (%p333) target = $region44
        $region43: #{tpu_custom_call.1} parent=11 // pred_region
          _
        $region44: #{tpu_custom_call.1} parent=11 // pred_fallthru
          _
      $region12: #{tpu_custom_call.1} parent=5 // pred_fallthru
        _
      %p336 = scmp.lt.s32.totalorder %s23, 2
      // Predicated region
      $region45: #{tpu_custom_call.1} parent=5 // pred_check
        %p337 = pneg %p336
      $region46: #{tpu_custom_call.1} parent=5 // pred_check_branch
        %339 = sbr.rel (%p337) target = $region48
      $region47: #{tpu_custom_call.1} parent=5 // pred_region
        // Predicated region
        $region49: #{tpu_custom_call.1} parent=47 // pred_check
          %p340 = pneg %p55
        $region50: #{tpu_custom_call.1} parent=47 // pred_check_branch
          %342 = sbr.rel (%p340) target = $region52
        $region51: #{tpu_custom_call.1} parent=47 // pred_region
          %s343 = sand.u32 %s45, 1
          %s344 = scalar_lea.sflag [#allocation6], %s343
          %s345 = sand.u32 %s45, 1
          %s346 = smul.addr %s345, 8
          %s347 = scalar_lea.vmem [#allocation5], %s346
          %s349 = ssub.s32 128, 128
          %350 = vsyncadd %s344, %s349
          %s351 = smul.addr %s30, 128
          %s352 = scalar_lea.hbm %s0, %s351
          %s354 = sshll.u32 %s347, 4
          %s355 = int_to_ptr.vmem [resolvable:$true] %s354
          %357 = dma.hbm_to_vmem [thread:$0]  %s352, 128, %s355, %s344
        $region52: #{tpu_custom_call.1} parent=47 // pred_fallthru
          _
      $region48: #{tpu_custom_call.1} parent=5 // pred_fallthru
        _
      %p358 = scmp.le.s32.totalorder 1, %s23
      %p359 = scmp.lt.s32.totalorder %s23, 3
      %p360 = pnand %p358, %p359
      %p361 = pneg %p360
      // Predicated region
      $region53: #{tpu_custom_call.1} parent=5 // pred_check
        _
      $region54: #{tpu_custom_call.1} parent=5 // pred_check_branch
        %363 = sbr.rel (%p360) target = $region56
      $region55: #{tpu_custom_call.1} parent=5 // pred_region
        %s364 = ssub.s32 %s23, 1
        %s365 = sand.u32 %s48, 1
        %s366 = scalar_lea.sflag [#allocation6], %s365
        %s367 = sand.u32 %s48, 1
        %s368 = smul.addr %s367, 8
        %s369 = scalar_lea.vmem [#allocation5], %s368
        // Predicated region
        $region57: #{tpu_custom_call.1} parent=55 // pred_check
          %p370 = pneg %p61
        $region58: #{tpu_custom_call.1} parent=55 // pred_check_branch
          %372 = sbr.rel (%p370) target = $region60
        $region59: #{tpu_custom_call.1} parent=55 // pred_region
          %373 = dma.done %s366, 128
        $region60: #{tpu_custom_call.1} parent=55 // pred_fallthru
          _
        // Predicated region
        $region61: #{tpu_custom_call.1} parent=55 // pred_check
          %p374 = pneg %p82
        $region62: #{tpu_custom_call.1} parent=55 // pred_check_branch
          %376 = sbr.rel (%p374) target = $region64
        $region63: #{tpu_custom_call.1} parent=55 // pred_region
          %377 = dma.done [#allocation9], 512
        $region64: #{tpu_custom_call.1} parent=55 // pred_fallthru
          _
        // Predicated region
        $region65: #{tpu_custom_call.1} parent=55 // pred_check
          %p378 = pneg %p124
        $region66: #{tpu_custom_call.1} parent=55 // pred_check_branch
          %380 = sbr.rel (%p378) target = $region68
        $region67: #{tpu_custom_call.1} parent=55 // pred_region
          %381 = dma.done [#allocation9], 512
        $region68: #{tpu_custom_call.1} parent=55 // pred_fallthru
          _
        // Predicated region
        $region69: #{tpu_custom_call.1} parent=55 // pred_check
          %p382 = pneg %p166
        $region70: #{tpu_custom_call.1} parent=55 // pred_check_branch
          %384 = sbr.rel (%p382) target = $region72
        $region71: #{tpu_custom_call.1} parent=55 // pred_region
          %385 = dma.done [#allocation12], 512
        $region72: #{tpu_custom_call.1} parent=55 // pred_fallthru
          _
        // Predicated region
        $region73: #{tpu_custom_call.1} parent=55 // pred_check
          %p386 = pneg %p208
        $region74: #{tpu_custom_call.1} parent=55 // pred_check_branch
          %388 = sbr.rel (%p386) target = $region76
        $region75: #{tpu_custom_call.1} parent=55 // pred_region
          %389 = dma.done [#allocation12], 512
        $region76: #{tpu_custom_call.1} parent=55 // pred_fallthru
          _
        %s390 = sand.u32 %s48, 1
        %s391 = scalar_lea.sflag [#allocation6], %s390
        %s392 = sand.u32 %s48, 1
        %s393 = smul.addr %s392, 8
        %s394 = scalar_lea.vmem [#allocation5], %s393
        %p395 = pneg %p61
        %p396 = pneg %p58
        %p397 = pneg %p82
        %p398 = pneg %p79
        %p399 = pneg %p103
        %p400 = pneg %p100
        %p401 = pneg %p124
        %p402 = pneg %p121
        %p403 = pneg %p145
        %p404 = pneg %p142
        %p405 = pneg %p166
        %p406 = pneg %p163
        %p407 = pneg %p187
        %p408 = pneg %p184
        %p409 = pneg %p208
        %p410 = pneg %p205
        %p411 = pneg %p229
        %p412 = pneg %p226
        %p413 = pneg %p257
        %p414 = pneg %p254
        %s415 = sand.u32 %s244, 1
        %s416 = scalar_lea.sflag [#allocation7], %s415
        %s417 = sand.u32 %s244, 1
        %s418 = smul.addr %s417, 8
        %s419 = scalar_lea.vmem [#allocation14], %s418
        %s420 = smul.u32 %s33, 8
        %p421 = scmp.eq.s32.totalorder %s33, 0
        // Predicated region
        $region77: #{tpu_custom_call.1} parent=55 // pred_check
          %p422 = pneg %p421
        $region78: #{tpu_custom_call.1} parent=55 // pred_check_branch
          %424 = sbr.rel (%p422) target = $region80
        $region79: #{tpu_custom_call.1} parent=55 // pred_region
          %v425 = vld [vmem:[%s369] sm:$0xff]
          %v426 = vld [vmem:[#allocation10] sm:$0xff]
          %v427 = vld [vmem:[#allocation10 + $0x8] sm:$0xff]
          %v428 = vld [vmem:[#allocation10 + $0x10] sm:$0xff]
          %v429 = vld [vmem:[#allocation10 + $0x18] sm:$0xff]
          %v430 = vld [vmem:[%s4] sm:$0x1]
          %v432 = vlaneseq
          %v433 = vshrl.u32 %v432, 7
          %v434 = vsub.s32 0, %v433
          %v435 = vrot.slane %v430, %v434
          %vm437 = vcmask 261120
          %v439 = vsel %vm437, %v425, 0
          %441 = vmatprep.subr.mxu0 0.0
          %442 = vmatpush1.msra.mxu0 0.0
          %443 = vmatprep.subr.mxu0 0.0
          %444 = vmatpush1.msra.mxu0 0.0
          %445 = vmatprep.subr.mxu0 0.0
          %446 = vmatpush1.msra.mxu0 0.0
          %447 = vmatprep.subr.mxu0 0.0
          %448 = vmatpush1.msra.mxu0 0.0
          %449 = vmatprep.subr.mxu0 0.0
          %450 = vmatpush1.msra.mxu0 0.0
          %451 = vmatprep.subr.mxu0 0.0
          %452 = vmatpush1.msra.mxu0 0.0
          %453 = vmatprep.subr.mxu0 0.0
          %454 = vmatpush1.msra.mxu0 0.0
          %455 = vmatprep.subr.mxu0 0.0
          %456 = vmatpush1.msra.mxu0 0.0
          %457 = vmatprep.subr.mxu0 0.0
          %458 = vmatpush1.msra.mxu0 0.0
          %459 = vmatprep.subr.mxu0 0.0
          %460 = vmatpush1.msra.mxu0 0.0
          %461 = vmatprep.subr.mxu0 0.0
          %462 = vmatpush1.msra.mxu0 0.0
          %463 = vmatprep.subr.mxu0 0.0
          %464 = vmatpush1.msra.mxu0 0.0
          %465 = vmatprep.subr.mxu0 0.0
          %466 = vmatpush1.msra.mxu0 %v429
          %467 = vmatprep.subr.mxu0 0.0
          %468 = vmatpush1.msra.mxu0 %v428
          %469 = vmatprep.subr.mxu0 0.0
          %470 = vmatpush1.msra.mxu0 %v427
          %471 = vmatprep.subr.mxu0 0.0
          %472 = vmatpush1.msra.mxu0 %v426
          %473 = vmatprep.subr.mxu0 0.0
          %474 = vmatpush2.msra.mxu0 0.0
          %475 = vmatprep.subr.mxu0 0.0
          %476 = vmatpush2.msra.mxu0 0.0
          %477 = vmatprep.subr.mxu0 0.0
          %478 = vmatpush2.msra.mxu0 0.0
          %479 = vmatprep.subr.mxu0 0.0
          %480 = vmatpush2.msra.mxu0 0.0
          %481 = vmatprep.subr.mxu0 0.0
          %482 = vmatpush2.msra.mxu0 0.0
          %483 = vmatprep.subr.mxu0 0.0
          %484 = vmatpush2.msra.mxu0 0.0
          %485 = vmatprep.subr.mxu0 0.0
          %486 = vmatpush2.msra.mxu0 0.0
          %487 = vmatprep.subr.mxu0 0.0
          %488 = vmatpush2.msra.mxu0 0.0
          %489 = vmatprep.subr.mxu0 0.0
          %490 = vmatpush2.msra.mxu0 0.0
          %491 = vmatprep.subr.mxu0 0.0
          %492 = vmatpush2.msra.mxu0 0.0
          %493 = vmatprep.subr.mxu0 0.0
          %494 = vmatpush2.msra.mxu0 0.0
          %495 = vmatprep.subr.mxu0 0.0
          %496 = vmatpush2.msra.mxu0 0.0
          %497 = vmatprep.subr.mxu0 0.0
          %498 = vmatpush2.msra.mxu0 0.0
          %499 = vmatprep.subr.mxu0 0.0
          %500 = vmatpush2.msra.mxu0 0.0
          %501 = vmatprep.subr.mxu0 0.0
          %502 = vmatpush2.msra.mxu0 0.0
          %503 = vmatprep.subr.mxu0 0.0
          %504 = vmatpush2.msra.mxu0 0.0
          %505 = vmatprep.mubr.f32.mxu0 0.0
          %506 = vmatmul.mubr.f32.gmra.mxu0 %v439
          %v507 = vpop.f32.mrf.mxu0
          %v508 = vadd.f32 %v435, %v507
          %v509 = vpop.f32.mrf.mxu0
          %510 = vdwg.mxu0
          %v511 = vld [vmem:[#allocation11] sm:$0xff]
          %v512 = vld [vmem:[#allocation11 + $0x8] sm:$0xff]
          %v513 = vld [vmem:[#allocation11 + $0x10] sm:$0xff]
          %v514 = vld [vmem:[#allocation11 + $0x18] sm:$0xff]
          %v515 = vld [vmem:[%s6] sm:$0x1]
          %v517 = vlaneseq
          %v518 = vshrl.u32 %v517, 7
          %v519 = vsub.s32 0, %v518
          %v520 = vrot.slane %v515, %v519
          %522 = vmatprep.subr.mxu0 0.0
          %523 = vmatpush1.msra.mxu0 0.0
          %524 = vmatprep.subr.mxu0 0.0
          %525 = vmatpush1.msra.mxu0 0.0
          %526 = vmatprep.subr.mxu0 0.0
          %527 = vmatpush1.msra.mxu0 0.0
          %528 = vmatprep.subr.mxu0 0.0
          %529 = vmatpush1.msra.mxu0 0.0
          %530 = vmatprep.subr.mxu0 0.0
          %531 = vmatpush1.msra.mxu0 0.0
          %532 = vmatprep.subr.mxu0 0.0
          %533 = vmatpush1.msra.mxu0 0.0
          %534 = vmatprep.subr.mxu0 0.0
          %535 = vmatpush1.msra.mxu0 0.0
          %536 = vmatprep.subr.mxu0 0.0
          %537 = vmatpush1.msra.mxu0 0.0
          %538 = vmatprep.subr.mxu0 0.0
          %539 = vmatpush1.msra.mxu0 0.0
          %540 = vmatprep.subr.mxu0 0.0
          %541 = vmatpush1.msra.mxu0 0.0
          %542 = vmatprep.subr.mxu0 0.0
          %543 = vmatpush1.msra.mxu0 0.0
          %544 = vmatprep.subr.mxu0 0.0
          %545 = vmatpush1.msra.mxu0 0.0
          %546 = vmatprep.subr.mxu0 0.0
          %547 = vmatpush1.msra.mxu0 %v514
          %548 = vmatprep.subr.mxu0 0.0
          %549 = vmatpush1.msra.mxu0 %v513
          %550 = vmatprep.subr.mxu0 0.0
          %551 = vmatpush1.msra.mxu0 %v512
          %552 = vmatprep.subr.mxu0 0.0
          %553 = vmatpush1.msra.mxu0 %v511
          %554 = vmatprep.subr.mxu0 0.0
          %555 = vmatpush2.msra.mxu0 0.0
          %556 = vmatprep.subr.mxu0 0.0
          %557 = vmatpush2.msra.mxu0 0.0
          %558 = vmatprep.subr.mxu0 0.0
          %559 = vmatpush2.msra.mxu0 0.0
          %560 = vmatprep.subr.mxu0 0.0
          %561 = vmatpush2.msra.mxu0 0.0
          %562 = vmatprep.subr.mxu0 0.0
          %563 = vmatpush2.msra.mxu0 0.0
          %564 = vmatprep.subr.mxu0 0.0
          %565 = vmatpush2.msra.mxu0 0.0
          %566 = vmatprep.subr.mxu0 0.0
          %567 = vmatpush2.msra.mxu0 0.0
          %568 = vmatprep.subr.mxu0 0.0
          %569 = vmatpush2.msra.mxu0 0.0
          %570 = vmatprep.subr.mxu0 0.0
          %571 = vmatpush2.msra.mxu0 0.0
          %572 = vmatprep.subr.mxu0 0.0
          %573 = vmatpush2.msra.mxu0 0.0
          %574 = vmatprep.subr.mxu0 0.0
          %575 = vmatpush2.msra.mxu0 0.0
          %576 = vmatprep.subr.mxu0 0.0
          %577 = vmatpush2.msra.mxu0 0.0
          %578 = vmatprep.subr.mxu0 0.0
          %579 = vmatpush2.msra.mxu0 0.0
          %580 = vmatprep.subr.mxu0 0.0
          %581 = vmatpush2.msra.mxu0 0.0
          %582 = vmatprep.subr.mxu0 0.0
          %583 = vmatpush2.msra.mxu0 0.0
          %584 = vmatprep.subr.mxu0 0.0
          %585 = vmatpush2.msra.mxu0 0.0
          %586 = vmatprep.mubr.f32.mxu0 0.0
          %587 = vmatmul.mubr.f32.gmra.mxu0 %v439
          %v588 = vpop.f32.mrf.mxu0
          %v589 = vadd.f32 %v520, %v588
          %v590 = vpop.f32.mrf.mxu0
          %591 = vdwg.mxu0
          %592 = vst.msk [vmem:[#allocation2] sm:$0xff] %vm437, %v508
          %593 = vst.msk [vmem:[#allocation3] sm:$0xff] %vm437, %v589
        $region80: #{tpu_custom_call.1} parent=55 // pred_fallthru
          _
        %s594 = scalar_lea.vmem %s369, %s420 [#allocation5]
        %v595 = vld [vmem:[%s594] sm:$0xff]
        %v596 = vld [vmem:[#allocation8] sm:$0xff]
        %v597 = vld [vmem:[#allocation8 + $0x8] sm:$0xff]
        %v598 = vld [vmem:[#allocation8 + $0x10] sm:$0xff]
        %v599 = vld [vmem:[#allocation8 + $0x18] sm:$0xff]
        %v600 = vld [vmem:[%s2] sm:$0x1]
        %v602 = vlaneseq
        %v603 = vshrl.u32 %v602, 7
        %v604 = vsub.s32 0, %v603
        %v605 = vrot.slane %v600, %v604
        %vm607 = vcmask 261120
        %v609 = vsel %vm607, %v595, 0
        %611 = vmatprep.subr.mxu0 0.0
        %612 = vmatpush1.msra.mxu0 0.0
        %613 = vmatprep.subr.mxu0 0.0
        %614 = vmatpush1.msra.mxu0 0.0
        %615 = vmatprep.subr.mxu0 0.0
        %616 = vmatpush1.msra.mxu0 0.0
        %617 = vmatprep.subr.mxu0 0.0
        %618 = vmatpush1.msra.mxu0 0.0
        %619 = vmatprep.subr.mxu0 0.0
        %620 = vmatpush1.msra.mxu0 0.0
        %621 = vmatprep.subr.mxu0 0.0
        %622 = vmatpush1.msra.mxu0 0.0
        %623 = vmatprep.subr.mxu0 0.0
        %624 = vmatpush1.msra.mxu0 0.0
        %625 = vmatprep.subr.mxu0 0.0
        %626 = vmatpush1.msra.mxu0 0.0
        %627 = vmatprep.subr.mxu0 0.0
        %628 = vmatpush1.msra.mxu0 0.0
        %629 = vmatprep.subr.mxu0 0.0
        %630 = vmatpush1.msra.mxu0 0.0
        %631 = vmatprep.subr.mxu0 0.0
        %632 = vmatpush1.msra.mxu0 0.0
        %633 = vmatprep.subr.mxu0 0.0
        %634 = vmatpush1.msra.mxu0 0.0
        %635 = vmatprep.subr.mxu0 0.0
        %636 = vmatpush1.msra.mxu0 %v599
        %637 = vmatprep.subr.mxu0 0.0
        %638 = vmatpush1.msra.mxu0 %v598
        %639 = vmatprep.subr.mxu0 0.0
        %640 = vmatpush1.msra.mxu0 %v597
        %641 = vmatprep.subr.mxu0 0.0
        %642 = vmatpush1.msra.mxu0 %v596
        %643 = vmatprep.subr.mxu0 0.0
        %644 = vmatpush2.msra.mxu0 0.0
        %645 = vmatprep.subr.mxu0 0.0
        %646 = vmatpush2.msra.mxu0 0.0
        %647 = vmatprep.subr.mxu0 0.0
        %648 = vmatpush2.msra.mxu0 0.0
        %649 = vmatprep.subr.mxu0 0.0
        %650 = vmatpush2.msra.mxu0 0.0
        %651 = vmatprep.subr.mxu0 0.0
        %652 = vmatpush2.msra.mxu0 0.0
        %653 = vmatprep.subr.mxu0 0.0
        %654 = vmatpush2.msra.mxu0 0.0
        %655 = vmatprep.subr.mxu0 0.0
        %656 = vmatpush2.msra.mxu0 0.0
        %657 = vmatprep.subr.mxu0 0.0
        %658 = vmatpush2.msra.mxu0 0.0
        %659 = vmatprep.subr.mxu0 0.0
        %660 = vmatpush2.msra.mxu0 0.0
        %661 = vmatprep.subr.mxu0 0.0
        %662 = vmatpush2.msra.mxu0 0.0
        %663 = vmatprep.subr.mxu0 0.0
        %664 = vmatpush2.msra.mxu0 0.0
        %665 = vmatprep.subr.mxu0 0.0
        %666 = vmatpush2.msra.mxu0 0.0
        %667 = vmatprep.subr.mxu0 0.0
        %668 = vmatpush2.msra.mxu0 0.0
        %669 = vmatprep.subr.mxu0 0.0
        %670 = vmatpush2.msra.mxu0 0.0
        %671 = vmatprep.subr.mxu0 0.0
        %672 = vmatpush2.msra.mxu0 0.0
        %673 = vmatprep.subr.mxu0 0.0
        %674 = vmatpush2.msra.mxu0 0.0
        %675 = vmatprep.mubr.f32.mxu0 0.0
        %676 = vmatmul.mubr.f32.gmra.mxu0 %v609
        %v677 = vpop.f32.mrf.mxu0
        %v678 = vadd.f32 %v605, %v677
        %v679 = vpop.f32.mrf.mxu0
        %680 = vdwg.mxu0
        %v681 = vld [vmem:[#allocation2] sm:$0xff]
        %v682 = vld [vmem:[#allocation3] sm:$0xff]
        %vm683 = vcmask 64512
        %v685 = vsel %vm683, %v678, 0
        %v688 = vsel %vm683, %v681, 0
        %690 = vmatprep.subr.mxu0 0.0
        %691 = vmatpush1.xpose.msra.mxu0 0.0
        %692 = vmatprep.subr.mxu0 0.0
        %693 = vmatpush1.xpose.msra.mxu0 0.0
        %694 = vmatprep.subr.mxu0 0.0
        %695 = vmatpush1.xpose.msra.mxu0 0.0
        %696 = vmatprep.subr.mxu0 0.0
        %697 = vmatpush1.xpose.msra.mxu0 0.0
        %698 = vmatprep.subr.mxu0 0.0
        %699 = vmatpush1.xpose.msra.mxu0 0.0
        %700 = vmatprep.subr.mxu0 0.0
        %701 = vmatpush1.xpose.msra.mxu0 0.0
        %702 = vmatprep.subr.mxu0 0.0
        %703 = vmatpush1.xpose.msra.mxu0 0.0
        %704 = vmatprep.subr.mxu0 0.0
        %705 = vmatpush1.xpose.msra.mxu0 0.0
        %706 = vmatprep.subr.mxu0 0.0
        %707 = vmatpush1.xpose.msra.mxu0 0.0
        %708 = vmatprep.subr.mxu0 0.0
        %709 = vmatpush1.xpose.msra.mxu0 0.0
        %710 = vmatprep.subr.mxu0 0.0
        %711 = vmatpush1.xpose.msra.mxu0 0.0
        %712 = vmatprep.subr.mxu0 0.0
        %713 = vmatpush1.xpose.msra.mxu0 0.0
        %714 = vmatprep.subr.mxu0 0.0
        %715 = vmatpush1.xpose.msra.mxu0 0.0
        %716 = vmatprep.subr.mxu0 0.0
        %717 = vmatpush1.xpose.msra.mxu0 0.0
        %718 = vmatprep.subr.mxu0 0.0
        %719 = vmatpush1.xpose.msra.mxu0 0.0
        %720 = vmatprep.subr.mxu0 0.0
        %721 = vmatpush1.xpose.msra.mxu0 %v688
        %722 = vmatprep.subr.mxu0 0.0
        %723 = vmatpush2.xpose.msra.mxu0 0.0
        %724 = vmatprep.subr.mxu0 0.0
        %725 = vmatpush2.xpose.msra.mxu0 0.0
        %726 = vmatprep.subr.mxu0 0.0
        %727 = vmatpush2.xpose.msra.mxu0 0.0
        %728 = vmatprep.subr.mxu0 0.0
        %729 = vmatpush2.xpose.msra.mxu0 0.0
        %730 = vmatprep.subr.mxu0 0.0
        %731 = vmatpush2.xpose.msra.mxu0 0.0
        %732 = vmatprep.subr.mxu0 0.0
        %733 = vmatpush2.xpose.msra.mxu0 0.0
        %734 = vmatprep.subr.mxu0 0.0
        %735 = vmatpush2.xpose.msra.mxu0 0.0
        %736 = vmatprep.subr.mxu0 0.0
        %737 = vmatpush2.xpose.msra.mxu0 0.0
        %738 = vmatprep.subr.mxu0 0.0
        %739 = vmatpush2.xpose.msra.mxu0 0.0
        %740 = vmatprep.subr.mxu0 0.0
        %741 = vmatpush2.xpose.msra.mxu0 0.0
        %742 = vmatprep.subr.mxu0 0.0
        %743 = vmatpush2.xpose.msra.mxu0 0.0
        %744 = vmatprep.subr.mxu0 0.0
        %745 = vmatpush2.xpose.msra.mxu0 0.0
        %746 = vmatprep.subr.mxu0 0.0
        %747 = vmatpush2.xpose.msra.mxu0 0.0
        %748 = vmatprep.subr.mxu0 0.0
        %749 = vmatpush2.xpose.msra.mxu0 0.0
        %750 = vmatprep.subr.mxu0 0.0
        %751 = vmatpush2.xpose.msra.mxu0 0.0
        %752 = vmatprep.subr.mxu0 0.0
        %753 = vmatpush2.xpose.msra.mxu0 0.0
        %754 = vmatprep.mubr.f32.mxu0 0.0
        %755 = vmatmul.mubr.f32.gmra.mxu0 %v685
        %v756 = vpop.f32.mrf.mxu0
        %v757 = vadd.f32 0.0, %v756
        %v758 = vpop.f32.mrf.mxu0
        %759 = vdwg.mxu0
        %v760 = vmul.f32 %v757, 0.35355338
        %v761 = vsel %vm683, %v760, -inf
        %762 = vmax.xlane.f32.xlu0 %v761
        %v763 = vpop.xlane.xlu0 %762
        %v764 = vsub.f32 %v760, %v763
        %v765 = vmul.f32 %v764, 1.442695
        %v766 = vpow.pop %v765
        %v767 = vsel %vm683, %v766, 0.0
        %768 = vadd.xlane.f32.xlu0 %v767
        %v769 = vpop.xlane.xlu0 %768
        %v770 = vrcp.pop %v769
        %v772 = vsel %vm683, %v766, 0
        %774 = vmatprep.subr.mxu0 0.0
        %775 = vmatpush1.msra.mxu0 0.0
        %776 = vmatprep.subr.mxu0 0.0
        %777 = vmatpush1.msra.mxu0 0.0
        %778 = vmatprep.subr.mxu0 0.0
        %779 = vmatpush1.msra.mxu0 0.0
        %780 = vmatprep.subr.mxu0 0.0
        %781 = vmatpush1.msra.mxu0 0.0
        %782 = vmatprep.subr.mxu0 0.0
        %783 = vmatpush1.msra.mxu0 0.0
        %784 = vmatprep.subr.mxu0 0.0
        %785 = vmatpush1.msra.mxu0 0.0
        %786 = vmatprep.subr.mxu0 0.0
        %787 = vmatpush1.msra.mxu0 0.0
        %788 = vmatprep.subr.mxu0 0.0
        %789 = vmatpush1.msra.mxu0 0.0
        %790 = vmatprep.subr.mxu0 0.0
        %791 = vmatpush1.msra.mxu0 0.0
        %792 = vmatprep.subr.mxu0 0.0
        %793 = vmatpush1.msra.mxu0 0.0
        %794 = vmatprep.subr.mxu0 0.0
        %795 = vmatpush1.msra.mxu0 0.0
        %796 = vmatprep.subr.mxu0 0.0
        %797 = vmatpush1.msra.mxu0 0.0
        %798 = vmatprep.subr.mxu0 0.0
        %799 = vmatpush1.msra.mxu0 0.0
        %800 = vmatprep.subr.mxu0 0.0
        %801 = vmatpush1.msra.mxu0 0.0
        %802 = vmatprep.subr.mxu0 0.0
        %803 = vmatpush1.msra.mxu0 0.0
        %804 = vmatprep.subr.mxu0 0.0
        %805 = vmatpush1.msra.mxu0 %v682
        %806 = vmatprep.subr.mxu0 0.0
        %807 = vmatpush2.msra.mxu0 0.0
        %808 = vmatprep.subr.mxu0 0.0
        %809 = vmatpush2.msra.mxu0 0.0
        %810 = vmatprep.subr.mxu0 0.0
        %811 = vmatpush2.msra.mxu0 0.0
        %812 = vmatprep.subr.mxu0 0.0
        %813 = vmatpush2.msra.mxu0 0.0
        %814 = vmatprep.subr.mxu0 0.0
        %815 = vmatpush2.msra.mxu0 0.0
        %816 = vmatprep.subr.mxu0 0.0
        %817 = vmatpush2.msra.mxu0 0.0
        %818 = vmatprep.subr.mxu0 0.0
        %819 = vmatpush2.msra.mxu0 0.0
        %820 = vmatprep.subr.mxu0 0.0
        %821 = vmatpush2.msra.mxu0 0.0
        %822 = vmatprep.subr.mxu0 0.0
        %823 = vmatpush2.msra.mxu0 0.0
        %824 = vmatprep.subr.mxu0 0.0
        %825 = vmatpush2.msra.mxu0 0.0
        %826 = vmatprep.subr.mxu0 0.0
        %827 = vmatpush2.msra.mxu0 0.0
        %828 = vmatprep.subr.mxu0 0.0
        %829 = vmatpush2.msra.mxu0 0.0
        %830 = vmatprep.subr.mxu0 0.0
        %831 = vmatpush2.msra.mxu0 0.0
        %832 = vmatprep.subr.mxu0 0.0
        %833 = vmatpush2.msra.mxu0 0.0
        %834 = vmatprep.subr.mxu0 0.0
        %835 = vmatpush2.msra.mxu0 0.0
        %836 = vmatprep.subr.mxu0 0.0
        %837 = vmatpush2.msra.mxu0 0.0
        %838 = vmatprep.mubr.f32.mxu0 0.0
        %839 = vmatmul.mubr.f32.gmra.mxu0 %v772
        %v840 = vpop.f32.mrf.mxu0
        %v841 = vadd.f32 0.0, %v840
        %v842 = vpop.f32.mrf.mxu0
        %843 = vdwg.mxu0
        %v844 = vmul.f32 %v841, %v770
        %845 = vst.msk [vmem:[#allocation4] sm:$0xff] %vm683, %v844
        %846 = vrot.lane.b32.xlu0 %v678, 120
        %v847 = vpop.permute.xlu0 %846
        %848 = vrot.lane.b32.xlu0 %v681, 120
        %v849 = vpop.permute.xlu0 %848
        %v850 = vsel %vm683, %v847, 0
        %v852 = vsel %vm683, %v849, 0
        %854 = vmatprep.subr.mxu0 0.0
        %855 = vmatpush1.xpose.msra.mxu0 0.0
        %856 = vmatprep.subr.mxu0 0.0
        %857 = vmatpush1.xpose.msra.mxu0 0.0
        %858 = vmatprep.subr.mxu0 0.0
        %859 = vmatpush1.xpose.msra.mxu0 0.0
        %860 = vmatprep.subr.mxu0 0.0
        %861 = vmatpush1.xpose.msra.mxu0 0.0
        %862 = vmatprep.subr.mxu0 0.0
        %863 = vmatpush1.xpose.msra.mxu0 0.0
        %864 = vmatprep.subr.mxu0 0.0
        %865 = vmatpush1.xpose.msra.mxu0 0.0
        %866 = vmatprep.subr.mxu0 0.0
        %867 = vmatpush1.xpose.msra.mxu0 0.0
        %868 = vmatprep.subr.mxu0 0.0
        %869 = vmatpush1.xpose.msra.mxu0 0.0
        %870 = vmatprep.subr.mxu0 0.0
        %871 = vmatpush1.xpose.msra.mxu0 0.0
        %872 = vmatprep.subr.mxu0 0.0
        %873 = vmatpush1.xpose.msra.mxu0 0.0
        %874 = vmatprep.subr.mxu0 0.0
        %875 = vmatpush1.xpose.msra.mxu0 0.0
        %876 = vmatprep.subr.mxu0 0.0
        %877 = vmatpush1.xpose.msra.mxu0 0.0
        %878 = vmatprep.subr.mxu0 0.0
        %879 = vmatpush1.xpose.msra.mxu0 0.0
        %880 = vmatprep.subr.mxu0 0.0
        %881 = vmatpush1.xpose.msra.mxu0 0.0
        %882 = vmatprep.subr.mxu0 0.0
        %883 = vmatpush1.xpose.msra.mxu0 0.0
        %884 = vmatprep.subr.mxu0 0.0
        %885 = vmatpush1.xpose.msra.mxu0 %v852
        %886 = vmatprep.subr.mxu0 0.0
        %887 = vmatpush2.xpose.msra.mxu0 0.0
        %888 = vmatprep.subr.mxu0 0.0
        %889 = vmatpush2.xpose.msra.mxu0 0.0
        %890 = vmatprep.subr.mxu0 0.0
        %891 = vmatpush2.xpose.msra.mxu0 0.0
        %892 = vmatprep.subr.mxu0 0.0
        %893 = vmatpush2.xpose.msra.mxu0 0.0
        %894 = vmatprep.subr.mxu0 0.0
        %895 = vmatpush2.xpose.msra.mxu0 0.0
        %896 = vmatprep.subr.mxu0 0.0
        %897 = vmatpush2.xpose.msra.mxu0 0.0
        %898 = vmatprep.subr.mxu0 0.0
        %899 = vmatpush2.xpose.msra.mxu0 0.0
        %900 = vmatprep.subr.mxu0 0.0
        %901 = vmatpush2.xpose.msra.mxu0 0.0
        %902 = vmatprep.subr.mxu0 0.0
        %903 = vmatpush2.xpose.msra.mxu0 0.0
        %904 = vmatprep.subr.mxu0 0.0
        %905 = vmatpush2.xpose.msra.mxu0 0.0
        %906 = vmatprep.subr.mxu0 0.0
        %907 = vmatpush2.xpose.msra.mxu0 0.0
        %908 = vmatprep.subr.mxu0 0.0
        %909 = vmatpush2.xpose.msra.mxu0 0.0
        %910 = vmatprep.subr.mxu0 0.0
        %911 = vmatpush2.xpose.msra.mxu0 0.0
        %912 = vmatprep.subr.mxu0 0.0
        %913 = vmatpush2.xpose.msra.mxu0 0.0
        %914 = vmatprep.subr.mxu0 0.0
        %915 = vmatpush2.xpose.msra.mxu0 0.0
        %916 = vmatprep.subr.mxu0 0.0
        %917 = vmatpush2.xpose.msra.mxu0 0.0
        %918 = vmatprep.mubr.f32.mxu0 0.0
        %919 = vmatmul.mubr.f32.gmra.mxu0 %v850
        %v920 = vpop.f32.mrf.mxu0
        %v921 = vadd.f32 0.0, %v920
        %v922 = vpop.f32.mrf.mxu0
        %923 = vdwg.mxu0
        %v924 = vmul.f32 %v921, 0.35355338
        %v925 = vsel %vm683, %v924, -inf
        %926 = vmax.xlane.f32.xlu0 %v925
        %v927 = vpop.xlane.xlu0 %926
        %v928 = vsub.f32 %v924, %v927
        %v929 = vmul.f32 %v928, 1.442695
        %v930 = vpow.pop %v929
        %v931 = vsel %vm683, %v930, 0.0
        %932 = vadd.xlane.f32.xlu0 %v931
        %v933 = vpop.xlane.xlu0 %932
        %v934 = vrcp.pop %v933
        %936 = vrot.lane.b32.xlu0 %v682, 120
        %v937 = vpop.permute.xlu0 %936
        %v940 = vsel %vm683, %v930, 0
        %942 = vmatprep.subr.mxu0 0.0
        %943 = vmatpush1.msra.mxu0 0.0
        %944 = vmatprep.subr.mxu0 0.0
        %945 = vmatpush1.msra.mxu0 0.0
        %946 = vmatprep.subr.mxu0 0.0
        %947 = vmatpush1.msra.mxu0 0.0
        %948 = vmatprep.subr.mxu0 0.0
        %949 = vmatpush1.msra.mxu0 0.0
        %950 = vmatprep.subr.mxu0 0.0
        %951 = vmatpush1.msra.mxu0 0.0
        %952 = vmatprep.subr.mxu0 0.0
        %953 = vmatpush1.msra.mxu0 0.0
        %954 = vmatprep.subr.mxu0 0.0
        %955 = vmatpush1.msra.mxu0 0.0
        %956 = vmatprep.subr.mxu0 0.0
        %957 = vmatpush1.msra.mxu0 0.0
        %958 = vmatprep.subr.mxu0 0.0
        %959 = vmatpush1.msra.mxu0 0.0
        %960 = vmatprep.subr.mxu0 0.0
        %961 = vmatpush1.msra.mxu0 0.0
        %962 = vmatprep.subr.mxu0 0.0
        %963 = vmatpush1.msra.mxu0 0.0
        %964 = vmatprep.subr.mxu0 0.0
        %965 = vmatpush1.msra.mxu0 0.0
        %966 = vmatprep.subr.mxu0 0.0
        %967 = vmatpush1.msra.mxu0 0.0
        %968 = vmatprep.subr.mxu0 0.0
        %969 = vmatpush1.msra.mxu0 0.0
        %970 = vmatprep.subr.mxu0 0.0
        %971 = vmatpush1.msra.mxu0 0.0
        %972 = vmatprep.subr.mxu0 0.0
        %973 = vmatpush1.msra.mxu0 %v937
        %974 = vmatprep.subr.mxu0 0.0
        %975 = vmatpush2.msra.mxu0 0.0
        %976 = vmatprep.subr.mxu0 0.0
        %977 = vmatpush2.msra.mxu0 0.0
        %978 = vmatprep.subr.mxu0 0.0
        %979 = vmatpush2.msra.mxu0 0.0
        %980 = vmatprep.subr.mxu0 0.0
        %981 = vmatpush2.msra.mxu0 0.0
        %982 = vmatprep.subr.mxu0 0.0
        %983 = vmatpush2.msra.mxu0 0.0
        %984 = vmatprep.subr.mxu0 0.0
        %985 = vmatpush2.msra.mxu0 0.0
        %986 = vmatprep.subr.mxu0 0.0
        %987 = vmatpush2.msra.mxu0 0.0
        %988 = vmatprep.subr.mxu0 0.0
        %989 = vmatpush2.msra.mxu0 0.0
        %990 = vmatprep.subr.mxu0 0.0
        %991 = vmatpush2.msra.mxu0 0.0
        %992 = vmatprep.subr.mxu0 0.0
        %993 = vmatpush2.msra.mxu0 0.0
        %994 = vmatprep.subr.mxu0 0.0
        %995 = vmatpush2.msra.mxu0 0.0
        %996 = vmatprep.subr.mxu0 0.0
        %997 = vmatpush2.msra.mxu0 0.0
        %998 = vmatprep.subr.mxu0 0.0
        %999 = vmatpush2.msra.mxu0 0.0
        %1000 = vmatprep.subr.mxu0 0.0
        %1001 = vmatpush2.msra.mxu0 0.0
        %1002 = vmatprep.subr.mxu0 0.0
        %1003 = vmatpush2.msra.mxu0 0.0
        %1004 = vmatprep.subr.mxu0 0.0
        %1005 = vmatpush2.msra.mxu0 0.0
        %1006 = vmatprep.mubr.f32.mxu0 0.0
        %1007 = vmatmul.mubr.f32.gmra.mxu0 %v940
        %v1008 = vpop.f32.mrf.mxu0
        %v1009 = vadd.f32 0.0, %v1008
        %v1010 = vpop.f32.mrf.mxu0
        %1011 = vdwg.mxu0
        %v1012 = vmul.f32 %v1009, %v934
        %1014 = vrot.lane.b32.xlu0 %v1012, 8
        %v1015 = vpop.permute.xlu0 %1014
        %vm1017 = vcmask 130112
        %1018 = vst.msk [vmem:[#allocation4] sm:$0xff] %vm1017, %v1015
        %1019 = vrot.lane.b32.xlu0 %v678, 112
        %v1020 = vpop.permute.xlu0 %1019
        %1021 = vrot.lane.b32.xlu0 %v681, 112
        %v1022 = vpop.permute.xlu0 %1021
        %v1023 = vsel %vm683, %v1020, 0
        %v1025 = vsel %vm683, %v1022, 0
        %1027 = vmatprep.subr.mxu0 0.0
        %1028 = vmatpush1.xpose.msra.mxu0 0.0
        %1029 = vmatprep.subr.mxu0 0.0
        %1030 = vmatpush1.xpose.msra.mxu0 0.0
        %1031 = vmatprep.subr.mxu0 0.0
        %1032 = vmatpush1.xpose.msra.mxu0 0.0
        %1033 = vmatprep.subr.mxu0 0.0
        %1034 = vmatpush1.xpose.msra.mxu0 0.0
        %1035 = vmatprep.subr.mxu0 0.0
        %1036 = vmatpush1.xpose.msra.mxu0 0.0
        %1037 = vmatprep.subr.mxu0 0.0
        %1038 = vmatpush1.xpose.msra.mxu0 0.0
        %1039 = vmatprep.subr.mxu0 0.0
        %1040 = vmatpush1.xpose.msra.mxu0 0.0
        %1041 = vmatprep.subr.mxu0 0.0
        %1042 = vmatpush1.xpose.msra.mxu0 0.0
        %1043 = vmatprep.subr.mxu0 0.0
        %1044 = vmatpush1.xpose.msra.mxu0 0.0
        %1045 = vmatprep.subr.mxu0 0.0
        %1046 = vmatpush1.xpose.msra.mxu0 0.0
        %1047 = vmatprep.subr.mxu0 0.0
        %1048 = vmatpush1.xpose.msra.mxu0 0.0
        %1049 = vmatprep.subr.mxu0 0.0
        %1050 = vmatpush1.xpose.msra.mxu0 0.0
        %1051 = vmatprep.subr.mxu0 0.0
        %1052 = vmatpush1.xpose.msra.mxu0 0.0
        %1053 = vmatprep.subr.mxu0 0.0
        %1054 = vmatpush1.xpose.msra.mxu0 0.0
        %1055 = vmatprep.subr.mxu0 0.0
        %1056 = vmatpush1.xpose.msra.mxu0 0.0
        %1057 = vmatprep.subr.mxu0 0.0
        %1058 = vmatpush1.xpose.msra.mxu0 %v1025
        %1059 = vmatprep.subr.mxu0 0.0
        %1060 = vmatpush2.xpose.msra.mxu0 0.0
        %1061 = vmatprep.subr.mxu0 0.0
        %1062 = vmatpush2.xpose.msra.mxu0 0.0
        %1063 = vmatprep.subr.mxu0 0.0
        %1064 = vmatpush2.xpose.msra.mxu0 0.0
        %1065 = vmatprep.subr.mxu0 0.0
        %1066 = vmatpush2.xpose.msra.mxu0 0.0
        %1067 = vmatprep.subr.mxu0 0.0
        %1068 = vmatpush2.xpose.msra.mxu0 0.0
        %1069 = vmatprep.subr.mxu0 0.0
        %1070 = vmatpush2.xpose.msra.mxu0 0.0
        %1071 = vmatprep.subr.mxu0 0.0
        %1072 = vmatpush2.xpose.msra.mxu0 0.0
        %1073 = vmatprep.subr.mxu0 0.0
        %1074 = vmatpush2.xpose.msra.mxu0 0.0
        %1075 = vmatprep.subr.mxu0 0.0
        %1076 = vmatpush2.xpose.msra.mxu0 0.0
        %1077 = vmatprep.subr.mxu0 0.0
        %1078 = vmatpush2.xpose.msra.mxu0 0.0
        %1079 = vmatprep.subr.mxu0 0.0
        %1080 = vmatpush2.xpose.msra.mxu0 0.0
        %1081 = vmatprep.subr.mxu0 0.0
        %1082 = vmatpush2.xpose.msra.mxu0 0.0
        %1083 = vmatprep.subr.mxu0 0.0
        %1084 = vmatpush2.xpose.msra.mxu0 0.0
        %1085 = vmatprep.subr.mxu0 0.0
        %1086 = vmatpush2.xpose.msra.mxu0 0.0
        %1087 = vmatprep.subr.mxu0 0.0
        %1088 = vmatpush2.xpose.msra.mxu0 0.0
        %1089 = vmatprep.subr.mxu0 0.0
        %1090 = vmatpush2.xpose.msra.mxu0 0.0
        %1091 = vmatprep.mubr.f32.mxu0 0.0
        %1092 = vmatmul.mubr.f32.gmra.mxu0 %v1023
        %v1093 = vpop.f32.mrf.mxu0
        %v1094 = vadd.f32 0.0, %v1093
        %v1095 = vpop.f32.mrf.mxu0
        %1096 = vdwg.mxu0
        %v1097 = vmul.f32 %v1094, 0.35355338
        %v1098 = vsel %vm683, %v1097, -inf
        %1099 = vmax.xlane.f32.xlu0 %v1098
        %v1100 = vpop.xlane.xlu0 %1099
        %v1101 = vsub.f32 %v1097, %v1100
        %v1102 = vmul.f32 %v1101, 1.442695
        %v1103 = vpow.pop %v1102
        %v1104 = vsel %vm683, %v1103, 0.0
        %1105 = vadd.xlane.f32.xlu0 %v1104
        %v1106 = vpop.xlane.xlu0 %1105
        %v1107 = vrcp.pop %v1106
        %1108 = vrot.lane.b32.xlu0 %v682, 112
        %v1109 = vpop.permute.xlu0 %1108
        %v1112 = vsel %vm683, %v1103, 0
        %1114 = vmatprep.subr.mxu0 0.0
        %1115 = vmatpush1.msra.mxu0 0.0
        %1116 = vmatprep.subr.mxu0 0.0
        %1117 = vmatpush1.msra.mxu0 0.0
        %1118 = vmatprep.subr.mxu0 0.0
        %1119 = vmatpush1.msra.mxu0 0.0
        %1120 = vmatprep.subr.mxu0 0.0
        %1121 = vmatpush1.msra.mxu0 0.0
        %1122 = vmatprep.subr.mxu0 0.0
        %1123 = vmatpush1.msra.mxu0 0.0
        %1124 = vmatprep.subr.mxu0 0.0
        %1125 = vmatpush1.msra.mxu0 0.0
        %1126 = vmatprep.subr.mxu0 0.0
        %1127 = vmatpush1.msra.mxu0 0.0
        %1128 = vmatprep.subr.mxu0 0.0
        %1129 = vmatpush1.msra.mxu0 0.0
        %1130 = vmatprep.subr.mxu0 0.0
        %1131 = vmatpush1.msra.mxu0 0.0
        %1132 = vmatprep.subr.mxu0 0.0
        %1133 = vmatpush1.msra.mxu0 0.0
        %1134 = vmatprep.subr.mxu0 0.0
        %1135 = vmatpush1.msra.mxu0 0.0
        %1136 = vmatprep.subr.mxu0 0.0
        %1137 = vmatpush1.msra.mxu0 0.0
        %1138 = vmatprep.subr.mxu0 0.0
        %1139 = vmatpush1.msra.mxu0 0.0
        %1140 = vmatprep.subr.mxu0 0.0
        %1141 = vmatpush1.msra.mxu0 0.0
        %1142 = vmatprep.subr.mxu0 0.0
        %1143 = vmatpush1.msra.mxu0 0.0
        %1144 = vmatprep.subr.mxu0 0.0
        %1145 = vmatpush1.msra.mxu0 %v1109
        %1146 = vmatprep.subr.mxu0 0.0
        %1147 = vmatpush2.msra.mxu0 0.0
        %1148 = vmatprep.subr.mxu0 0.0
        %1149 = vmatpush2.msra.mxu0 0.0
        %1150 = vmatprep.subr.mxu0 0.0
        %1151 = vmatpush2.msra.mxu0 0.0
        %1152 = vmatprep.subr.mxu0 0.0
        %1153 = vmatpush2.msra.mxu0 0.0
        %1154 = vmatprep.subr.mxu0 0.0
        %1155 = vmatpush2.msra.mxu0 0.0
        %1156 = vmatprep.subr.mxu0 0.0
        %1157 = vmatpush2.msra.mxu0 0.0
        %1158 = vmatprep.subr.mxu0 0.0
        %1159 = vmatpush2.msra.mxu0 0.0
        %1160 = vmatprep.subr.mxu0 0.0
        %1161 = vmatpush2.msra.mxu0 0.0
        %1162 = vmatprep.subr.mxu0 0.0
        %1163 = vmatpush2.msra.mxu0 0.0
        %1164 = vmatprep.subr.mxu0 0.0
        %1165 = vmatpush2.msra.mxu0 0.0
        %1166 = vmatprep.subr.mxu0 0.0
        %1167 = vmatpush2.msra.mxu0 0.0
        %1168 = vmatprep.subr.mxu0 0.0
        %1169 = vmatpush2.msra.mxu0 0.0
        %1170 = vmatprep.subr.mxu0 0.0
        %1171 = vmatpush2.msra.mxu0 0.0
        %1172 = vmatprep.subr.mxu0 0.0
        %1173 = vmatpush2.msra.mxu0 0.0
        %1174 = vmatprep.subr.mxu0 0.0
        %1175 = vmatpush2.msra.mxu0 0.0
        %1176 = vmatprep.subr.mxu0 0.0
        %1177 = vmatpush2.msra.mxu0 0.0
        %1178 = vmatprep.mubr.f32.mxu0 0.0
        %1179 = vmatmul.mubr.f32.gmra.mxu0 %v1112
        %v1180 = vpop.f32.mrf.mxu0
        %v1181 = vadd.f32 0.0, %v1180
        %v1182 = vpop.f32.mrf.mxu0
        %1183 = vdwg.mxu0
        %v1184 = vmul.f32 %v1181, %v1107
        %1186 = vrot.lane.b32.xlu0 %v1184, 16
        %v1187 = vpop.permute.xlu0 %1186
        %vm1189 = vcmask 195712
        %1190 = vst.msk [vmem:[#allocation4] sm:$0xff] %vm1189, %v1187
        %1191 = vrot.lane.b32.xlu0 %v678, 104
        %v1192 = vpop.permute.xlu0 %1191
        %1193 = vrot.lane.b32.xlu0 %v681, 104
        %v1194 = vpop.permute.xlu0 %1193
        %v1195 = vsel %vm683, %v1192, 0
        %v1197 = vsel %vm683, %v1194, 0
        %1199 = vmatprep.subr.mxu0 0.0
        %1200 = vmatpush1.xpose.msra.mxu0 0.0
        %1201 = vmatprep.subr.mxu0 0.0
        %1202 = vmatpush1.xpose.msra.mxu0 0.0
        %1203 = vmatprep.subr.mxu0 0.0
        %1204 = vmatpush1.xpose.msra.mxu0 0.0
        %1205 = vmatprep.subr.mxu0 0.0
        %1206 = vmatpush1.xpose.msra.mxu0 0.0
        %1207 = vmatprep.subr.mxu0 0.0
        %1208 = vmatpush1.xpose.msra.mxu0 0.0
        %1209 = vmatprep.subr.mxu0 0.0
        %1210 = vmatpush1.xpose.msra.mxu0 0.0
        %1211 = vmatprep.subr.mxu0 0.0
        %1212 = vmatpush1.xpose.msra.mxu0 0.0
        %1213 = vmatprep.subr.mxu0 0.0
        %1214 = vmatpush1.xpose.msra.mxu0 0.0
        %1215 = vmatprep.subr.mxu0 0.0
        %1216 = vmatpush1.xpose.msra.mxu0 0.0
        %1217 = vmatprep.subr.mxu0 0.0
        %1218 = vmatpush1.xpose.msra.mxu0 0.0
        %1219 = vmatprep.subr.mxu0 0.0
        %1220 = vmatpush1.xpose.msra.mxu0 0.0
        %1221 = vmatprep.subr.mxu0 0.0
        %1222 = vmatpush1.xpose.msra.mxu0 0.0
        %1223 = vmatprep.subr.mxu0 0.0
        %1224 = vmatpush1.xpose.msra.mxu0 0.0
        %1225 = vmatprep.subr.mxu0 0.0
        %1226 = vmatpush1.xpose.msra.mxu0 0.0
        %1227 = vmatprep.subr.mxu0 0.0
        %1228 = vmatpush1.xpose.msra.mxu0 0.0
        %1229 = vmatprep.subr.mxu0 0.0
        %1230 = vmatpush1.xpose.msra.mxu0 %v1197
        %1231 = vmatprep.subr.mxu0 0.0
        %1232 = vmatpush2.xpose.msra.mxu0 0.0
        %1233 = vmatprep.subr.mxu0 0.0
        %1234 = vmatpush2.xpose.msra.mxu0 0.0
        %1235 = vmatprep.subr.mxu0 0.0
        %1236 = vmatpush2.xpose.msra.mxu0 0.0
        %1237 = vmatprep.subr.mxu0 0.0
        %1238 = vmatpush2.xpose.msra.mxu0 0.0
        %1239 = vmatprep.subr.mxu0 0.0
        %1240 = vmatpush2.xpose.msra.mxu0 0.0
        %1241 = vmatprep.subr.mxu0 0.0
        %1242 = vmatpush2.xpose.msra.mxu0 0.0
        %1243 = vmatprep.subr.mxu0 0.0
        %1244 = vmatpush2.xpose.msra.mxu0 0.0
        %1245 = vmatprep.subr.mxu0 0.0
        %1246 = vmatpush2.xpose.msra.mxu0 0.0
        %1247 = vmatprep.subr.mxu0 0.0
        %1248 = vmatpush2.xpose.msra.mxu0 0.0
        %1249 = vmatprep.subr.mxu0 0.0
        %1250 = vmatpush2.xpose.msra.mxu0 0.0
        %1251 = vmatprep.subr.mxu0 0.0
        %1252 = vmatpush2.xpose.msra.mxu0 0.0
        %1253 = vmatprep.subr.mxu0 0.0
        %1254 = vmatpush2.xpose.msra.mxu0 0.0
        %1255 = vmatprep.subr.mxu0 0.0
        %1256 = vmatpush2.xpose.msra.mxu0 0.0
        %1257 = vmatprep.subr.mxu0 0.0
        %1258 = vmatpush2.xpose.msra.mxu0 0.0
        %1259 = vmatprep.subr.mxu0 0.0
        %1260 = vmatpush2.xpose.msra.mxu0 0.0
        %1261 = vmatprep.subr.mxu0 0.0
        %1262 = vmatpush2.xpose.msra.mxu0 0.0
        %1263 = vmatprep.mubr.f32.mxu0 0.0
        %1264 = vmatmul.mubr.f32.gmra.mxu0 %v1195
        %v1265 = vpop.f32.mrf.mxu0
        %v1266 = vadd.f32 0.0, %v1265
        %v1267 = vpop.f32.mrf.mxu0
        %1268 = vdwg.mxu0
        %v1269 = vmul.f32 %v1266, 0.35355338
        %v1270 = vsel %vm683, %v1269, -inf
        %1271 = vmax.xlane.f32.xlu0 %v1270
        %v1272 = vpop.xlane.xlu0 %1271
        %v1273 = vsub.f32 %v1269, %v1272
        %v1274 = vmul.f32 %v1273, 1.442695
        %v1275 = vpow.pop %v1274
        %v1276 = vsel %vm683, %v1275, 0.0
        %1277 = vadd.xlane.f32.xlu0 %v1276
        %v1278 = vpop.xlane.xlu0 %1277
        %v1279 = vrcp.pop %v1278
        %1280 = vrot.lane.b32.xlu0 %v682, 104
        %v1281 = vpop.permute.xlu0 %1280
        %v1284 = vsel %vm683, %v1275, 0
        %1286 = vmatprep.subr.mxu0 0.0
        %1287 = vmatpush1.msra.mxu0 0.0
        %1288 = vmatprep.subr.mxu0 0.0
        %1289 = vmatpush1.msra.mxu0 0.0
        %1290 = vmatprep.subr.mxu0 0.0
        %1291 = vmatpush1.msra.mxu0 0.0
        %1292 = vmatprep.subr.mxu0 0.0
        %1293 = vmatpush1.msra.mxu0 0.0
        %1294 = vmatprep.subr.mxu0 0.0
        %1295 = vmatpush1.msra.mxu0 0.0
        %1296 = vmatprep.subr.mxu0 0.0
        %1297 = vmatpush1.msra.mxu0 0.0
        %1298 = vmatprep.subr.mxu0 0.0
        %1299 = vmatpush1.msra.mxu0 0.0
        %1300 = vmatprep.subr.mxu0 0.0
        %1301 = vmatpush1.msra.mxu0 0.0
        %1302 = vmatprep.subr.mxu0 0.0
        %1303 = vmatpush1.msra.mxu0 0.0
        %1304 = vmatprep.subr.mxu0 0.0
        %1305 = vmatpush1.msra.mxu0 0.0
        %1306 = vmatprep.subr.mxu0 0.0
        %1307 = vmatpush1.msra.mxu0 0.0
        %1308 = vmatprep.subr.mxu0 0.0
        %1309 = vmatpush1.msra.mxu0 0.0
        %1310 = vmatprep.subr.mxu0 0.0
        %1311 = vmatpush1.msra.mxu0 0.0
        %1312 = vmatprep.subr.mxu0 0.0
        %1313 = vmatpush1.msra.mxu0 0.0
        %1314 = vmatprep.subr.mxu0 0.0
        %1315 = vmatpush1.msra.mxu0 0.0
        %1316 = vmatprep.subr.mxu0 0.0
        %1317 = vmatpush1.msra.mxu0 %v1281
        %1318 = vmatprep.subr.mxu0 0.0
        %1319 = vmatpush2.msra.mxu0 0.0
        %1320 = vmatprep.subr.mxu0 0.0
        %1321 = vmatpush2.msra.mxu0 0.0
        %1322 = vmatprep.subr.mxu0 0.0
        %1323 = vmatpush2.msra.mxu0 0.0
        %1324 = vmatprep.subr.mxu0 0.0
        %1325 = vmatpush2.msra.mxu0 0.0
        %1326 = vmatprep.subr.mxu0 0.0
        %1327 = vmatpush2.msra.mxu0 0.0
        %1328 = vmatprep.subr.mxu0 0.0
        %1329 = vmatpush2.msra.mxu0 0.0
        %1330 = vmatprep.subr.mxu0 0.0
        %1331 = vmatpush2.msra.mxu0 0.0
        %1332 = vmatprep.subr.mxu0 0.0
        %1333 = vmatpush2.msra.mxu0 0.0
        %1334 = vmatprep.subr.mxu0 0.0
        %1335 = vmatpush2.msra.mxu0 0.0
        %1336 = vmatprep.subr.mxu0 0.0
        %1337 = vmatpush2.msra.mxu0 0.0
        %1338 = vmatprep.subr.mxu0 0.0
        %1339 = vmatpush2.msra.mxu0 0.0
        %1340 = vmatprep.subr.mxu0 0.0
        %1341 = vmatpush2.msra.mxu0 0.0
        %1342 = vmatprep.subr.mxu0 0.0
        %1343 = vmatpush2.msra.mxu0 0.0
        %1344 = vmatprep.subr.mxu0 0.0
        %1345 = vmatpush2.msra.mxu0 0.0
        %1346 = vmatprep.subr.mxu0 0.0
        %1347 = vmatpush2.msra.mxu0 0.0
        %1348 = vmatprep.subr.mxu0 0.0
        %1349 = vmatpush2.msra.mxu0 0.0
        %1350 = vmatprep.mubr.f32.mxu0 0.0
        %1351 = vmatmul.mubr.f32.gmra.mxu0 %v1284
        %v1352 = vpop.f32.mrf.mxu0
        %v1353 = vadd.f32 0.0, %v1352
        %v1354 = vpop.f32.mrf.mxu0
        %1355 = vdwg.mxu0
        %v1356 = vmul.f32 %v1353, %v1279
        %1358 = vrot.lane.b32.xlu0 %v1356, 24
        %v1359 = vpop.permute.xlu0 %1358
        %vm1361 = vcmask 261312
        %1362 = vst.msk [vmem:[#allocation4] sm:$0xff] %vm1361, %v1359
        %v1363 = vld [vmem:[#allocation4] sm:$0xff]
        %v1364 = vld [vmem:[#allocation13] sm:$0xff]
        %v1365 = vld [vmem:[#allocation13 + $0x8] sm:$0xff]
        %v1366 = vld [vmem:[#allocation13 + $0x10] sm:$0xff]
        %v1367 = vld [vmem:[#allocation13 + $0x18] sm:$0xff]
        %v1368 = vld [vmem:[%s8] sm:$0x1]
        %v1370 = vlaneseq
        %v1371 = vshrl.u32 %v1370, 7
        %v1372 = vsub.s32 0, %v1371
        %v1373 = vrot.slane %v1368, %v1372
        %v1376 = vsel %vm607, %v1363, 0
        %1378 = vmatprep.subr.mxu0 0.0
        %1379 = vmatpush1.msra.mxu0 0.0
        %1380 = vmatprep.subr.mxu0 0.0
        %1381 = vmatpush1.msra.mxu0 0.0
        %1382 = vmatprep.subr.mxu0 0.0
        %1383 = vmatpush1.msra.mxu0 0.0
        %1384 = vmatprep.subr.mxu0 0.0
        %1385 = vmatpush1.msra.mxu0 0.0
        %1386 = vmatprep.subr.mxu0 0.0
        %1387 = vmatpush1.msra.mxu0 0.0
        %1388 = vmatprep.subr.mxu0 0.0
        %1389 = vmatpush1.msra.mxu0 0.0
        %1390 = vmatprep.subr.mxu0 0.0
        %1391 = vmatpush1.msra.mxu0 0.0
        %1392 = vmatprep.subr.mxu0 0.0
        %1393 = vmatpush1.msra.mxu0 0.0
        %1394 = vmatprep.subr.mxu0 0.0
        %1395 = vmatpush1.msra.mxu0 0.0
        %1396 = vmatprep.subr.mxu0 0.0
        %1397 = vmatpush1.msra.mxu0 0.0
        %1398 = vmatprep.subr.mxu0 0.0
        %1399 = vmatpush1.msra.mxu0 0.0
        %1400 = vmatprep.subr.mxu0 0.0
        %1401 = vmatpush1.msra.mxu0 0.0
        %1402 = vmatprep.subr.mxu0 0.0
        %1403 = vmatpush1.msra.mxu0 %v1367
        %1404 = vmatprep.subr.mxu0 0.0
        %1405 = vmatpush1.msra.mxu0 %v1366
        %1406 = vmatprep.subr.mxu0 0.0
        %1407 = vmatpush1.msra.mxu0 %v1365
        %1408 = vmatprep.subr.mxu0 0.0
        %1409 = vmatpush1.msra.mxu0 %v1364
        %1410 = vmatprep.subr.mxu0 0.0
        %1411 = vmatpush2.msra.mxu0 0.0
        %1412 = vmatprep.subr.mxu0 0.0
        %1413 = vmatpush2.msra.mxu0 0.0
        %1414 = vmatprep.subr.mxu0 0.0
        %1415 = vmatpush2.msra.mxu0 0.0
        %1416 = vmatprep.subr.mxu0 0.0
        %1417 = vmatpush2.msra.mxu0 0.0
        %1418 = vmatprep.subr.mxu0 0.0
        %1419 = vmatpush2.msra.mxu0 0.0
        %1420 = vmatprep.subr.mxu0 0.0
        %1421 = vmatpush2.msra.mxu0 0.0
        %1422 = vmatprep.subr.mxu0 0.0
        %1423 = vmatpush2.msra.mxu0 0.0
        %1424 = vmatprep.subr.mxu0 0.0
        %1425 = vmatpush2.msra.mxu0 0.0
        %1426 = vmatprep.subr.mxu0 0.0
        %1427 = vmatpush2.msra.mxu0 0.0
        %1428 = vmatprep.subr.mxu0 0.0
        %1429 = vmatpush2.msra.mxu0 0.0
        %1430 = vmatprep.subr.mxu0 0.0
        %1431 = vmatpush2.msra.mxu0 0.0
        %1432 = vmatprep.subr.mxu0 0.0
        %1433 = vmatpush2.msra.mxu0 0.0
        %1434 = vmatprep.subr.mxu0 0.0
        %1435 = vmatpush2.msra.mxu0 0.0
        %1436 = vmatprep.subr.mxu0 0.0
        %1437 = vmatpush2.msra.mxu0 0.0
        %1438 = vmatprep.subr.mxu0 0.0
        %1439 = vmatpush2.msra.mxu0 0.0
        %1440 = vmatprep.subr.mxu0 0.0
        %1441 = vmatpush2.msra.mxu0 0.0
        %1442 = vmatprep.mubr.f32.mxu0 0.0
        %1443 = vmatmul.mubr.f32.gmra.mxu0 %v1376
        %v1444 = vpop.f32.mrf.mxu0
        %v1445 = vadd.f32 %v1373, %v1444
        %v1446 = vpop.f32.mrf.mxu0
        %1447 = vdwg.mxu0
        %1448 = vst.msk [vmem:[%s419] sm:$0xff] %vm607, %v1445
        %s1449 = sand.u32 %s244, 1
        %s1450 = scalar_lea.sflag [#allocation7], %s1449
        %s1451 = sand.u32 %s244, 1
        %s1452 = smul.addr %s1451, 8
        %s1453 = scalar_lea.vmem [#allocation14], %s1452
        // Predicated region
        $region81: #{tpu_custom_call.1} parent=55 // pred_check
          %p1454 = pneg %p254
        $region82: #{tpu_custom_call.1} parent=55 // pred_check_branch
          %1456 = sbr.rel (%p1454) target = $region84
        $region83: #{tpu_custom_call.1} parent=55 // pred_region
          %s1458 = ssub.s32 128, 128
          %1459 = vsyncadd %s1450, %s1458
          %s1460 = sadd.s32 %s33, %s32
          %s1461 = smul.addr %s1460, 128
          %s1462 = scalar_lea.hbm %s9, %s1461
          %s1464 = sshll.u32 %s1453, 4
          %s1465 = int_to_ptr.vmem [resolvable:$true] %s1464
          %1467 = dma.vmem_to_hbm [thread:$0]  %s1465, 128, %s1462, %s1450
        $region84: #{tpu_custom_call.1} parent=55 // pred_fallthru
          _
      $region56: #{tpu_custom_call.1} parent=5 // pred_fallthru
        _
      %p1468 = scmp.le.s32.totalorder 2, %s23
      // Predicated region
      $region85: #{tpu_custom_call.1} parent=5 // pred_check
        %p1469 = pneg %p1468
      $region86: #{tpu_custom_call.1} parent=5 // pred_check_branch
        %1471 = sbr.rel (%p1469) target = $region88
      $region87: #{tpu_custom_call.1} parent=5 // pred_region
        %s1472 = ssub.s32 %s23, 2
        // Predicated region
        $region89: #{tpu_custom_call.1} parent=87 // pred_check
          %p1473 = pneg %p260
        $region90: #{tpu_custom_call.1} parent=87 // pred_check_branch
          %1475 = sbr.rel (%p1473) target = $region92
        $region91: #{tpu_custom_call.1} parent=87 // pred_region
          %s1476 = sand.u32 %s245, 1
          %s1477 = scalar_lea.sflag [#allocation7], %s1476
          %s1478 = sand.u32 %s245, 1
          %s1479 = smul.addr %s1478, 8
          %s1480 = scalar_lea.vmem [#allocation14], %s1479
          %1481 = dma.done %s1477, 128
        $region92: #{tpu_custom_call.1} parent=87 // pred_fallthru
          _
      $region88: #{tpu_custom_call.1} parent=5 // pred_fallthru
        _
    $region6: #{tpu_custom_call.1} parent=1 // loop_footer
      %s27 = sadd.s32 1, %s23
    $region7: #{tpu_custom_call.1} parent=1 // loop_footer_branch
      %22 = sbr.rel target = $region3
    $region8: #{tpu_custom_call.1} parent=1 // loop_exit
      _
    %1482 = vsyncpa [#allocation6], 1
    %s1483 = scalar_lea.sflag [#allocation6], 1
    %1484 = vsyncpa %s1483, 1
    %1485 = vsyncpa [#allocation9], 1
    %1486 = vsyncpa [#allocation12], 1
    %1487 = vsyncpa [#allocation7], 1
    %s1488 = scalar_lea.sflag [#allocation7], 1
    %1489 = vsyncpa %s1488, 1

</llo_original>
